<compile_context>
chip_gen: v6e
topology: v6e:2x2x1
jax: 0.10.0
libtpu: 0.0.40
codegen_flags: <defaults>
</compile_context>

<pallas_src>
import math
import functools

import numpy as np
import jax
import jax.numpy as jnp
from jax import lax
from jax.experimental import pallas as pl
from jax.experimental.pallas import tpu as pltpu

DILATIONS = (1, 3, 9)
_MAX_REACH = 3 * max(DILATIONS)     # 27: receptive-field halo of the dilated convs


# ----------------------------- Pallas kernel -------------------------------
def _decoder_block_kernel(x_ref, mask_ref, a_in_ref, r_in_ref, wt_ref, bt_ref,
                          aa_ref, ra_ref, w7_ref, b7_ref, ab_ref, rb_ref,
                          w1_ref, b1_ref, out_ref,
                          *, stride, k_t, p_t, T1, T2, c_in, c_out):
    f32 = jnp.float32

    def snake(v, alpha, recip):
        # v + (1/(a+eps)) * sin(a*v)^2 ; recip precomputed host-side. snake(0)=0.
        return v + recip * jnp.square(jnp.sin(alpha * v))

    mask = mask_ref[...]                                         # (1, T2)

    # ---- Snake1d on the folded input (halo lanes are zero; snake(0)==0) ----
    x = snake(x_ref[0].astype(f32), a_in_ref[...], r_in_ref[...])   # (c_in, T1)

    # ---- ConvTranspose1d: zero-upsample via constant 0/1 matmul + im2col ----
    if stride > 1:
        row = lax.broadcasted_iota(jnp.int32, (T1, T2), 0)
        col = lax.broadcasted_iota(jnp.int32, (T1, T2), 1)
        up = (col == stride * row).astype(f32)                   # U[m, stride*m] = 1
        x_up = jnp.dot(x, up, preferred_element_type=f32)        # (c_in, T2)
    else:
        x_up = x

    lpad, rpad = k_t - 1 - p_t, p_t
    pieces = []
    if lpad > 0:
        pieces.append(jnp.zeros((c_in, lpad), f32))
    pieces.append(x_up)
    if rpad > 0:
        pieces.append(jnp.zeros((c_in, rpad), f32))
    xp = jnp.concatenate(pieces, axis=1)                         # (c_in, T2 + k_t - 1)
    # cols[j*c_in + ci, T] = x_up[ci, T + p_t - j]
    cols = jnp.concatenate(
        [xp[:, k_t - 1 - j: k_t - 1 - j + T2] for j in range(k_t)], axis=0)
    x = (jnp.dot(wt_ref[...], cols, preferred_element_type=f32)
         + bt_ref[...]) * mask                                   # (c_out, T2)

    # ---- 3 residual units (dilations 1, 3, 9), all "same"-length ----
    for u, d in enumerate(DILATIONS):
        h = snake(x, aa_ref[u], ra_ref[u])
        pad = 3 * d
        hp = jnp.concatenate([jnp.zeros((c_out, pad), f32), h,
                              jnp.zeros((c_out, pad), f32)], axis=1)
        # cols[tap*c_out + ci, T] = h_padded[ci, T + tap*d]   (single im2col matmul)
        cols = jnp.concatenate(
            [hp[:, t * d: t * d + T2] for t in range(7)], axis=0)   # (7*c_out, T2)
        h = jnp.dot(w7_ref[u], cols, preferred_element_type=f32) + b7_ref[u]
        h = snake(h, ab_ref[u], rb_ref[u])
        h = jnp.dot(w1_ref[u], h, preferred_element_type=f32) + b1_ref[u]
        x = x + h * mask                                        # halos stay exactly 0

    out_ref[0] = x.astype(out_ref.dtype)


# ------------------------------ host wrapper --------------------------------
def decoder_block(x, params, *, stride=1, group_size=8):
    """x: (B, C_in, L) NCL.  Returns (B, C_out, L_out) matching nn.ConvTranspose1d."""
    B, c_in, L = x.shape
    alpha_in, wt, bt, aa, w7, b7, ab, w1, b1 = params
    c_out = wt.shape[1]

    k_t = 2 * stride
    p_t = math.ceil(stride / 2)
    L_t = (L - 1) * stride - 2 * p_t + k_t          # ConvTranspose1d output length

    # Batch grouping (each group is one lane-dense grid step).
    G = min(B, group_size)
    n_groups = -(-B // G)
    B_pad = n_groups * G

    # Zero halo between sequences (input rate): covers the dilated-conv reach
    # (27 at output rate) and the transposed conv's 2-sample input reach.
    H = max(2, math.ceil(_MAX_REACH / stride) + 1)
    seg = L + H
    base = H + G * seg
    T1 = -(-base // 128) * 128                      # lanes at the input rate
    T2 = stride * T1                                # lanes at the output rate (x128)

    # ---- fold the batch onto the lane axis with zero halos ----
    xf = x
    if B_pad != B:
        xf = jnp.concatenate([xf, jnp.zeros((B_pad - B, c_in, L), x.dtype)], 0)
    xf = jnp.pad(xf, ((0, 0), (0, 0), (0, H)))                     # (B_pad, c_in, seg)
    xf = xf.reshape(n_groups, G, c_in, seg).transpose(0, 2, 1, 3)
    xf = xf.reshape(n_groups, c_in, G * seg)
    xf = jnp.pad(xf, ((0, 0), (0, 0), (H, T1 - base)))             # (n_groups, c_in, T1)

    # ---- validity mask at the output rate (zeros on the halos) ----
    m = np.zeros((1, T2), np.float32)
    for i in range(G):
        s0 = stride * (H + i * seg)
        m[0, s0:s0 + L_t] = 1.0
    mask = jnp.asarray(m)

    # ---- host-side parameter re-layout (im2col-flattened, contiguous tiles) ----
    eps = 1e-9
    a_in = alpha_in.reshape(c_in, 1)
    r_in = 1.0 / (a_in + eps)
    # ConvTranspose1d weight (c_in, c_out, k) -> flat[co, j*c_in + ci] = wt[ci, co, j]
    wt_f = wt.transpose(1, 2, 0).reshape(c_out, k_t * c_in)
    bt_c = bt.reshape(c_out, 1)
    aa_c = aa.reshape(3, c_out, 1)
    ra_c = 1.0 / (aa_c + eps)
    # Conv1d weight (co, ci, 7) -> flat[co, tap*c_out + ci] = w7[co, ci, tap]
    w7_f = w7.transpose(0, 1, 3, 2).reshape(3, c_out, 7 * c_out)
    b7_c = b7.reshape(3, c_out, 1)
    ab_c = ab.reshape(3, c_out, 1)
    rb_c = 1.0 / (ab_c + eps)
    b1_c = b1.reshape(3, c_out, 1)

    kernel = functools.partial(_decoder_block_kernel, stride=stride, k_t=k_t,
                               p_t=p_t, T1=T1, T2=T2, c_in=c_in, c_out=c_out)

    grid_spec = pltpu.PrefetchScalarGridSpec(
        num_scalar_prefetch=0,
        grid=(n_groups,),
        in_specs=[
            pl.BlockSpec((1, c_in, T1), lambda g: (g, 0, 0)),
            pl.BlockSpec((1, T2), lambda g: (0, 0)),
            pl.BlockSpec((c_in, 1), lambda g: (0, 0)),
            pl.BlockSpec((c_in, 1), lambda g: (0, 0)),
            pl.BlockSpec((c_out, k_t * c_in), lambda g: (0, 0)),
            pl.BlockSpec((c_out, 1), lambda g: (0, 0)),
            pl.BlockSpec((3, c_out, 1), lambda g: (0, 0, 0)),
            pl.BlockSpec((3, c_out, 1), lambda g: (0, 0, 0)),
            pl.BlockSpec((3, c_out, 7 * c_out), lambda g: (0, 0, 0)),
            pl.BlockSpec((3, c_out, 1), lambda g: (0, 0, 0)),
            pl.BlockSpec((3, c_out, 1), lambda g: (0, 0, 0)),
            pl.BlockSpec((3, c_out, 1), lambda g: (0, 0, 0)),
            pl.BlockSpec((3, c_out, c_out), lambda g: (0, 0, 0)),
            pl.BlockSpec((3, c_out, 1), lambda g: (0, 0, 0)),
        ],
        out_specs=pl.BlockSpec((1, c_out, T2), lambda g: (g, 0, 0)),
    )

    y = pl.pallas_call(
        kernel,
        out_shape=jax.ShapeDtypeStruct((n_groups, c_out, T2), jnp.float32),
        grid_spec=grid_spec,
        compiler_params=pltpu.CompilerParams(
            dimension_semantics=("parallel",)),
    )(xf, mask, a_in, r_in, wt_f, bt_c, aa_c, ra_c, w7_f, b7_c, ab_c, rb_c,
      w1, b1_c)

    # ---- unfold: extract per-sequence outputs from the lane-folded result ----
    out = y[:, :, stride * H: stride * (H + G * seg)]
    out = out.reshape(n_groups, c_out, G, stride * seg)[..., :L_t]
    out = out.transpose(0, 2, 1, 3).reshape(B_pad, c_out, L_t)
    return out[:B]


# ------------------------- deterministic parameters -------------------------
def init_params(key, *, input_dim=16, output_dim=8, stride=1):
    k_t = 2 * stride
    keys = jax.random.split(key, 10)

    def wn_conv(k, co, ci, ks):          # Conv1d weight (co, ci, ks), weight_norm dim=0
        k1, k2 = jax.random.split(k)
        v = jax.random.normal(k1, (co, ci, ks), jnp.float32)
        g = 0.5 + jax.random.uniform(k2, (co, 1, 1), jnp.float32)
        return g * v / jnp.sqrt(jnp.sum(v * v, axis=(1, 2), keepdims=True))

    def wn_convT(k, ci, co, ks):         # ConvTranspose1d weight (ci, co, ks), dim=0
        k1, k2 = jax.random.split(k)
        v = jax.random.normal(k1, (ci, co, ks), jnp.float32)
        g = 0.5 + jax.random.uniform(k2, (ci, 1, 1), jnp.float32)
        return g * v / jnp.sqrt(jnp.sum(v * v, axis=(1, 2), keepdims=True))

    alpha_in = jnp.ones((input_dim,), jnp.float32)          # Snake1d alpha init = 1
    wt = wn_convT(keys[0], input_dim, output_dim, k_t)
    bt = 0.1 * jax.random.normal(keys[1], (output_dim,), jnp.float32)
    aa = jnp.ones((3, output_dim), jnp.float32)
    ab = jnp.ones((3, output_dim), jnp.float32)
    w7 = jnp.stack([wn_conv(keys[2 + i], output_dim, output_dim, 7) for i in range(3)])
    b7 = 0.1 * jax.random.normal(keys[5], (3, output_dim), jnp.float32)
    w1 = jnp.stack([wn_conv(keys[6 + i], output_dim, output_dim, 1)[:, :, 0]
                    for i in range(3)])
    b1 = 0.1 * jax.random.normal(keys[9], (3, output_dim), jnp.float32)
    return (alpha_in, wt, bt, aa, w7, b7, ab, w1, b1)


# --------------------------- pure-JAX reference ------------------------------
def _snake_ref(x, alpha):
    a = alpha[None, :, None]
    return x + (1.0 / (a + 1e-9)) * jnp.sin(a * x) ** 2


def _conv1d_ref(x, w, b, stride=1, dilation=1, pad=0):
    y = lax.conv_general_dilated(
        x, w, window_strides=(stride,), padding=[(pad, pad)],
        rhs_dilation=(dilation,), dimension_numbers=("NCH", "OIH", "NCH"))
    return y + b[None, :, None]


def _convT1d_ref(x, w, b, stride, pad):
    # PyTorch ConvTranspose1d: w is (c_in, c_out, k)
    k = w.shape[-1]
    w_r = jnp.flip(w, axis=-1).transpose(1, 0, 2)            # (c_out, c_in, k)
    y = lax.conv_general_dilated(
        x, w_r, window_strides=(1,), padding=[(k - 1 - pad, k - 1 - pad)],
        lhs_dilation=(stride,), dimension_numbers=("NCH", "OIH", "NCH"))
    return y + b[None, :, None]


def decoder_block_ref(x, params, *, stride=1):
    alpha_in, wt, bt, aa, w7, b7, ab, w1, b1 = params
    x = _snake_ref(x, alpha_in)
    x = _convT1d_ref(x, wt, bt, stride, math.ceil(stride / 2))
    for u, d in enumerate(DILATIONS):
        y = _snake_ref(x, aa[u])
        y = _conv1d_ref(y, w7[u], b7[u], dilation=d, pad=3 * d)
        y = _snake_ref(y, ab[u])
        y = _conv1d_ref(y, w1[u][:, :, None], b1[u])
        # ResidualUnit trim: (len(x) - len(y)) // 2 == 0 for these convs
        x = x + y
    return x


# ------------------------------------ main -----------------------------------
if __name__ == "__main__":
    # DecoderBlock(input_dim=16, output_dim=8, stride=2): upsampling path.
    input_dim, output_dim, stride = 16, 8, 2
    B, L = 2, 16

    key = jax.random.PRNGKey(0)
    kx, kp = jax.random.split(key)
    x = jax.random.normal(kx, (B, input_dim, L), jnp.float32)
    params = init_params(kp, input_dim=input_dim, output_dim=output_dim,
                         stride=stride)

    out = decoder_block(x, params, stride=stride)
    out = jax.block_until_ready(out)

    ref = decoder_block_ref(x, params, stride=stride)
    assert out.shape == ref.shape, (out.shape, ref.shape)
    np.testing.assert_allclose(np.asarray(out), np.asarray(ref),
                               rtol=1e-4, atol=1e-4)
    print("KERNEL_OK")
</pallas_src>

<mosaic_0001>
module attributes {stable_mosaic.version = 11 : i64} {
  func.func @_decoder_block_kernel(%arg0: i32, %arg1: memref<1x16x128xf32, #tpu.memory_space<vmem>>, %arg2: memref<1x256xf32, #tpu.memory_space<vmem>>, %arg3: memref<16x1xf32, #tpu.memory_space<vmem>>, %arg4: memref<16x1xf32, #tpu.memory_space<vmem>>, %arg5: memref<8x64xf32, #tpu.memory_space<vmem>>, %arg6: memref<8x1xf32, #tpu.memory_space<vmem>>, %arg7: memref<3x8x1xf32, #tpu.memory_space<vmem>>, %arg8: memref<3x8x1xf32, #tpu.memory_space<vmem>>, %arg9: memref<3x8x56xf32, #tpu.memory_space<vmem>>, %arg10: memref<3x8x1xf32, #tpu.memory_space<vmem>>, %arg11: memref<3x8x1xf32, #tpu.memory_space<vmem>>, %arg12: memref<3x8x1xf32, #tpu.memory_space<vmem>>, %arg13: memref<3x8x8xf32, #tpu.memory_space<vmem>>, %arg14: memref<3x8x1xf32, #tpu.memory_space<vmem>>, %arg15: memref<1x8x256xf32, #tpu.memory_space<vmem>>) attributes {dimension_semantics = [#tpu.dimension_semantics<parallel>], iteration_bounds = array<i64: 1>, scalar_prefetch = 0 : i64, scratch_operands = 0 : i64, tpu.core_type = #tpu.core_type<tc>, window_params = [{transform_indices = @transform_0, window_bounds = array<i64: 1, 16, 128>}, {pipeline_mode = #tpu.pipeline_mode<synchronous>, transform_indices = @transform_1, window_bounds = array<i64: 1, 256>}, {pipeline_mode = #tpu.pipeline_mode<synchronous>, transform_indices = @transform_2, window_bounds = array<i64: 16, 1>}, {pipeline_mode = #tpu.pipeline_mode<synchronous>, transform_indices = @transform_3, window_bounds = array<i64: 16, 1>}, {pipeline_mode = #tpu.pipeline_mode<synchronous>, transform_indices = @transform_4, window_bounds = array<i64: 8, 64>}, {pipeline_mode = #tpu.pipeline_mode<synchronous>, transform_indices = @transform_5, window_bounds = array<i64: 8, 1>}, {pipeline_mode = #tpu.pipeline_mode<synchronous>, transform_indices = @transform_6, window_bounds = array<i64: 3, 8, 1>}, {pipeline_mode = #tpu.pipeline_mode<synchronous>, transform_indices = @transform_7, window_bounds = array<i64: 3, 8, 1>}, {pipeline_mode = #tpu.pipeline_mode<synchronous>, transform_indices = @transform_8, window_bounds = array<i64: 3, 8, 56>}, {pipeline_mode = #tpu.pipeline_mode<synchronous>, transform_indices = @transform_9, window_bounds = array<i64: 3, 8, 1>}, {pipeline_mode = #tpu.pipeline_mode<synchronous>, transform_indices = @transform_10, window_bounds = array<i64: 3, 8, 1>}, {pipeline_mode = #tpu.pipeline_mode<synchronous>, transform_indices = @transform_11, window_bounds = array<i64: 3, 8, 1>}, {pipeline_mode = #tpu.pipeline_mode<synchronous>, transform_indices = @transform_12, window_bounds = array<i64: 3, 8, 8>}, {pipeline_mode = #tpu.pipeline_mode<synchronous>, transform_indices = @transform_13, window_bounds = array<i64: 3, 8, 1>}, {transform_indices = @transform_14, window_bounds = array<i64: 1, 8, 256>}]} {
    %c0 = arith.constant 0 : index
    %c0_0 = arith.constant 0 : index
    %0 = vector.load %arg2[%c0, %c0_0] : memref<1x256xf32, #tpu.memory_space<vmem>>, vector<1x256xf32>
    %c0_1 = arith.constant 0 : index
    %c0_2 = arith.constant 0 : index
    %c0_3 = arith.constant 0 : index
    %1 = vector.load %arg1[%c0_1, %c0_2, %c0_3] : memref<1x16x128xf32, #tpu.memory_space<vmem>>, vector<1x16x128xf32>
    %2 = vector.shape_cast %1 : vector<1x16x128xf32> to vector<16x128xf32>
    %c0_4 = arith.constant 0 : index
    %c0_5 = arith.constant 0 : index
    %3 = vector.load %arg3[%c0_4, %c0_5] : memref<16x1xf32, #tpu.memory_space<vmem>>, vector<16x1xf32>
    %c0_6 = arith.constant 0 : index
    %c0_7 = arith.constant 0 : index
    %4 = vector.load %arg4[%c0_6, %c0_7] : memref<16x1xf32, #tpu.memory_space<vmem>>, vector<16x1xf32>
    %5 = vector.broadcast %3 : vector<16x1xf32> to vector<16x128xf32>
    %6 = arith.mulf %5, %2 : vector<16x128xf32>
    %7 = math.sin %6 : vector<16x128xf32>
    %8 = arith.mulf %7, %7 : vector<16x128xf32>
    %9 = vector.broadcast %4 : vector<16x1xf32> to vector<16x128xf32>
    %10 = arith.mulf %9, %8 : vector<16x128xf32>
    %11 = arith.addf %2, %10 : vector<16x128xf32>
    %12 = tpu.iota {dimensions = array<i32: 0>} : vector<128x256xi32>
    %13 = tpu.iota {dimensions = array<i32: 1>} : vector<128x256xi32>
    %c2_i32 = arith.constant 2 : i32
    %14 = vector.broadcast %c2_i32 : i32 to vector<128x256xi32>
    %15 = arith.muli %14, %12 : vector<128x256xi32>
    %16 = arith.cmpi eq, %13, %15 : vector<128x256xi32>
    %17 = arith.extui %16 : vector<128x256xi1> to vector<128x256xi32>
    %18 = arith.sitofp %17 : vector<128x256xi32> to vector<128x256xf32>
    %cst = arith.constant dense<0.000000e+00> : vector<16x256xf32>
    %19 = tpu.matmul %11, %18, %cst {dimension_numbers = #tpu.dot_dimension_numbers<[1], [0], [0], [1], [0, 0, 1, 1], [], []>} : vector<16x128xf32>, vector<128x256xf32>, vector<16x256xf32> -> vector<16x256xf32>
    %cst_8 = arith.constant 0.000000e+00 : f32
    %20 = vector.broadcast %cst_8 : f32 to vector<16x2xf32>
    %cst_9 = arith.constant 0.000000e+00 : f32
    %21 = vector.broadcast %cst_9 : f32 to vector<16x1xf32>
    %22 = tpu.concatenate %20, %19, %21 in 1 : vector<16x2xf32>, vector<16x256xf32>, vector<16x1xf32> -> vector<16x259xf32>
    %23 = vector.extract_strided_slice %22 {offsets = [0, 3], sizes = [16, 256], strides = [1, 1]} : vector<16x259xf32> to vector<16x256xf32>
    %24 = vector.extract_strided_slice %22 {offsets = [0, 2], sizes = [16, 256], strides = [1, 1]} : vector<16x259xf32> to vector<16x256xf32>
    %25 = vector.extract_strided_slice %22 {offsets = [0, 1], sizes = [16, 256], strides = [1, 1]} : vector<16x259xf32> to vector<16x256xf32>
    %26 = vector.extract_strided_slice %22 {offsets = [0, 0], sizes = [16, 256], strides = [1, 1]} : vector<16x259xf32> to vector<16x256xf32>
    %27 = tpu.concatenate %23, %24, %25, %26 in 0 : vector<16x256xf32>, vector<16x256xf32>, vector<16x256xf32>, vector<16x256xf32> -> vector<64x256xf32>
    %c0_10 = arith.constant 0 : index
    %c0_11 = arith.constant 0 : index
    %28 = vector.load %arg5[%c0_10, %c0_11] : memref<8x64xf32, #tpu.memory_space<vmem>>, vector<8x64xf32>
    %cst_12 = arith.constant dense<0.000000e+00> : vector<8x256xf32>
    %29 = tpu.matmul %28, %27, %cst_12 {dimension_numbers = #tpu.dot_dimension_numbers<[1], [0], [0], [1], [0, 0, 1, 1], [], []>} : vector<8x64xf32>, vector<64x256xf32>, vector<8x256xf32> -> vector<8x256xf32>
    %c0_13 = arith.constant 0 : index
    %c0_14 = arith.constant 0 : index
    %30 = vector.load %arg6[%c0_13, %c0_14] : memref<8x1xf32, #tpu.memory_space<vmem>>, vector<8x1xf32>
    %31 = vector.broadcast %30 : vector<8x1xf32> to vector<8x256xf32>
    %32 = arith.addf %29, %31 : vector<8x256xf32>
    %33 = vector.broadcast %0 : vector<1x256xf32> to vector<8x256xf32>
    %34 = arith.mulf %32, %33 : vector<8x256xf32>
    %c0_15 = arith.constant 0 : index
    %c0_16 = arith.constant 0 : index
    %c0_17 = arith.constant 0 : index
    %35 = vector.load %arg7[%c0_15, %c0_16, %c0_17] : memref<3x8x1xf32, #tpu.memory_space<vmem>>, vector<1x8x1xf32>
    %36 = vector.shape_cast %35 : vector<1x8x1xf32> to vector<8x1xf32>
    %c0_18 = arith.constant 0 : index
    %c0_19 = arith.constant 0 : index
    %c0_20 = arith.constant 0 : index
    %37 = vector.load %arg8[%c0_18, %c0_19, %c0_20] : memref<3x8x1xf32, #tpu.memory_space<vmem>>, vector<1x8x1xf32>
    %38 = vector.shape_cast %37 : vector<1x8x1xf32> to vector<8x1xf32>
    %39 = vector.broadcast %36 : vector<8x1xf32> to vector<8x256xf32>
    %40 = arith.mulf %39, %34 : vector<8x256xf32>
    %41 = math.sin %40 : vector<8x256xf32>
    %42 = arith.mulf %41, %41 : vector<8x256xf32>
    %43 = vector.broadcast %38 : vector<8x1xf32> to vector<8x256xf32>
    %44 = arith.mulf %43, %42 : vector<8x256xf32>
    %45 = arith.addf %34, %44 : vector<8x256xf32>
    %cst_21 = arith.constant 0.000000e+00 : f32
    %46 = vector.broadcast %cst_21 : f32 to vector<8x3xf32>
    %cst_22 = arith.constant 0.000000e+00 : f32
    %47 = vector.broadcast %cst_22 : f32 to vector<8x3xf32>
    %48 = tpu.concatenate %46, %45, %47 in 1 : vector<8x3xf32>, vector<8x256xf32>, vector<8x3xf32> -> vector<8x262xf32>
    %49 = vector.extract_strided_slice %48 {offsets = [0, 0], sizes = [8, 256], strides = [1, 1]} : vector<8x262xf32> to vector<8x256xf32>
    %50 = vector.extract_strided_slice %48 {offsets = [0, 1], sizes = [8, 256], strides = [1, 1]} : vector<8x262xf32> to vector<8x256xf32>
    %51 = vector.extract_strided_slice %48 {offsets = [0, 2], sizes = [8, 256], strides = [1, 1]} : vector<8x262xf32> to vector<8x256xf32>
    %52 = vector.extract_strided_slice %48 {offsets = [0, 3], sizes = [8, 256], strides = [1, 1]} : vector<8x262xf32> to vector<8x256xf32>
    %53 = vector.extract_strided_slice %48 {offsets = [0, 4], sizes = [8, 256], strides = [1, 1]} : vector<8x262xf32> to vector<8x256xf32>
    %54 = vector.extract_strided_slice %48 {offsets = [0, 5], sizes = [8, 256], strides = [1, 1]} : vector<8x262xf32> to vector<8x256xf32>
    %55 = vector.extract_strided_slice %48 {offsets = [0, 6], sizes = [8, 256], strides = [1, 1]} : vector<8x262xf32> to vector<8x256xf32>
    %56 = tpu.concatenate %49, %50, %51, %52, %53, %54, %55 in 0 : vector<8x256xf32>, vector<8x256xf32>, vector<8x256xf32>, vector<8x256xf32>, vector<8x256xf32>, vector<8x256xf32>, vector<8x256xf32> -> vector<56x256xf32>
    %c0_23 = arith.constant 0 : index
    %c0_24 = arith.constant 0 : index
    %c0_25 = arith.constant 0 : index
    %57 = vector.load %arg9[%c0_23, %c0_24, %c0_25] : memref<3x8x56xf32, #tpu.memory_space<vmem>>, vector<1x8x56xf32>
    %58 = vector.shape_cast %57 : vector<1x8x56xf32> to vector<8x56xf32>
    %cst_26 = arith.constant dense<0.000000e+00> : vector<8x256xf32>
    %59 = tpu.matmul %58, %56, %cst_26 {dimension_numbers = #tpu.dot_dimension_numbers<[1], [0], [0], [1], [0, 0, 1, 1], [], []>} : vector<8x56xf32>, vector<56x256xf32>, vector<8x256xf32> -> vector<8x256xf32>
    %c0_27 = arith.constant 0 : index
    %c0_28 = arith.constant 0 : index
    %c0_29 = arith.constant 0 : index
    %60 = vector.load %arg10[%c0_27, %c0_28, %c0_29] : memref<3x8x1xf32, #tpu.memory_space<vmem>>, vector<1x8x1xf32>
    %61 = vector.shape_cast %60 : vector<1x8x1xf32> to vector<8x1xf32>
    %62 = vector.broadcast %61 : vector<8x1xf32> to vector<8x256xf32>
    %63 = arith.addf %59, %62 : vector<8x256xf32>
    %c0_30 = arith.constant 0 : index
    %c0_31 = arith.constant 0 : index
    %c0_32 = arith.constant 0 : index
    %64 = vector.load %arg11[%c0_30, %c0_31, %c0_32] : memref<3x8x1xf32, #tpu.memory_space<vmem>>, vector<1x8x1xf32>
    %65 = vector.shape_cast %64 : vector<1x8x1xf32> to vector<8x1xf32>
    %c0_33 = arith.constant 0 : index
    %c0_34 = arith.constant 0 : index
    %c0_35 = arith.constant 0 : index
    %66 = vector.load %arg12[%c0_33, %c0_34, %c0_35] : memref<3x8x1xf32, #tpu.memory_space<vmem>>, vector<1x8x1xf32>
    %67 = vector.shape_cast %66 : vector<1x8x1xf32> to vector<8x1xf32>
    %68 = vector.broadcast %65 : vector<8x1xf32> to vector<8x256xf32>
    %69 = arith.mulf %68, %63 : vector<8x256xf32>
    %70 = math.sin %69 : vector<8x256xf32>
    %71 = arith.mulf %70, %70 : vector<8x256xf32>
    %72 = vector.broadcast %67 : vector<8x1xf32> to vector<8x256xf32>
    %73 = arith.mulf %72, %71 : vector<8x256xf32>
    %74 = arith.addf %63, %73 : vector<8x256xf32>
    %c0_36 = arith.constant 0 : index
    %c0_37 = arith.constant 0 : index
    %c0_38 = arith.constant 0 : index
    %75 = vector.load %arg13[%c0_36, %c0_37, %c0_38] : memref<3x8x8xf32, #tpu.memory_space<vmem>>, vector<1x8x8xf32>
    %76 = vector.shape_cast %75 : vector<1x8x8xf32> to vector<8x8xf32>
    %cst_39 = arith.constant dense<0.000000e+00> : vector<8x256xf32>
    %77 = tpu.matmul %76, %74, %cst_39 {dimension_numbers = #tpu.dot_dimension_numbers<[1], [0], [0], [1], [0, 0, 1, 1], [], []>} : vector<8x8xf32>, vector<8x256xf32>, vector<8x256xf32> -> vector<8x256xf32>
    %c0_40 = arith.constant 0 : index
    %c0_41 = arith.constant 0 : index
    %c0_42 = arith.constant 0 : index
    %78 = vector.load %arg14[%c0_40, %c0_41, %c0_42] : memref<3x8x1xf32, #tpu.memory_space<vmem>>, vector<1x8x1xf32>
    %79 = vector.shape_cast %78 : vector<1x8x1xf32> to vector<8x1xf32>
    %80 = vector.broadcast %79 : vector<8x1xf32> to vector<8x256xf32>
    %81 = arith.addf %77, %80 : vector<8x256xf32>
    %82 = vector.broadcast %0 : vector<1x256xf32> to vector<8x256xf32>
    %83 = arith.mulf %81, %82 : vector<8x256xf32>
    %84 = arith.addf %34, %83 : vector<8x256xf32>
    %c1 = arith.constant 1 : index
    %c0_43 = arith.constant 0 : index
    %c0_44 = arith.constant 0 : index
    %85 = vector.load %arg7[%c1, %c0_43, %c0_44] : memref<3x8x1xf32, #tpu.memory_space<vmem>>, vector<1x8x1xf32>
    %86 = vector.shape_cast %85 : vector<1x8x1xf32> to vector<8x1xf32>
    %c1_45 = arith.constant 1 : index
    %c0_46 = arith.constant 0 : index
    %c0_47 = arith.constant 0 : index
    %87 = vector.load %arg8[%c1_45, %c0_46, %c0_47] : memref<3x8x1xf32, #tpu.memory_space<vmem>>, vector<1x8x1xf32>
    %88 = vector.shape_cast %87 : vector<1x8x1xf32> to vector<8x1xf32>
    %89 = vector.broadcast %86 : vector<8x1xf32> to vector<8x256xf32>
    %90 = arith.mulf %89, %84 : vector<8x256xf32>
    %91 = math.sin %90 : vector<8x256xf32>
    %92 = arith.mulf %91, %91 : vector<8x256xf32>
    %93 = vector.broadcast %88 : vector<8x1xf32> to vector<8x256xf32>
    %94 = arith.mulf %93, %92 : vector<8x256xf32>
    %95 = arith.addf %84, %94 : vector<8x256xf32>
    %cst_48 = arith.constant 0.000000e+00 : f32
    %96 = vector.broadcast %cst_48 : f32 to vector<8x9xf32>
    %cst_49 = arith.constant 0.000000e+00 : f32
    %97 = vector.broadcast %cst_49 : f32 to vector<8x9xf32>
    %98 = tpu.concatenate %96, %95, %97 in 1 : vector<8x9xf32>, vector<8x256xf32>, vector<8x9xf32> -> vector<8x274xf32>
    %99 = vector.extract_strided_slice %98 {offsets = [0, 0], sizes = [8, 256], strides = [1, 1]} : vector<8x274xf32> to vector<8x256xf32>
    %100 = vector.extract_strided_slice %98 {offsets = [0, 3], sizes = [8, 256], strides = [1, 1]} : vector<8x274xf32> to vector<8x256xf32>
    %101 = vector.extract_strided_slice %98 {offsets = [0, 6], sizes = [8, 256], strides = [1, 1]} : vector<8x274xf32> to vector<8x256xf32>
    %102 = vector.extract_strided_slice %98 {offsets = [0, 9], sizes = [8, 256], strides = [1, 1]} : vector<8x274xf32> to vector<8x256xf32>
    %103 = vector.extract_strided_slice %98 {offsets = [0, 12], sizes = [8, 256], strides = [1, 1]} : vector<8x274xf32> to vector<8x256xf32>
    %104 = vector.extract_strided_slice %98 {offsets = [0, 15], sizes = [8, 256], strides = [1, 1]} : vector<8x274xf32> to vector<8x256xf32>
    %105 = vector.extract_strided_slice %98 {offsets = [0, 18], sizes = [8, 256], strides = [1, 1]} : vector<8x274xf32> to vector<8x256xf32>
    %106 = tpu.concatenate %99, %100, %101, %102, %103, %104, %105 in 0 : vector<8x256xf32>, vector<8x256xf32>, vector<8x256xf32>, vector<8x256xf32>, vector<8x256xf32>, vector<8x256xf32>, vector<8x256xf32> -> vector<56x256xf32>
    %c1_50 = arith.constant 1 : index
    %c0_51 = arith.constant 0 : index
    %c0_52 = arith.constant 0 : index
    %107 = vector.load %arg9[%c1_50, %c0_51, %c0_52] : memref<3x8x56xf32, #tpu.memory_space<vmem>>, vector<1x8x56xf32>
    %108 = vector.shape_cast %107 : vector<1x8x56xf32> to vector<8x56xf32>
    %cst_53 = arith.constant dense<0.000000e+00> : vector<8x256xf32>
    %109 = tpu.matmul %108, %106, %cst_53 {dimension_numbers = #tpu.dot_dimension_numbers<[1], [0], [0], [1], [0, 0, 1, 1], [], []>} : vector<8x56xf32>, vector<56x256xf32>, vector<8x256xf32> -> vector<8x256xf32>
    %c1_54 = arith.constant 1 : index
    %c0_55 = arith.constant 0 : index
    %c0_56 = arith.constant 0 : index
    %110 = vector.load %arg10[%c1_54, %c0_55, %c0_56] : memref<3x8x1xf32, #tpu.memory_space<vmem>>, vector<1x8x1xf32>
    %111 = vector.shape_cast %110 : vector<1x8x1xf32> to vector<8x1xf32>
    %112 = vector.broadcast %111 : vector<8x1xf32> to vector<8x256xf32>
    %113 = arith.addf %109, %112 : vector<8x256xf32>
    %c1_57 = arith.constant 1 : index
    %c0_58 = arith.constant 0 : index
    %c0_59 = arith.constant 0 : index
    %114 = vector.load %arg11[%c1_57, %c0_58, %c0_59] : memref<3x8x1xf32, #tpu.memory_space<vmem>>, vector<1x8x1xf32>
    %115 = vector.shape_cast %114 : vector<1x8x1xf32> to vector<8x1xf32>
    %c1_60 = arith.constant 1 : index
    %c0_61 = arith.constant 0 : index
    %c0_62 = arith.constant 0 : index
    %116 = vector.load %arg12[%c1_60, %c0_61, %c0_62] : memref<3x8x1xf32, #tpu.memory_space<vmem>>, vector<1x8x1xf32>
    %117 = vector.shape_cast %116 : vector<1x8x1xf32> to vector<8x1xf32>
    %118 = vector.broadcast %115 : vector<8x1xf32> to vector<8x256xf32>
    %119 = arith.mulf %118, %113 : vector<8x256xf32>
    %120 = math.sin %119 : vector<8x256xf32>
    %121 = arith.mulf %120, %120 : vector<8x256xf32>
    %122 = vector.broadcast %117 : vector<8x1xf32> to vector<8x256xf32>
    %123 = arith.mulf %122, %121 : vector<8x256xf32>
    %124 = arith.addf %113, %123 : vector<8x256xf32>
    %c1_63 = arith.constant 1 : index
    %c0_64 = arith.constant 0 : index
    %c0_65 = arith.constant 0 : index
    %125 = vector.load %arg13[%c1_63, %c0_64, %c0_65] : memref<3x8x8xf32, #tpu.memory_space<vmem>>, vector<1x8x8xf32>
    %126 = vector.shape_cast %125 : vector<1x8x8xf32> to vector<8x8xf32>
    %cst_66 = arith.constant dense<0.000000e+00> : vector<8x256xf32>
    %127 = tpu.matmul %126, %124, %cst_66 {dimension_numbers = #tpu.dot_dimension_numbers<[1], [0], [0], [1], [0, 0, 1, 1], [], []>} : vector<8x8xf32>, vector<8x256xf32>, vector<8x256xf32> -> vector<8x256xf32>
    %c1_67 = arith.constant 1 : index
    %c0_68 = arith.constant 0 : index
    %c0_69 = arith.constant 0 : index
    %128 = vector.load %arg14[%c1_67, %c0_68, %c0_69] : memref<3x8x1xf32, #tpu.memory_space<vmem>>, vector<1x8x1xf32>
    %129 = vector.shape_cast %128 : vector<1x8x1xf32> to vector<8x1xf32>
    %130 = vector.broadcast %129 : vector<8x1xf32> to vector<8x256xf32>
    %131 = arith.addf %127, %130 : vector<8x256xf32>
    %132 = vector.broadcast %0 : vector<1x256xf32> to vector<8x256xf32>
    %133 = arith.mulf %131, %132 : vector<8x256xf32>
    %134 = arith.addf %84, %133 : vector<8x256xf32>
    %c2 = arith.constant 2 : index
    %c0_70 = arith.constant 0 : index
    %c0_71 = arith.constant 0 : index
    %135 = vector.load %arg7[%c2, %c0_70, %c0_71] : memref<3x8x1xf32, #tpu.memory_space<vmem>>, vector<1x8x1xf32>
    %136 = vector.shape_cast %135 : vector<1x8x1xf32> to vector<8x1xf32>
    %c2_72 = arith.constant 2 : index
    %c0_73 = arith.constant 0 : index
    %c0_74 = arith.constant 0 : index
    %137 = vector.load %arg8[%c2_72, %c0_73, %c0_74] : memref<3x8x1xf32, #tpu.memory_space<vmem>>, vector<1x8x1xf32>
    %138 = vector.shape_cast %137 : vector<1x8x1xf32> to vector<8x1xf32>
    %139 = vector.broadcast %136 : vector<8x1xf32> to vector<8x256xf32>
    %140 = arith.mulf %139, %134 : vector<8x256xf32>
    %141 = math.sin %140 : vector<8x256xf32>
    %142 = arith.mulf %141, %141 : vector<8x256xf32>
    %143 = vector.broadcast %138 : vector<8x1xf32> to vector<8x256xf32>
    %144 = arith.mulf %143, %142 : vector<8x256xf32>
    %145 = arith.addf %134, %144 : vector<8x256xf32>
    %cst_75 = arith.constant 0.000000e+00 : f32
    %146 = vector.broadcast %cst_75 : f32 to vector<8x27xf32>
    %cst_76 = arith.constant 0.000000e+00 : f32
    %147 = vector.broadcast %cst_76 : f32 to vector<8x27xf32>
    %148 = tpu.concatenate %146, %145, %147 in 1 : vector<8x27xf32>, vector<8x256xf32>, vector<8x27xf32> -> vector<8x310xf32>
    %149 = vector.extract_strided_slice %148 {offsets = [0, 0], sizes = [8, 256], strides = [1, 1]} : vector<8x310xf32> to vector<8x256xf32>
    %150 = vector.extract_strided_slice %148 {offsets = [0, 9], sizes = [8, 256], strides = [1, 1]} : vector<8x310xf32> to vector<8x256xf32>
    %151 = vector.extract_strided_slice %148 {offsets = [0, 18], sizes = [8, 256], strides = [1, 1]} : vector<8x310xf32> to vector<8x256xf32>
    %152 = vector.extract_strided_slice %148 {offsets = [0, 27], sizes = [8, 256], strides = [1, 1]} : vector<8x310xf32> to vector<8x256xf32>
    %153 = vector.extract_strided_slice %148 {offsets = [0, 36], sizes = [8, 256], strides = [1, 1]} : vector<8x310xf32> to vector<8x256xf32>
    %154 = vector.extract_strided_slice %148 {offsets = [0, 45], sizes = [8, 256], strides = [1, 1]} : vector<8x310xf32> to vector<8x256xf32>
    %155 = vector.extract_strided_slice %148 {offsets = [0, 54], sizes = [8, 256], strides = [1, 1]} : vector<8x310xf32> to vector<8x256xf32>
    %156 = tpu.concatenate %149, %150, %151, %152, %153, %154, %155 in 0 : vector<8x256xf32>, vector<8x256xf32>, vector<8x256xf32>, vector<8x256xf32>, vector<8x256xf32>, vector<8x256xf32>, vector<8x256xf32> -> vector<56x256xf32>
    %c2_77 = arith.constant 2 : index
    %c0_78 = arith.constant 0 : index
    %c0_79 = arith.constant 0 : index
    %157 = vector.load %arg9[%c2_77, %c0_78, %c0_79] : memref<3x8x56xf32, #tpu.memory_space<vmem>>, vector<1x8x56xf32>
    %158 = vector.shape_cast %157 : vector<1x8x56xf32> to vector<8x56xf32>
    %cst_80 = arith.constant dense<0.000000e+00> : vector<8x256xf32>
    %159 = tpu.matmul %158, %156, %cst_80 {dimension_numbers = #tpu.dot_dimension_numbers<[1], [0], [0], [1], [0, 0, 1, 1], [], []>} : vector<8x56xf32>, vector<56x256xf32>, vector<8x256xf32> -> vector<8x256xf32>
    %c2_81 = arith.constant 2 : index
    %c0_82 = arith.constant 0 : index
    %c0_83 = arith.constant 0 : index
    %160 = vector.load %arg10[%c2_81, %c0_82, %c0_83] : memref<3x8x1xf32, #tpu.memory_space<vmem>>, vector<1x8x1xf32>
    %161 = vector.shape_cast %160 : vector<1x8x1xf32> to vector<8x1xf32>
    %162 = vector.broadcast %161 : vector<8x1xf32> to vector<8x256xf32>
    %163 = arith.addf %159, %162 : vector<8x256xf32>
    %c2_84 = arith.constant 2 : index
    %c0_85 = arith.constant 0 : index
    %c0_86 = arith.constant 0 : index
    %164 = vector.load %arg11[%c2_84, %c0_85, %c0_86] : memref<3x8x1xf32, #tpu.memory_space<vmem>>, vector<1x8x1xf32>
    %165 = vector.shape_cast %164 : vector<1x8x1xf32> to vector<8x1xf32>
    %c2_87 = arith.constant 2 : index
    %c0_88 = arith.constant 0 : index
    %c0_89 = arith.constant 0 : index
    %166 = vector.load %arg12[%c2_87, %c0_88, %c0_89] : memref<3x8x1xf32, #tpu.memory_space<vmem>>, vector<1x8x1xf32>
    %167 = vector.shape_cast %166 : vector<1x8x1xf32> to vector<8x1xf32>
    %168 = vector.broadcast %165 : vector<8x1xf32> to vector<8x256xf32>
    %169 = arith.mulf %168, %163 : vector<8x256xf32>
    %170 = math.sin %169 : vector<8x256xf32>
    %171 = arith.mulf %170, %170 : vector<8x256xf32>
    %172 = vector.broadcast %167 : vector<8x1xf32> to vector<8x256xf32>
    %173 = arith.mulf %172, %171 : vector<8x256xf32>
    %174 = arith.addf %163, %173 : vector<8x256xf32>
    %c2_90 = arith.constant 2 : index
    %c0_91 = arith.constant 0 : index
    %c0_92 = arith.constant 0 : index
    %175 = vector.load %arg13[%c2_90, %c0_91, %c0_92] : memref<3x8x8xf32, #tpu.memory_space<vmem>>, vector<1x8x8xf32>
    %176 = vector.shape_cast %175 : vector<1x8x8xf32> to vector<8x8xf32>
    %cst_93 = arith.constant dense<0.000000e+00> : vector<8x256xf32>
    %177 = tpu.matmul %176, %174, %cst_93 {dimension_numbers = #tpu.dot_dimension_numbers<[1], [0], [0], [1], [0, 0, 1, 1], [], []>} : vector<8x8xf32>, vector<8x256xf32>, vector<8x256xf32> -> vector<8x256xf32>
    %c2_94 = arith.constant 2 : index
    %c0_95 = arith.constant 0 : index
    %c0_96 = arith.constant 0 : index
    %178 = vector.load %arg14[%c2_94, %c0_95, %c0_96] : memref<3x8x1xf32, #tpu.memory_space<vmem>>, vector<1x8x1xf32>
    %179 = vector.shape_cast %178 : vector<1x8x1xf32> to vector<8x1xf32>
    %180 = vector.broadcast %179 : vector<8x1xf32> to vector<8x256xf32>
    %181 = arith.addf %177, %180 : vector<8x256xf32>
    %182 = vector.broadcast %0 : vector<1x256xf32> to vector<8x256xf32>
    %183 = arith.mulf %181, %182 : vector<8x256xf32>
    %184 = arith.addf %134, %183 : vector<8x256xf32>
    %c0_97 = arith.constant 0 : index
    %c0_98 = arith.constant 0 : index
    %c0_99 = arith.constant 0 : index
    %185 = vector.load %arg15[%c0_97, %c0_98, %c0_99] : memref<1x8x256xf32, #tpu.memory_space<vmem>>, vector<1x8x256xf32>
    %186 = vector.shape_cast %185 : vector<1x8x256xf32> to vector<8x256xf32>
    %187 = vector.shape_cast %184 : vector<8x256xf32> to vector<1x8x256xf32>
    tpu.vector_store %arg15[%c0_97, %c0_98, %c0_99], %187 {strides = array<i32>} : memref<1x8x256xf32, #tpu.memory_space<vmem>>, vector<1x8x256xf32>,
    return
  }
  func.func @transform_0(%arg0: i32) -> (i32, i32, i32) {
    %c0_i32 = arith.constant 0 : i32
    %c0_i32_0 = arith.constant 0 : i32
    %c0_i32_1 = arith.constant 0 : i32
    return %arg0, %c0_i32, %c0_i32_0 : i32, i32, i32
  }
  func.func @transform_1(%arg0: i32) -> (i32, i32) {
    %c0_i32 = arith.constant 0 : i32
    %c0_i32_0 = arith.constant 0 : i32
    %c0_i32_1 = arith.constant 0 : i32
    return %c0_i32, %c0_i32_0 : i32, i32
  }
  func.func @transform_2(%arg0: i32) -> (i32, i32) {
    %c0_i32 = arith.constant 0 : i32
    %c0_i32_0 = arith.constant 0 : i32
    %c0_i32_1 = arith.constant 0 : i32
    return %c0_i32, %c0_i32_0 : i32, i32
  }
  func.func @transform_3(%arg0: i32) -> (i32, i32) {
    %c0_i32 = arith.constant 0 : i32
    %c0_i32_0 = arith.constant 0 : i32
    %c0_i32_1 = arith.constant 0 : i32
    return %c0_i32, %c0_i32_0 : i32, i32
  }
  func.func @transform_4(%arg0: i32) -> (i32, i32) {
    %c0_i32 = arith.constant 0 : i32
    %c0_i32_0 = arith.constant 0 : i32
    %c0_i32_1 = arith.constant 0 : i32
    return %c0_i32, %c0_i32_0 : i32, i32
  }
  func.func @transform_5(%arg0: i32) -> (i32, i32) {
    %c0_i32 = arith.constant 0 : i32
    %c0_i32_0 = arith.constant 0 : i32
    %c0_i32_1 = arith.constant 0 : i32
    return %c0_i32, %c0_i32_0 : i32, i32
  }
  func.func @transform_6(%arg0: i32) -> (i32, i32, i32) {
    %c0_i32 = arith.constant 0 : i32
    %c0_i32_0 = arith.constant 0 : i32
    %c0_i32_1 = arith.constant 0 : i32
    %c0_i32_2 = arith.constant 0 : i32
    return %c0_i32, %c0_i32_0, %c0_i32_1 : i32, i32, i32
  }
  func.func @transform_7(%arg0: i32) -> (i32, i32, i32) {
    %c0_i32 = arith.constant 0 : i32
    %c0_i32_0 = arith.constant 0 : i32
    %c0_i32_1 = arith.constant 0 : i32
    %c0_i32_2 = arith.constant 0 : i32
    return %c0_i32, %c0_i32_0, %c0_i32_1 : i32, i32, i32
  }
  func.func @transform_8(%arg0: i32) -> (i32, i32, i32) {
    %c0_i32 = arith.constant 0 : i32
    %c0_i32_0 = arith.constant 0 : i32
    %c0_i32_1 = arith.constant 0 : i32
    %c0_i32_2 = arith.constant 0 : i32
    return %c0_i32, %c0_i32_0, %c0_i32_1 : i32, i32, i32
  }
  func.func @transform_9(%arg0: i32) -> (i32, i32, i32) {
    %c0_i32 = arith.constant 0 : i32
    %c0_i32_0 = arith.constant 0 : i32
    %c0_i32_1 = arith.constant 0 : i32
    %c0_i32_2 = arith.constant 0 : i32
    return %c0_i32, %c0_i32_0, %c0_i32_1 : i32, i32, i32
  }
  func.func @transform_10(%arg0: i32) -> (i32, i32, i32) {
    %c0_i32 = arith.constant 0 : i32
    %c0_i32_0 = arith.constant 0 : i32
    %c0_i32_1 = arith.constant 0 : i32
    %c0_i32_2 = arith.constant 0 : i32
    return %c0_i32, %c0_i32_0, %c0_i32_1 : i32, i32, i32
  }
  func.func @transform_11(%arg0: i32) -> (i32, i32, i32) {
    %c0_i32 = arith.constant 0 : i32
    %c0_i32_0 = arith.constant 0 : i32
    %c0_i32_1 = arith.constant 0 : i32
    %c0_i32_2 = arith.constant 0 : i32
    return %c0_i32, %c0_i32_0, %c0_i32_1 : i32, i32, i32
  }
  func.func @transform_12(%arg0: i32) -> (i32, i32, i32) {
    %c0_i32 = arith.constant 0 : i32
    %c0_i32_0 = arith.constant 0 : i32
    %c0_i32_1 = arith.constant 0 : i32
    %c0_i32_2 = arith.constant 0 : i32
    return %c0_i32, %c0_i32_0, %c0_i32_1 : i32, i32, i32
  }
  func.func @transform_13(%arg0: i32) -> (i32, i32, i32) {
    %c0_i32 = arith.constant 0 : i32
    %c0_i32_0 = arith.constant 0 : i32
    %c0_i32_1 = arith.constant 0 : i32
    %c0_i32_2 = arith.constant 0 : i32
    return %c0_i32, %c0_i32_0, %c0_i32_1 : i32, i32, i32
  }
  func.func @transform_14(%arg0: i32) -> (i32, i32, i32) {
    %c0_i32 = arith.constant 0 : i32
    %c0_i32_0 = arith.constant 0 : i32
    %c0_i32_1 = arith.constant 0 : i32
    return %arg0, %c0_i32, %c0_i32_0 : i32, i32, i32
  }
}

</mosaic_0001>

<llo_original>
// kernel: tpu_custom_call.1
$region0: #{tpu_custom_call.1}
  #allocation0 [shape = 'u32[]', space=smem, size = 0x4, offset = 0x4, fixed_abs, tag = 'smem constant byte address 0x4 - core index']
  #allocation1 [shape = 'u32[144,128]{1,0:T(1,128)}', space=vmem, size = 0x12000, scoped, tag = 'internal scratch']
  %s0 = inlined_call_operand.vmem [shape: f32[1,16,128], index: 0, kind: input, shape index: {}]
  %s1 = inlined_call_operand.vmem [shape: f32[1,256], index: 1, kind: input, shape index: {}]
  %s2 = inlined_call_operand.vmem [shape: f32[16,1], index: 2, kind: input, shape index: {}]
  %s3 = inlined_call_operand.vmem [shape: f32[16,1], index: 3, kind: input, shape index: {}]
  %s4 = inlined_call_operand.vmem [shape: f32[8,64], index: 4, kind: input, shape index: {}]
  %s5 = inlined_call_operand.vmem [shape: f32[8,1], index: 5, kind: input, shape index: {}]
  %s6 = inlined_call_operand.vmem [shape: f32[3,8,1], index: 6, kind: input, shape index: {}]
  %s7 = inlined_call_operand.vmem [shape: f32[3,8,1], index: 7, kind: input, shape index: {}]
  %s8 = inlined_call_operand.vmem [shape: f32[3,8,56], index: 8, kind: input, shape index: {}]
  %s9 = inlined_call_operand.vmem [shape: f32[3,8,1], index: 9, kind: input, shape index: {}]
  %s10 = inlined_call_operand.vmem [shape: f32[3,8,1], index: 10, kind: input, shape index: {}]
  %s11 = inlined_call_operand.vmem [shape: f32[3,8,1], index: 11, kind: input, shape index: {}]
  %s12 = inlined_call_operand.vmem [shape: f32[3,8,8], index: 12, kind: input, shape index: {}]
  %s13 = inlined_call_operand.vmem [shape: f32[3,8,1], index: 13, kind: input, shape index: {}]
  %s14 = inlined_call_operand.hbm [shape: f32[1,8,256], index: 14, kind: output, shape index: {}]
  %s15 = sld [smem:[#allocation0]]
  $region66: #{tpu_custom_call.1} parent=0
    _
  %s17 = ssub.s32 1, %s15
  %s18 = scalar_select 0, %s17, %s15
  $region1: #{tpu_custom_call.1} parent=0
    #allocation2 [shape = 'u8[8192]{0}', space=vmem, size = 0x2000, scoped, tag = 'output window, operand 0, single buffered']
    #allocation3 [shape = 's32[1]{0}', space=sflag, size = 0x4, scoped, tag = 'scoped memory for tpu_custom_call.1']
    %19 = vsyncpa [#allocation3], 0
    // Predicated region
    $region2: #{tpu_custom_call.1} parent=1 // pred_check
      _
    $region3: #{tpu_custom_call.1} parent=1 // pred_check_branch
      %21 = sbr.rel (0) target = $region5
    $region4: #{tpu_custom_call.1} parent=1 // pred_region
      _
    $region5: #{tpu_custom_call.1} parent=1 // pred_fallthru
      _
    // Predicated region
    $region6: #{tpu_custom_call.1} parent=1 // pred_check
      _
    $region7: #{tpu_custom_call.1} parent=1 // pred_check_branch
      %23 = sbr.rel (0) target = $region9
    $region8: #{tpu_custom_call.1} parent=1 // pred_region
      _
    $region9: #{tpu_custom_call.1} parent=1 // pred_fallthru
      _
    // Predicated region
    $region10: #{tpu_custom_call.1} parent=1 // pred_check
      _
    $region11: #{tpu_custom_call.1} parent=1 // pred_check_branch
      %25 = sbr.rel (0) target = $region13
    $region12: #{tpu_custom_call.1} parent=1 // pred_region
      _
    $region13: #{tpu_custom_call.1} parent=1 // pred_fallthru
      _
    // Predicated region
    $region14: #{tpu_custom_call.1} parent=1 // pred_check
      _
    $region15: #{tpu_custom_call.1} parent=1 // pred_check_branch
      %27 = sbr.rel (0) target = $region17
    $region16: #{tpu_custom_call.1} parent=1 // pred_region
      _
    $region17: #{tpu_custom_call.1} parent=1 // pred_fallthru
      _
    // Predicated region
    $region18: #{tpu_custom_call.1} parent=1 // pred_check
      _
    $region19: #{tpu_custom_call.1} parent=1 // pred_check_branch
      %29 = sbr.rel (0) target = $region21
    $region20: #{tpu_custom_call.1} parent=1 // pred_region
      _
    $region21: #{tpu_custom_call.1} parent=1 // pred_fallthru
      _
    // Predicated region
    $region22: #{tpu_custom_call.1} parent=1 // pred_check
      _
    $region23: #{tpu_custom_call.1} parent=1 // pred_check_branch
      %31 = sbr.rel (0) target = $region25
    $region24: #{tpu_custom_call.1} parent=1 // pred_region
      _
    $region25: #{tpu_custom_call.1} parent=1 // pred_fallthru
      _
    // Predicated region
    $region26: #{tpu_custom_call.1} parent=1 // pred_check
      _
    $region27: #{tpu_custom_call.1} parent=1 // pred_check_branch
      %33 = sbr.rel (0) target = $region29
    $region28: #{tpu_custom_call.1} parent=1 // pred_region
      _
    $region29: #{tpu_custom_call.1} parent=1 // pred_fallthru
      _
    // Predicated region
    $region30: #{tpu_custom_call.1} parent=1 // pred_check
      _
    $region31: #{tpu_custom_call.1} parent=1 // pred_check_branch
      %35 = sbr.rel (0) target = $region33
    $region32: #{tpu_custom_call.1} parent=1 // pred_region
      _
    $region33: #{tpu_custom_call.1} parent=1 // pred_fallthru
      _
    // Predicated region
    $region34: #{tpu_custom_call.1} parent=1 // pred_check
      _
    $region35: #{tpu_custom_call.1} parent=1 // pred_check_branch
      %37 = sbr.rel (0) target = $region37
    $region36: #{tpu_custom_call.1} parent=1 // pred_region
      _
    $region37: #{tpu_custom_call.1} parent=1 // pred_fallthru
      _
    // Predicated region
    $region38: #{tpu_custom_call.1} parent=1 // pred_check
      _
    $region39: #{tpu_custom_call.1} parent=1 // pred_check_branch
      %39 = sbr.rel (0) target = $region41
    $region40: #{tpu_custom_call.1} parent=1 // pred_region
      _
    $region41: #{tpu_custom_call.1} parent=1 // pred_fallthru
      _
    // Predicated region
    $region42: #{tpu_custom_call.1} parent=1 // pred_check
      _
    $region43: #{tpu_custom_call.1} parent=1 // pred_check_branch
      %41 = sbr.rel (0) target = $region45
    $region44: #{tpu_custom_call.1} parent=1 // pred_region
      _
    $region45: #{tpu_custom_call.1} parent=1 // pred_fallthru
      _
    // Predicated region
    $region46: #{tpu_custom_call.1} parent=1 // pred_check
      _
    $region47: #{tpu_custom_call.1} parent=1 // pred_check_branch
      %43 = sbr.rel (0) target = $region49
    $region48: #{tpu_custom_call.1} parent=1 // pred_region
      _
    $region49: #{tpu_custom_call.1} parent=1 // pred_fallthru
      _
    // Predicated region
    $region50: #{tpu_custom_call.1} parent=1 // pred_check
      _
    $region51: #{tpu_custom_call.1} parent=1 // pred_check_branch
      %45 = sbr.rel (0) target = $region53
    $region52: #{tpu_custom_call.1} parent=1 // pred_region
      _
    $region53: #{tpu_custom_call.1} parent=1 // pred_fallthru
      _
    // Predicated region
    $region54: #{tpu_custom_call.1} parent=1 // pred_check
      _
    $region55: #{tpu_custom_call.1} parent=1 // pred_check_branch
      %47 = sbr.rel (0) target = $region57
    $region56: #{tpu_custom_call.1} parent=1 // pred_region
      _
    $region57: #{tpu_custom_call.1} parent=1 // pred_fallthru
      _
    %v48 = vld [vmem:[%s1] sm:$0x3]
    %v49 = vld [vmem:[%s0] sm:$0xff]
    %v50 = vld [vmem:[%s0 + $0x8] sm:$0xff]
    %v51 = vld [vmem:[%s2] sm:$0xff]
    %v52 = vld [vmem:[%s2 + $0x8] sm:$0xff]
    %v53 = vld [vmem:[%s3] sm:$0xff]
    %v54 = vld [vmem:[%s3 + $0x8] sm:$0xff]
    %56 = vset.pattern.permute.xlu0 0
    %57 = vperm.xlu0 %56, %v51
    %v58 = vpop.permute.xlu0 %57
    %61 = vset.pattern.permute.xlu0 0
    %62 = vperm.xlu0 %61, %v52
    %v63 = vpop.permute.xlu0 %62
    %v65 = vmul.f32 %v58, %v49
    %v66 = vmul.f32 %v63, %v50
    %v67 = vand.u32 2147483647, %v65
    %vm68 = vcmp.le.f32.partialorder %v67, 0.7853982
    %vm69 = vcmp.lt.s32.totalorder %v65, 0
    %v70 = vand.u32 %v65, 2139095040
    %v71 = vshrl.u32 %v70, 23
    %v72 = vsub.s32 %v71, 127
    %v73 = vand.u32 2147483647, %v65
    %v74 = vand.u32 %v73, 8388607
    %v75 = vor.u32 %v74, 8388608
    %v76 = vsub.s32 0, %v75
    %v77 = vadd.s32 %v72, 1
    %vm78 = vcmp.gt.s32.totalorder %v77, 0
    %v79 = vsel %vm78, %v77, 0
    %v80 = vshrl.u32 %v79, 5
    %v81 = vand.u32 %v79, 31
    %v82 = vsub.s32 32, %v81
    %v83 = vshrl.u32 683565275, %v82
    %v84 = vshll.u32 683565275, %v81
    %v85 = vshrl.u32 2475754826, %v82
    %v86 = vor.u32 %v84, %v85
    %v87 = vshll.u32 2475754826, %v81
    %v88 = vshrl.u32 2131351028, %v82
    %v89 = vor.u32 %v87, %v88
    %v90 = vshll.u32 2131351028, %v81
    %v91 = vshrl.u32 2102212464, %v82
    %v92 = vor.u32 %v90, %v91
    %v93 = vshll.u32 2102212464, %v81
    %v94 = vshrl.u32 920167782, %v82
    %v95 = vor.u32 %v93, %v94
    %v96 = vshll.u32 920167782, %v81
    %v97 = vshrl.u32 1326507024, %v82
    %v98 = vor.u32 %v96, %v97
    %vm99 = vcmp.lt.s32.totalorder %v80, 1
    %vm100 = vcmp.lt.s32.totalorder %v80, 2
    %vm101 = vcmp.lt.s32.totalorder %v80, 3
    %vm102 = vcmp.lt.s32.totalorder %v80, 4
    %v103 = vsel %vm99, %v83, %v86
    %v104 = vsel %vm102, %v92, 2102212464
    %v105 = vsel %vm101, %v89, %v104
    %v106 = vsel %vm100, %v103, %v105
    %v107 = vsel %vm99, %v86, %v89
    %v108 = vsel %vm102, %v95, 920167782
    %v109 = vsel %vm101, %v92, %v108
    %v110 = vsel %vm100, %v107, %v109
    %v111 = vsel %vm99, %v89, %v92
    %v112 = vsel %vm102, %v98, 1326507024
    %v113 = vsel %vm101, %v95, %v112
    %v114 = vsel %vm100, %v111, %v113
    %v115 = vshll.u32 %v75, 8
    %v116 = vmul.u32.u64.compose %v115, %v114
    %v117 = vextract.low.u32 %v116
    %v118 = vextract.high.u32 %v116
    %v119 = vmul.u32.u64.compose %v115, %v110
    %v120 = vextract.low.u32 %v119
    %v121 = vextract.high.u32 %v119
    %v122 = vmul.u32 %v115, %v106
    %v123 = vadd.s32 %v118, %v120
    %vm124 = vc.u32 %v118, %v120
    %v125 = vadd.s32 %v121, 1
    %v126 = vsel %vm124, %v125, %v121
    %v127 = vadd.s32 %v122, %v126
    %v128 = vadd.s32 %v127, 536870912
    %v129 = vshrl.u32 %v128, 30
    %v130 = vshll.u32 %v129, 30
    %v131 = vsub.s32 %v127, %v130
    %vm132 = vcmp.lt.s32.totalorder %v131, 0
    %v133 = vsub.s32 0, %v131
    %v134 = vsel %vm132, %v133, %v131
    %v135 = vclz %v134
    %v136 = vsub.s32 %v135, 2
    %vm137 = vcmp.gt.s32.totalorder 0, %v136
    %v138 = vsel %vm137, 0, %v136
    %v139 = vsub.s32 32, %v138
    %v140 = vshll.u32 %v131, %v138
    %v141 = vshrl.u32 %v123, %v139
    %v142 = vor.u32 %v140, %v141
    %v143 = vsub.s32 4294967266, %v138
    %v144 = vadd.s32 %v143, 127
    %v145 = vshll.u32 %v144, 23
    %v146 = vor.u32 4788187, %v145
    %v147 = vand.u32 2147483647, %v146
    %v149 = vcvt.s32.f32 %v142
    %v150 = vmul.f32 %v149, %v147
    %v151 = vxor.u32 %v150, 2147483648
    %v152 = vsel %vm69, %v151, %v150
    %v153 = vsub.s32 4, %v129
    %v154 = vsel %vm69, %v153, %v129
    %v155 = vsel %vm68, %v65, %v152
    %v156 = vsel %vm68, 0, %v154
    %v157 = vcosq.f32.pop %v155
    %v158 = vsinq.f32.pop %v155
    %vm159 = vweird.f32 %v65
    %v160 = vadd.s32 %v156, 3
    %v161 = vand.u32 %v160, 3
    %vm162 = vcmp.lt.s32.totalorder %v161, 2
    %vm163 = vcmp.eq.s32.totalorder %v161, 0
    %v164 = vxor.u32 %v158, 2147483648
    %v165 = vsel %vm163, %v157, %v164
    %vm166 = vcmp.eq.s32.totalorder %v161, 2
    %v167 = vxor.u32 %v157, 2147483648
    %v168 = vsel %vm166, %v167, %v158
    %v169 = vsel %vm162, %v165, %v168
    %v170 = vsel %vm159, nan, %v169
    %v171 = vand.u32 2147483647, %v66
    %vm172 = vcmp.le.f32.partialorder %v171, 0.7853982
    %vm173 = vcmp.lt.s32.totalorder %v66, 0
    %v174 = vand.u32 %v66, 2139095040
    %v175 = vshrl.u32 %v174, 23
    %v176 = vsub.s32 %v175, 127
    %v177 = vand.u32 2147483647, %v66
    %v178 = vand.u32 %v177, 8388607
    %v179 = vor.u32 %v178, 8388608
    %v180 = vsub.s32 0, %v179
    %v181 = vadd.s32 %v176, 1
    %vm182 = vcmp.gt.s32.totalorder %v181, 0
    %v183 = vsel %vm182, %v181, 0
    %v184 = vshrl.u32 %v183, 5
    %v185 = vand.u32 %v183, 31
    %v186 = vsub.s32 32, %v185
    %v187 = vshrl.u32 683565275, %v186
    %v188 = vshll.u32 683565275, %v185
    %v189 = vshrl.u32 2475754826, %v186
    %v190 = vor.u32 %v188, %v189
    %v191 = vshll.u32 2475754826, %v185
    %v192 = vshrl.u32 2131351028, %v186
    %v193 = vor.u32 %v191, %v192
    %v194 = vshll.u32 2131351028, %v185
    %v195 = vshrl.u32 2102212464, %v186
    %v196 = vor.u32 %v194, %v195
    %v197 = vshll.u32 2102212464, %v185
    %v198 = vshrl.u32 920167782, %v186
    %v199 = vor.u32 %v197, %v198
    %v200 = vshll.u32 920167782, %v185
    %v201 = vshrl.u32 1326507024, %v186
    %v202 = vor.u32 %v200, %v201
    %vm203 = vcmp.lt.s32.totalorder %v184, 1
    %vm204 = vcmp.lt.s32.totalorder %v184, 2
    %vm205 = vcmp.lt.s32.totalorder %v184, 3
    %vm206 = vcmp.lt.s32.totalorder %v184, 4
    %v207 = vsel %vm203, %v187, %v190
    %v208 = vsel %vm206, %v196, 2102212464
    %v209 = vsel %vm205, %v193, %v208
    %v210 = vsel %vm204, %v207, %v209
    %v211 = vsel %vm203, %v190, %v193
    %v212 = vsel %vm206, %v199, 920167782
    %v213 = vsel %vm205, %v196, %v212
    %v214 = vsel %vm204, %v211, %v213
    %v215 = vsel %vm203, %v193, %v196
    %v216 = vsel %vm206, %v202, 1326507024
    %v217 = vsel %vm205, %v199, %v216
    %v218 = vsel %vm204, %v215, %v217
    %v219 = vshll.u32 %v179, 8
    %v220 = vmul.u32.u64.compose %v219, %v218
    %v221 = vextract.low.u32 %v220
    %v222 = vextract.high.u32 %v220
    %v223 = vmul.u32.u64.compose %v219, %v214
    %v224 = vextract.low.u32 %v223
    %v225 = vextract.high.u32 %v223
    %v226 = vmul.u32 %v219, %v210
    %v227 = vadd.s32 %v222, %v224
    %vm228 = vc.u32 %v222, %v224
    %v229 = vadd.s32 %v225, 1
    %v230 = vsel %vm228, %v229, %v225
    %v231 = vadd.s32 %v226, %v230
    %v232 = vadd.s32 %v231, 536870912
    %v233 = vshrl.u32 %v232, 30
    %v234 = vshll.u32 %v233, 30
    %v235 = vsub.s32 %v231, %v234
    %vm236 = vcmp.lt.s32.totalorder %v235, 0
    %v237 = vsub.s32 0, %v235
    %v238 = vsel %vm236, %v237, %v235
    %v239 = vclz %v238
    %v240 = vsub.s32 %v239, 2
    %vm241 = vcmp.gt.s32.totalorder 0, %v240
    %v242 = vsel %vm241, 0, %v240
    %v243 = vsub.s32 32, %v242
    %v244 = vshll.u32 %v235, %v242
    %v245 = vshrl.u32 %v227, %v243
    %v246 = vor.u32 %v244, %v245
    %v247 = vsub.s32 4294967266, %v242
    %v248 = vadd.s32 %v247, 127
    %v249 = vshll.u32 %v248, 23
    %v250 = vor.u32 4788187, %v249
    %v251 = vand.u32 2147483647, %v250
    %v253 = vcvt.s32.f32 %v246
    %v254 = vmul.f32 %v253, %v251
    %v255 = vxor.u32 %v254, 2147483648
    %v256 = vsel %vm173, %v255, %v254
    %v257 = vsub.s32 4, %v233
    %v258 = vsel %vm173, %v257, %v233
    %v259 = vsel %vm172, %v66, %v256
    %v260 = vsel %vm172, 0, %v258
    %v261 = vcosq.f32.pop %v259
    %v262 = vsinq.f32.pop %v259
    %vm263 = vweird.f32 %v66
    %v264 = vadd.s32 %v260, 3
    %v265 = vand.u32 %v264, 3
    %vm266 = vcmp.lt.s32.totalorder %v265, 2
    %vm267 = vcmp.eq.s32.totalorder %v265, 0
    %v268 = vxor.u32 %v262, 2147483648
    %v269 = vsel %vm267, %v261, %v268
    %vm270 = vcmp.eq.s32.totalorder %v265, 2
    %v271 = vxor.u32 %v261, 2147483648
    %v272 = vsel %vm270, %v271, %v262
    %v273 = vsel %vm266, %v269, %v272
    %v274 = vsel %vm263, nan, %v273
    %v275 = vmul.f32 %v170, %v170
    %v276 = vmul.f32 %v274, %v274
    %278 = vset.pattern.permute.xlu0 0
    %279 = vperm.xlu0 %278, %v53
    %v280 = vpop.permute.xlu0 %279
    %283 = vset.pattern.permute.xlu0 0
    %284 = vperm.xlu0 %283, %v54
    %v285 = vpop.permute.xlu0 %284
    %v287 = vmul.f32 %v280, %v275
    %v288 = vmul.f32 %v285, %v276
    %v289 = vadd.f32 %v49, %v287
    %v290 = vadd.f32 %v50, %v288
    %v291 = vlaneseq
    %v292 = vshrl.u32 %v291, 7
    %v293 = vadd.s32 %v292, 8
    %v294 = vadd.s32 %v292, 16
    %v295 = vadd.s32 %v292, 24
    %v296 = vadd.s32 %v292, 32
    %v297 = vadd.s32 %v292, 40
    %v298 = vadd.s32 %v292, 48
    %v299 = vadd.s32 %v292, 56
    %v300 = vadd.s32 %v292, 64
    %v301 = vadd.s32 %v292, 72
    %v302 = vadd.s32 %v292, 80
    %v303 = vadd.s32 %v292, 88
    %v304 = vadd.s32 %v292, 96
    %v305 = vadd.s32 %v292, 104
    %v306 = vadd.s32 %v292, 112
    %v307 = vadd.s32 %v292, 120
    %v308 = vlaneseq
    %v309 = vand.u32 %v308, 127
    %v310 = vadd.s32 %v309, 128
    %v311 = vmul.u32 %v292, 2
    %v312 = vmul.u32 %v293, 2
    %v313 = vmul.u32 %v294, 2
    %v314 = vmul.u32 %v295, 2
    %v315 = vmul.u32 %v296, 2
    %v316 = vmul.u32 %v297, 2
    %v317 = vmul.u32 %v298, 2
    %v318 = vmul.u32 %v299, 2
    %v319 = vmul.u32 %v300, 2
    %v320 = vmul.u32 %v301, 2
    %v321 = vmul.u32 %v302, 2
    %v322 = vmul.u32 %v303, 2
    %v323 = vmul.u32 %v304, 2
    %v324 = vmul.u32 %v305, 2
    %v325 = vmul.u32 %v306, 2
    %v326 = vmul.u32 %v307, 2
    %vm327 = vcmp.eq.s32.totalorder %v309, %v311
    %vm328 = vcmp.eq.s32.totalorder %v310, %v311
    %vm329 = vcmp.eq.s32.totalorder %v309, %v312
    %vm330 = vcmp.eq.s32.totalorder %v310, %v312
    %vm331 = vcmp.eq.s32.totalorder %v309, %v313
    %vm332 = vcmp.eq.s32.totalorder %v310, %v313
    %vm333 = vcmp.eq.s32.totalorder %v309, %v314
    %vm334 = vcmp.eq.s32.totalorder %v310, %v314
    %vm335 = vcmp.eq.s32.totalorder %v309, %v315
    %vm336 = vcmp.eq.s32.totalorder %v310, %v315
    %vm337 = vcmp.eq.s32.totalorder %v309, %v316
    %vm338 = vcmp.eq.s32.totalorder %v310, %v316
    %vm339 = vcmp.eq.s32.totalorder %v309, %v317
    %vm340 = vcmp.eq.s32.totalorder %v310, %v317
    %vm341 = vcmp.eq.s32.totalorder %v309, %v318
    %vm342 = vcmp.eq.s32.totalorder %v310, %v318
    %vm343 = vcmp.eq.s32.totalorder %v309, %v319
    %vm344 = vcmp.eq.s32.totalorder %v310, %v319
    %vm345 = vcmp.eq.s32.totalorder %v309, %v320
    %vm346 = vcmp.eq.s32.totalorder %v310, %v320
    %vm347 = vcmp.eq.s32.totalorder %v309, %v321
    %vm348 = vcmp.eq.s32.totalorder %v310, %v321
    %vm349 = vcmp.eq.s32.totalorder %v309, %v322
    %vm350 = vcmp.eq.s32.totalorder %v310, %v322
    %vm351 = vcmp.eq.s32.totalorder %v309, %v323
    %vm352 = vcmp.eq.s32.totalorder %v310, %v323
    %vm353 = vcmp.eq.s32.totalorder %v309, %v324
    %vm354 = vcmp.eq.s32.totalorder %v310, %v324
    %vm355 = vcmp.eq.s32.totalorder %v309, %v325
    %vm356 = vcmp.eq.s32.totalorder %v310, %v325
    %vm357 = vcmp.eq.s32.totalorder %v309, %v326
    %vm358 = vcmp.eq.s32.totalorder %v310, %v326
    %v359 = vsel %vm327, 1, 0
    %v360 = vsel %vm328, 1, 0
    %v361 = vsel %vm329, 1, 0
    %v362 = vsel %vm330, 1, 0
    %v363 = vsel %vm331, 1, 0
    %v364 = vsel %vm332, 1, 0
    %v365 = vsel %vm333, 1, 0
    %v366 = vsel %vm334, 1, 0
    %v367 = vsel %vm335, 1, 0
    %v368 = vsel %vm336, 1, 0
    %v369 = vsel %vm337, 1, 0
    %v370 = vsel %vm338, 1, 0
    %v371 = vsel %vm339, 1, 0
    %v372 = vsel %vm340, 1, 0
    %v373 = vsel %vm341, 1, 0
    %v374 = vsel %vm342, 1, 0
    %v375 = vsel %vm343, 1, 0
    %v376 = vsel %vm344, 1, 0
    %v377 = vsel %vm345, 1, 0
    %v378 = vsel %vm346, 1, 0
    %v379 = vsel %vm347, 1, 0
    %v380 = vsel %vm348, 1, 0
    %v381 = vsel %vm349, 1, 0
    %v382 = vsel %vm350, 1, 0
    %v383 = vsel %vm351, 1, 0
    %v384 = vsel %vm352, 1, 0
    %v385 = vsel %vm353, 1, 0
    %v386 = vsel %vm354, 1, 0
    %v387 = vsel %vm355, 1, 0
    %v388 = vsel %vm356, 1, 0
    %v389 = vsel %vm357, 1, 0
    %v390 = vsel %vm358, 1, 0
    %v391 = vcvt.s32.f32 %v359
    %v392 = vcvt.s32.f32 %v360
    %v393 = vcvt.s32.f32 %v361
    %v394 = vcvt.s32.f32 %v362
    %v395 = vcvt.s32.f32 %v363
    %v396 = vcvt.s32.f32 %v364
    %v397 = vcvt.s32.f32 %v365
    %v398 = vcvt.s32.f32 %v366
    %v399 = vcvt.s32.f32 %v367
    %v400 = vcvt.s32.f32 %v368
    %v401 = vcvt.s32.f32 %v369
    %v402 = vcvt.s32.f32 %v370
    %v403 = vcvt.s32.f32 %v371
    %v404 = vcvt.s32.f32 %v372
    %v405 = vcvt.s32.f32 %v373
    %v406 = vcvt.s32.f32 %v374
    %v407 = vcvt.s32.f32 %v375
    %v408 = vcvt.s32.f32 %v376
    %v409 = vcvt.s32.f32 %v377
    %v410 = vcvt.s32.f32 %v378
    %v411 = vcvt.s32.f32 %v379
    %v412 = vcvt.s32.f32 %v380
    %v413 = vcvt.s32.f32 %v381
    %v414 = vcvt.s32.f32 %v382
    %v415 = vcvt.s32.f32 %v383
    %v416 = vcvt.s32.f32 %v384
    %v417 = vcvt.s32.f32 %v385
    %v418 = vcvt.s32.f32 %v386
    %v419 = vcvt.s32.f32 %v387
    %v420 = vcvt.s32.f32 %v388
    %v421 = vcvt.s32.f32 %v389
    %v422 = vcvt.s32.f32 %v390
    %423 = vmatprep.subr.mxu0 %v422
    %424 = vmatpush1.msra.mxu0 %v421
    %425 = vmatprep.subr.mxu0 %v420
    %426 = vmatpush1.msra.mxu0 %v419
    %427 = vmatprep.subr.mxu0 %v418
    %428 = vmatpush1.msra.mxu0 %v417
    %429 = vmatprep.subr.mxu0 %v416
    %430 = vmatpush1.msra.mxu0 %v415
    %431 = vmatprep.subr.mxu0 %v414
    %432 = vmatpush1.msra.mxu0 %v413
    %433 = vmatprep.subr.mxu0 %v412
    %434 = vmatpush1.msra.mxu0 %v411
    %435 = vmatprep.subr.mxu0 %v410
    %436 = vmatpush1.msra.mxu0 %v409
    %437 = vmatprep.subr.mxu0 %v408
    %438 = vmatpush1.msra.mxu0 %v407
    %439 = vmatprep.subr.mxu0 %v406
    %440 = vmatpush1.msra.mxu0 %v405
    %441 = vmatprep.subr.mxu0 %v404
    %442 = vmatpush1.msra.mxu0 %v403
    %443 = vmatprep.subr.mxu0 %v402
    %444 = vmatpush1.msra.mxu0 %v401
    %445 = vmatprep.subr.mxu0 %v400
    %446 = vmatpush1.msra.mxu0 %v399
    %447 = vmatprep.subr.mxu0 %v398
    %448 = vmatpush1.msra.mxu0 %v397
    %449 = vmatprep.subr.mxu0 %v396
    %450 = vmatpush1.msra.mxu0 %v395
    %451 = vmatprep.subr.mxu0 %v394
    %452 = vmatpush1.msra.mxu0 %v393
    %453 = vmatprep.subr.mxu0 %v392
    %454 = vmatpush1.msra.mxu0 %v391
    %455 = vmatprep.subr.mxu0 0.0
    %456 = vmatpush2.msra.mxu0 0.0
    %457 = vmatprep.subr.mxu0 0.0
    %458 = vmatpush2.msra.mxu0 0.0
    %459 = vmatprep.subr.mxu0 0.0
    %460 = vmatpush2.msra.mxu0 0.0
    %461 = vmatprep.subr.mxu0 0.0
    %462 = vmatpush2.msra.mxu0 0.0
    %463 = vmatprep.subr.mxu0 0.0
    %464 = vmatpush2.msra.mxu0 0.0
    %465 = vmatprep.subr.mxu0 0.0
    %466 = vmatpush2.msra.mxu0 0.0
    %467 = vmatprep.subr.mxu0 0.0
    %468 = vmatpush2.msra.mxu0 0.0
    %469 = vmatprep.subr.mxu0 0.0
    %470 = vmatpush2.msra.mxu0 0.0
    %471 = vmatprep.subr.mxu0 0.0
    %472 = vmatpush2.msra.mxu0 0.0
    %473 = vmatprep.subr.mxu0 0.0
    %474 = vmatpush2.msra.mxu0 0.0
    %475 = vmatprep.subr.mxu0 0.0
    %476 = vmatpush2.msra.mxu0 0.0
    %477 = vmatprep.subr.mxu0 0.0
    %478 = vmatpush2.msra.mxu0 0.0
    %479 = vmatprep.subr.mxu0 0.0
    %480 = vmatpush2.msra.mxu0 0.0
    %481 = vmatprep.subr.mxu0 0.0
    %482 = vmatpush2.msra.mxu0 0.0
    %483 = vmatprep.subr.mxu0 0.0
    %484 = vmatpush2.msra.mxu0 0.0
    %485 = vmatprep.subr.mxu0 0.0
    %486 = vmatpush2.msra.mxu0 0.0
    %487 = vmatprep.mubr.f32.mxu0 0.0
    %488 = vmatmul.mubr.f32.gmra.mxu0 %v289
    %v489 = vpop.f32.mrf.mxu0
    %v490 = vadd.f32 0.0, %v489
    %v491 = vpop.f32.mrf.mxu0
    %v492 = vadd.f32 0.0, %v491
    %493 = vmatprep.mubr.f32.mxu0 0.0
    %494 = vmatmul.mubr.f32.gmra.mxu0 %v290
    %v495 = vpop.f32.mrf.mxu0
    %v496 = vadd.f32 0.0, %v495
    %v497 = vpop.f32.mrf.mxu0
    %v498 = vadd.f32 0.0, %v497
    %499 = vdwg.mxu0
    %504 = vrot.lane.b32.xlu0 %v490, 2
    %v505 = vpop.permute.xlu0 %504
    %506 = vrot.lane.b32.xlu0 %v492, 2
    %v507 = vpop.permute.xlu0 %506
    %508 = vrot.lane.b32.xlu0 %v496, 2
    %v509 = vpop.permute.xlu0 %508
    %510 = vrot.lane.b32.xlu0 %v498, 2
    %v511 = vpop.permute.xlu0 %510
    %vm512 = vcmask 15360
    %v513 = vsel %vm512, %v505, %v507
    %v514 = vsel %vm512, %v509, %v511
    %v519 = vsel %vm512, 0.0, %v505
    %v520 = vsel %vm512, 0.0, %v509
    %v521 = vsel %vm512, %v507, 0.0
    %v522 = vsel %vm512, %v511, 0.0
    %527 = vrot.lane.b32.xlu0 %v519, 1
    %v528 = vpop.permute.xlu0 %527
    %529 = vrot.lane.b32.xlu0 %v513, 1
    %v530 = vpop.permute.xlu0 %529
    %531 = vrot.lane.b32.xlu0 %v521, 1
    %v532 = vpop.permute.xlu0 %531
    %533 = vrot.lane.b32.xlu0 %v520, 1
    %v534 = vpop.permute.xlu0 %533
    %535 = vrot.lane.b32.xlu0 %v514, 1
    %v536 = vpop.permute.xlu0 %535
    %537 = vrot.lane.b32.xlu0 %v522, 1
    %v538 = vpop.permute.xlu0 %537
    %vm539 = vcmask 7168
    %v540 = vsel %vm539, %v528, %v530
    %v541 = vsel %vm539, %v530, %v532
    %v542 = vsel %vm539, %v534, %v536
    %v543 = vsel %vm539, %v536, %v538
    %544 = vrot.lane.b32.xlu0 %v519, 2
    %v545 = vpop.permute.xlu0 %544
    %546 = vrot.lane.b32.xlu0 %v513, 2
    %v547 = vpop.permute.xlu0 %546
    %548 = vrot.lane.b32.xlu0 %v521, 2
    %v549 = vpop.permute.xlu0 %548
    %550 = vrot.lane.b32.xlu0 %v520, 2
    %v551 = vpop.permute.xlu0 %550
    %552 = vrot.lane.b32.xlu0 %v514, 2
    %v553 = vpop.permute.xlu0 %552
    %554 = vrot.lane.b32.xlu0 %v522, 2
    %v555 = vpop.permute.xlu0 %554
    %v556 = vsel %vm512, %v545, %v547
    %v557 = vsel %vm512, %v547, %v549
    %v558 = vsel %vm512, %v551, %v553
    %v559 = vsel %vm512, %v553, %v555
    %560 = vrot.lane.b32.xlu0 %v519, 3
    %v561 = vpop.permute.xlu0 %560
    %562 = vrot.lane.b32.xlu0 %v513, 3
    %v563 = vpop.permute.xlu0 %562
    %564 = vrot.lane.b32.xlu0 %v520, 3
    %v565 = vpop.permute.xlu0 %564
    %566 = vrot.lane.b32.xlu0 %v514, 3
    %v567 = vpop.permute.xlu0 %566
    %vm568 = vcmask 23552
    %v569 = vsel %vm568, %v561, %v563
    %v570 = vsel %vm568, %v565, %v567
    %v571 = vld [vmem:[%s4] sm:$0xff]
    %v572 = vld [vmem:[%s5] sm:$0xff]
    %574 = vset.pattern.permute.xlu0 0
    %575 = vperm.xlu0 %574, %v572
    %v576 = vpop.permute.xlu0 %575
    %578 = vrot.lane.b32.xlu0 %v519, 125
    %v579 = vpop.permute.xlu0 %578
    %580 = vrot.lane.b32.xlu0 %v513, 125
    %v581 = vpop.permute.xlu0 %580
    %582 = vrot.lane.b32.xlu0 %v521, 125
    %v583 = vpop.permute.xlu0 %582
    %584 = vrot.lane.b32.xlu0 %v520, 125
    %v585 = vpop.permute.xlu0 %584
    %586 = vrot.lane.b32.xlu0 %v514, 125
    %v587 = vpop.permute.xlu0 %586
    %588 = vrot.lane.b32.xlu0 %v522, 125
    %v589 = vpop.permute.xlu0 %588
    %590 = vrot.lane.b32.xlu0 %v528, 125
    %v591 = vpop.permute.xlu0 %590
    %592 = vrot.lane.b32.xlu0 %v540, 125
    %v593 = vpop.permute.xlu0 %592
    %594 = vrot.lane.b32.xlu0 %v541, 125
    %v595 = vpop.permute.xlu0 %594
    %596 = vrot.lane.b32.xlu0 %v534, 125
    %v597 = vpop.permute.xlu0 %596
    %598 = vrot.lane.b32.xlu0 %v542, 125
    %v599 = vpop.permute.xlu0 %598
    %600 = vrot.lane.b32.xlu0 %v543, 125
    %v601 = vpop.permute.xlu0 %600
    %602 = vrot.lane.b32.xlu0 %v545, 125
    %v603 = vpop.permute.xlu0 %602
    %604 = vrot.lane.b32.xlu0 %v556, 125
    %v605 = vpop.permute.xlu0 %604
    %606 = vrot.lane.b32.xlu0 %v557, 125
    %v607 = vpop.permute.xlu0 %606
    %608 = vrot.lane.b32.xlu0 %v551, 125
    %v609 = vpop.permute.xlu0 %608
    %610 = vrot.lane.b32.xlu0 %v558, 125
    %v611 = vpop.permute.xlu0 %610
    %612 = vrot.lane.b32.xlu0 %v559, 125
    %v613 = vpop.permute.xlu0 %612
    %614 = vrot.lane.b32.xlu0 %v561, 125
    %v615 = vpop.permute.xlu0 %614
    %616 = vrot.lane.b32.xlu0 %v569, 125
    %v617 = vpop.permute.xlu0 %616
    %618 = vrot.lane.b32.xlu0 %v563, 125
    %v619 = vpop.permute.xlu0 %618
    %620 = vrot.lane.b32.xlu0 %v565, 125
    %v621 = vpop.permute.xlu0 %620
    %622 = vrot.lane.b32.xlu0 %v570, 125
    %v623 = vpop.permute.xlu0 %622
    %624 = vrot.lane.b32.xlu0 %v567, 125
    %v625 = vpop.permute.xlu0 %624
    %vm626 = vcmask 1022976
    %v627 = vsel %vm626, %v579, %v581
    %v628 = vsel %vm626, %v581, %v583
    %v629 = vsel %vm626, %v585, %v587
    %v630 = vsel %vm626, %v587, %v589
    %v631 = vsel %vm626, %v591, %v593
    %v632 = vsel %vm626, %v593, %v595
    %v633 = vsel %vm626, %v597, %v599
    %v634 = vsel %vm626, %v599, %v601
    %v635 = vsel %vm626, %v603, %v605
    %v636 = vsel %vm626, %v605, %v607
    %v637 = vsel %vm626, %v609, %v611
    %v638 = vsel %vm626, %v611, %v613
    %v639 = vsel %vm626, %v615, %v617
    %v640 = vsel %vm626, %v617, %v619
    %v641 = vsel %vm626, %v621, %v623
    %v642 = vsel %vm626, %v623, %v625
    %vm659 = vcmask 523264
    %v661 = vsel %vm659, %v571, 0
    %663 = vmatprep.subr.mxu0 0.0
    %664 = vmatpush1.msra.mxu0 0.0
    %665 = vmatprep.subr.mxu0 0.0
    %666 = vmatpush1.msra.mxu0 0.0
    %667 = vmatprep.subr.mxu0 0.0
    %668 = vmatpush1.msra.mxu0 0.0
    %669 = vmatprep.subr.mxu0 0.0
    %670 = vmatpush1.msra.mxu0 0.0
    %671 = vmatprep.subr.mxu0 0.0
    %672 = vmatpush1.msra.mxu0 0.0
    %673 = vmatprep.subr.mxu0 0.0
    %674 = vmatpush1.msra.mxu0 0.0
    %675 = vmatprep.subr.mxu0 0.0
    %676 = vmatpush1.msra.mxu0 0.0
    %677 = vmatprep.subr.mxu0 0.0
    %678 = vmatpush1.msra.mxu0 0.0
    %679 = vmatprep.subr.mxu0 %v642
    %680 = vmatpush1.msra.mxu0 %v641
    %681 = vmatprep.subr.mxu0 %v640
    %682 = vmatpush1.msra.mxu0 %v639
    %683 = vmatprep.subr.mxu0 %v638
    %684 = vmatpush1.msra.mxu0 %v637
    %685 = vmatprep.subr.mxu0 %v636
    %686 = vmatpush1.msra.mxu0 %v635
    %687 = vmatprep.subr.mxu0 %v634
    %688 = vmatpush1.msra.mxu0 %v633
    %689 = vmatprep.subr.mxu0 %v632
    %690 = vmatpush1.msra.mxu0 %v631
    %691 = vmatprep.subr.mxu0 %v630
    %692 = vmatpush1.msra.mxu0 %v629
    %693 = vmatprep.subr.mxu0 %v628
    %694 = vmatpush1.msra.mxu0 %v627
    %695 = vmatprep.subr.mxu0 0.0
    %696 = vmatpush2.msra.mxu0 0.0
    %697 = vmatprep.subr.mxu0 0.0
    %698 = vmatpush2.msra.mxu0 0.0
    %699 = vmatprep.subr.mxu0 0.0
    %700 = vmatpush2.msra.mxu0 0.0
    %701 = vmatprep.subr.mxu0 0.0
    %702 = vmatpush2.msra.mxu0 0.0
    %703 = vmatprep.subr.mxu0 0.0
    %704 = vmatpush2.msra.mxu0 0.0
    %705 = vmatprep.subr.mxu0 0.0
    %706 = vmatpush2.msra.mxu0 0.0
    %707 = vmatprep.subr.mxu0 0.0
    %708 = vmatpush2.msra.mxu0 0.0
    %709 = vmatprep.subr.mxu0 0.0
    %710 = vmatpush2.msra.mxu0 0.0
    %711 = vmatprep.subr.mxu0 0.0
    %712 = vmatpush2.msra.mxu0 0.0
    %713 = vmatprep.subr.mxu0 0.0
    %714 = vmatpush2.msra.mxu0 0.0
    %715 = vmatprep.subr.mxu0 0.0
    %716 = vmatpush2.msra.mxu0 0.0
    %717 = vmatprep.subr.mxu0 0.0
    %718 = vmatpush2.msra.mxu0 0.0
    %719 = vmatprep.subr.mxu0 0.0
    %720 = vmatpush2.msra.mxu0 0.0
    %721 = vmatprep.subr.mxu0 0.0
    %722 = vmatpush2.msra.mxu0 0.0
    %723 = vmatprep.subr.mxu0 0.0
    %724 = vmatpush2.msra.mxu0 0.0
    %725 = vmatprep.subr.mxu0 0.0
    %726 = vmatpush2.msra.mxu0 0.0
    %727 = vmatprep.mubr.f32.mxu0 0.0
    %728 = vmatmul.mubr.f32.gmra.mxu0 %v661
    %v729 = vpop.f32.mrf.mxu0
    %v730 = vadd.f32 %v576, %v729
    %v731 = vpop.f32.mrf.mxu0
    %v732 = vadd.f32 %v576, %v731
    %733 = vdwg.mxu0
    %v735 = vlaneseq
    %v736 = vshrl.u32 %v735, 7
    %v737 = vsub.s32 0, %v736
    %v738 = vrot.slane %v48, %v737
    %v739 = vlaneseq
    %v740 = vshrl.u32 %v739, 7
    %v741 = vsub.s32 1, %v740
    %v742 = vrot.slane %v48, %v741
    %v745 = vmul.f32 %v730, %v738
    %v746 = vmul.f32 %v732, %v742
    %v747 = vld [vmem:[%s6] sm:$0xff]
    %v748 = vld [vmem:[%s7] sm:$0xff]
    %750 = vset.pattern.permute.xlu0 0
    %751 = vperm.xlu0 %750, %v747
    %v752 = vpop.permute.xlu0 %751
    %v754 = vmul.f32 %v752, %v745
    %v755 = vmul.f32 %v752, %v746
    %v756 = vand.u32 2147483647, %v754
    %vm757 = vcmp.le.f32.partialorder %v756, 0.7853982
    %vm758 = vcmp.lt.s32.totalorder %v754, 0
    %v759 = vand.u32 %v754, 2139095040
    %v760 = vshrl.u32 %v759, 23
    %v761 = vsub.s32 %v760, 127
    %v762 = vand.u32 2147483647, %v754
    %v763 = vand.u32 %v762, 8388607
    %v764 = vor.u32 %v763, 8388608
    %v765 = vsub.s32 0, %v764
    %v766 = vadd.s32 %v761, 1
    %vm767 = vcmp.gt.s32.totalorder %v766, 0
    %v768 = vsel %vm767, %v766, 0
    %v769 = vshrl.u32 %v768, 5
    %v770 = vand.u32 %v768, 31
    %v771 = vsub.s32 32, %v770
    %v772 = vshrl.u32 683565275, %v771
    %v773 = vshll.u32 683565275, %v770
    %v774 = vshrl.u32 2475754826, %v771
    %v775 = vor.u32 %v773, %v774
    %v776 = vshll.u32 2475754826, %v770
    %v777 = vshrl.u32 2131351028, %v771
    %v778 = vor.u32 %v776, %v777
    %v779 = vshll.u32 2131351028, %v770
    %v780 = vshrl.u32 2102212464, %v771
    %v781 = vor.u32 %v779, %v780
    %v782 = vshll.u32 2102212464, %v770
    %v783 = vshrl.u32 920167782, %v771
    %v784 = vor.u32 %v782, %v783
    %v785 = vshll.u32 920167782, %v770
    %v786 = vshrl.u32 1326507024, %v771
    %v787 = vor.u32 %v785, %v786
    %vm788 = vcmp.lt.s32.totalorder %v769, 1
    %vm789 = vcmp.lt.s32.totalorder %v769, 2
    %vm790 = vcmp.lt.s32.totalorder %v769, 3
    %vm791 = vcmp.lt.s32.totalorder %v769, 4
    %v792 = vsel %vm788, %v772, %v775
    %v793 = vsel %vm791, %v781, 2102212464
    %v794 = vsel %vm790, %v778, %v793
    %v795 = vsel %vm789, %v792, %v794
    %v796 = vsel %vm788, %v775, %v778
    %v797 = vsel %vm791, %v784, 920167782
    %v798 = vsel %vm790, %v781, %v797
    %v799 = vsel %vm789, %v796, %v798
    %v800 = vsel %vm788, %v778, %v781
    %v801 = vsel %vm791, %v787, 1326507024
    %v802 = vsel %vm790, %v784, %v801
    %v803 = vsel %vm789, %v800, %v802
    %v804 = vshll.u32 %v764, 8
    %v805 = vmul.u32.u64.compose %v804, %v803
    %v806 = vextract.low.u32 %v805
    %v807 = vextract.high.u32 %v805
    %v808 = vmul.u32.u64.compose %v804, %v799
    %v809 = vextract.low.u32 %v808
    %v810 = vextract.high.u32 %v808
    %v811 = vmul.u32 %v804, %v795
    %v812 = vadd.s32 %v807, %v809
    %vm813 = vc.u32 %v807, %v809
    %v814 = vadd.s32 %v810, 1
    %v815 = vsel %vm813, %v814, %v810
    %v816 = vadd.s32 %v811, %v815
    %v817 = vadd.s32 %v816, 536870912
    %v818 = vshrl.u32 %v817, 30
    %v819 = vshll.u32 %v818, 30
    %v820 = vsub.s32 %v816, %v819
    %vm821 = vcmp.lt.s32.totalorder %v820, 0
    %v822 = vsub.s32 0, %v820
    %v823 = vsel %vm821, %v822, %v820
    %v824 = vclz %v823
    %v825 = vsub.s32 %v824, 2
    %vm826 = vcmp.gt.s32.totalorder 0, %v825
    %v827 = vsel %vm826, 0, %v825
    %v828 = vsub.s32 32, %v827
    %v829 = vshll.u32 %v820, %v827
    %v830 = vshrl.u32 %v812, %v828
    %v831 = vor.u32 %v829, %v830
    %v832 = vsub.s32 4294967266, %v827
    %v833 = vadd.s32 %v832, 127
    %v834 = vshll.u32 %v833, 23
    %v835 = vor.u32 4788187, %v834
    %v836 = vand.u32 2147483647, %v835
    %v838 = vcvt.s32.f32 %v831
    %v839 = vmul.f32 %v838, %v836
    %v840 = vxor.u32 %v839, 2147483648
    %v841 = vsel %vm758, %v840, %v839
    %v842 = vsub.s32 4, %v818
    %v843 = vsel %vm758, %v842, %v818
    %v844 = vsel %vm757, %v754, %v841
    %v845 = vsel %vm757, 0, %v843
    %v846 = vcosq.f32.pop %v844
    %v847 = vsinq.f32.pop %v844
    %vm848 = vweird.f32 %v754
    %v849 = vadd.s32 %v845, 3
    %v850 = vand.u32 %v849, 3
    %vm851 = vcmp.lt.s32.totalorder %v850, 2
    %vm852 = vcmp.eq.s32.totalorder %v850, 0
    %v853 = vxor.u32 %v847, 2147483648
    %v854 = vsel %vm852, %v846, %v853
    %vm855 = vcmp.eq.s32.totalorder %v850, 2
    %v856 = vxor.u32 %v846, 2147483648
    %v857 = vsel %vm855, %v856, %v847
    %v858 = vsel %vm851, %v854, %v857
    %v859 = vsel %vm848, nan, %v858
    %v860 = vand.u32 2147483647, %v755
    %vm861 = vcmp.le.f32.partialorder %v860, 0.7853982
    %vm862 = vcmp.lt.s32.totalorder %v755, 0
    %v863 = vand.u32 %v755, 2139095040
    %v864 = vshrl.u32 %v863, 23
    %v865 = vsub.s32 %v864, 127
    %v866 = vand.u32 2147483647, %v755
    %v867 = vand.u32 %v866, 8388607
    %v868 = vor.u32 %v867, 8388608
    %v869 = vsub.s32 0, %v868
    %v870 = vadd.s32 %v865, 1
    %vm871 = vcmp.gt.s32.totalorder %v870, 0
    %v872 = vsel %vm871, %v870, 0
    %v873 = vshrl.u32 %v872, 5
    %v874 = vand.u32 %v872, 31
    %v875 = vsub.s32 32, %v874
    %v876 = vshrl.u32 683565275, %v875
    %v877 = vshll.u32 683565275, %v874
    %v878 = vshrl.u32 2475754826, %v875
    %v879 = vor.u32 %v877, %v878
    %v880 = vshll.u32 2475754826, %v874
    %v881 = vshrl.u32 2131351028, %v875
    %v882 = vor.u32 %v880, %v881
    %v883 = vshll.u32 2131351028, %v874
    %v884 = vshrl.u32 2102212464, %v875
    %v885 = vor.u32 %v883, %v884
    %v886 = vshll.u32 2102212464, %v874
    %v887 = vshrl.u32 920167782, %v875
    %v888 = vor.u32 %v886, %v887
    %v889 = vshll.u32 920167782, %v874
    %v890 = vshrl.u32 1326507024, %v875
    %v891 = vor.u32 %v889, %v890
    %vm892 = vcmp.lt.s32.totalorder %v873, 1
    %vm893 = vcmp.lt.s32.totalorder %v873, 2
    %vm894 = vcmp.lt.s32.totalorder %v873, 3
    %vm895 = vcmp.lt.s32.totalorder %v873, 4
    %v896 = vsel %vm892, %v876, %v879
    %v897 = vsel %vm895, %v885, 2102212464
    %v898 = vsel %vm894, %v882, %v897
    %v899 = vsel %vm893, %v896, %v898
    %v900 = vsel %vm892, %v879, %v882
    %v901 = vsel %vm895, %v888, 920167782
    %v902 = vsel %vm894, %v885, %v901
    %v903 = vsel %vm893, %v900, %v902
    %v904 = vsel %vm892, %v882, %v885
    %v905 = vsel %vm895, %v891, 1326507024
    %v906 = vsel %vm894, %v888, %v905
    %v907 = vsel %vm893, %v904, %v906
    %v908 = vshll.u32 %v868, 8
    %v909 = vmul.u32.u64.compose %v908, %v907
    %v910 = vextract.low.u32 %v909
    %v911 = vextract.high.u32 %v909
    %v912 = vmul.u32.u64.compose %v908, %v903
    %v913 = vextract.low.u32 %v912
    %v914 = vextract.high.u32 %v912
    %v915 = vmul.u32 %v908, %v899
    %v916 = vadd.s32 %v911, %v913
    %vm917 = vc.u32 %v911, %v913
    %v918 = vadd.s32 %v914, 1
    %v919 = vsel %vm917, %v918, %v914
    %v920 = vadd.s32 %v915, %v919
    %v921 = vadd.s32 %v920, 536870912
    %v922 = vshrl.u32 %v921, 30
    %v923 = vshll.u32 %v922, 30
    %v924 = vsub.s32 %v920, %v923
    %vm925 = vcmp.lt.s32.totalorder %v924, 0
    %v926 = vsub.s32 0, %v924
    %v927 = vsel %vm925, %v926, %v924
    %v928 = vclz %v927
    %v929 = vsub.s32 %v928, 2
    %vm930 = vcmp.gt.s32.totalorder 0, %v929
    %v931 = vsel %vm930, 0, %v929
    %v932 = vsub.s32 32, %v931
    %v933 = vshll.u32 %v924, %v931
    %v934 = vshrl.u32 %v916, %v932
    %v935 = vor.u32 %v933, %v934
    %v936 = vsub.s32 4294967266, %v931
    %v937 = vadd.s32 %v936, 127
    %v938 = vshll.u32 %v937, 23
    %v939 = vor.u32 4788187, %v938
    %v940 = vand.u32 2147483647, %v939
    %v942 = vcvt.s32.f32 %v935
    %v943 = vmul.f32 %v942, %v940
    %v944 = vxor.u32 %v943, 2147483648
    %v945 = vsel %vm862, %v944, %v943
    %v946 = vsub.s32 4, %v922
    %v947 = vsel %vm862, %v946, %v922
    %v948 = vsel %vm861, %v755, %v945
    %v949 = vsel %vm861, 0, %v947
    %v950 = vcosq.f32.pop %v948
    %v951 = vsinq.f32.pop %v948
    %vm952 = vweird.f32 %v755
    %v953 = vadd.s32 %v949, 3
    %v954 = vand.u32 %v953, 3
    %vm955 = vcmp.lt.s32.totalorder %v954, 2
    %vm956 = vcmp.eq.s32.totalorder %v954, 0
    %v957 = vxor.u32 %v951, 2147483648
    %v958 = vsel %vm956, %v950, %v957
    %vm959 = vcmp.eq.s32.totalorder %v954, 2
    %v960 = vxor.u32 %v950, 2147483648
    %v961 = vsel %vm959, %v960, %v951
    %v962 = vsel %vm955, %v958, %v961
    %v963 = vsel %vm952, nan, %v962
    %v964 = vmul.f32 %v859, %v859
    %v965 = vmul.f32 %v963, %v963
    %967 = vset.pattern.permute.xlu0 0
    %968 = vperm.xlu0 %967, %v748
    %v969 = vpop.permute.xlu0 %968
    %v971 = vmul.f32 %v969, %v964
    %v972 = vmul.f32 %v969, %v965
    %v973 = vadd.f32 %v745, %v971
    %v974 = vadd.f32 %v746, %v972
    %977 = vrot.lane.b32.xlu0 %v973, 3
    %v978 = vpop.permute.xlu0 %977
    %979 = vrot.lane.b32.xlu0 %v974, 3
    %v980 = vpop.permute.xlu0 %979
    %v981 = vsel %vm568, %v978, %v980
    %v985 = vsel %vm568, 0.0, %v978
    %v986 = vsel %vm568, %v980, 0.0
    %989 = vrot.lane.b32.xlu0 %v985, 127
    %v990 = vpop.permute.xlu0 %989
    %991 = vrot.lane.b32.xlu0 %v981, 127
    %v992 = vpop.permute.xlu0 %991
    %993 = vrot.lane.b32.xlu0 %v986, 127
    %v994 = vpop.permute.xlu0 %993
    %vm995 = vcmask 1039360
    %v996 = vsel %vm995, %v990, %v992
    %v997 = vsel %vm995, %v992, %v994
    %1000 = vrot.lane.b32.xlu0 %v985, 126
    %v1001 = vpop.permute.xlu0 %1000
    %1002 = vrot.lane.b32.xlu0 %v981, 126
    %v1003 = vpop.permute.xlu0 %1002
    %1004 = vrot.lane.b32.xlu0 %v986, 126
    %v1005 = vpop.permute.xlu0 %1004
    %vm1006 = vcmask 1031168
    %v1007 = vsel %vm1006, %v1001, %v1003
    %v1008 = vsel %vm1006, %v1003, %v1005
    %1011 = vrot.lane.b32.xlu0 %v985, 125
    %v1012 = vpop.permute.xlu0 %1011
    %1013 = vrot.lane.b32.xlu0 %v981, 125
    %v1014 = vpop.permute.xlu0 %1013
    %1015 = vrot.lane.b32.xlu0 %v986, 125
    %v1016 = vpop.permute.xlu0 %1015
    %v1017 = vsel %vm626, %v1012, %v1014
    %v1018 = vsel %vm626, %v1014, %v1016
    %1021 = vrot.lane.b32.xlu0 %v985, 124
    %v1022 = vpop.permute.xlu0 %1021
    %1023 = vrot.lane.b32.xlu0 %v981, 124
    %v1024 = vpop.permute.xlu0 %1023
    %1025 = vrot.lane.b32.xlu0 %v986, 124
    %v1026 = vpop.permute.xlu0 %1025
    %vm1027 = vcmask 1014784
    %v1028 = vsel %vm1027, %v1022, %v1024
    %v1029 = vsel %vm1027, %v1024, %v1026
    %1032 = vrot.lane.b32.xlu0 %v985, 123
    %v1033 = vpop.permute.xlu0 %1032
    %1034 = vrot.lane.b32.xlu0 %v981, 123
    %v1035 = vpop.permute.xlu0 %1034
    %1036 = vrot.lane.b32.xlu0 %v986, 123
    %v1037 = vpop.permute.xlu0 %1036
    %vm1038 = vcmask 1006592
    %v1039 = vsel %vm1038, %v1033, %v1035
    %v1040 = vsel %vm1038, %v1035, %v1037
    %1043 = vrot.lane.b32.xlu0 %v985, 122
    %v1044 = vpop.permute.xlu0 %1043
    %1045 = vrot.lane.b32.xlu0 %v981, 122
    %v1046 = vpop.permute.xlu0 %1045
    %1047 = vrot.lane.b32.xlu0 %v986, 122
    %v1048 = vpop.permute.xlu0 %1047
    %vm1049 = vcmask 998400
    %v1050 = vsel %vm1049, %v1044, %v1046
    %v1051 = vsel %vm1049, %v1046, %v1048
    %v1054 = vld [vmem:[%s8] sm:$0xff]
    %v1055 = vld [vmem:[%s9] sm:$0xff]
    %1057 = vset.pattern.permute.xlu0 0
    %1058 = vperm.xlu0 %1057, %v1055
    %v1059 = vpop.permute.xlu0 %1058
    %vm1061 = vcmask 457728
    %v1063 = vsel %vm1061, %v1054, 0
    %1065 = vmatprep.subr.mxu0 0.0
    %1066 = vmatpush1.msra.mxu0 0.0
    %1067 = vmatprep.subr.mxu0 0.0
    %1068 = vmatpush1.msra.mxu0 0.0
    %1069 = vmatprep.subr.mxu0 0.0
    %1070 = vmatpush1.msra.mxu0 0.0
    %1071 = vmatprep.subr.mxu0 0.0
    %1072 = vmatpush1.msra.mxu0 0.0
    %1073 = vmatprep.subr.mxu0 0.0
    %1074 = vmatpush1.msra.mxu0 0.0
    %1075 = vmatprep.subr.mxu0 0.0
    %1076 = vmatpush1.msra.mxu0 0.0
    %1077 = vmatprep.subr.mxu0 0.0
    %1078 = vmatpush1.msra.mxu0 0.0
    %1079 = vmatprep.subr.mxu0 0.0
    %1080 = vmatpush1.msra.mxu0 0.0
    %1081 = vmatprep.subr.mxu0 0.0
    %1082 = vmatpush1.msra.mxu0 0.0
    %1083 = vmatprep.subr.mxu0 %v1051
    %1084 = vmatpush1.msra.mxu0 %v1050
    %1085 = vmatprep.subr.mxu0 %v1040
    %1086 = vmatpush1.msra.mxu0 %v1039
    %1087 = vmatprep.subr.mxu0 %v1029
    %1088 = vmatpush1.msra.mxu0 %v1028
    %1089 = vmatprep.subr.mxu0 %v1018
    %1090 = vmatpush1.msra.mxu0 %v1017
    %1091 = vmatprep.subr.mxu0 %v1008
    %1092 = vmatpush1.msra.mxu0 %v1007
    %1093 = vmatprep.subr.mxu0 %v997
    %1094 = vmatpush1.msra.mxu0 %v996
    %1095 = vmatprep.subr.mxu0 %v981
    %1096 = vmatpush1.msra.mxu0 %v985
    %1097 = vmatprep.subr.mxu0 0.0
    %1098 = vmatpush2.msra.mxu0 0.0
    %1099 = vmatprep.subr.mxu0 0.0
    %1100 = vmatpush2.msra.mxu0 0.0
    %1101 = vmatprep.subr.mxu0 0.0
    %1102 = vmatpush2.msra.mxu0 0.0
    %1103 = vmatprep.subr.mxu0 0.0
    %1104 = vmatpush2.msra.mxu0 0.0
    %1105 = vmatprep.subr.mxu0 0.0
    %1106 = vmatpush2.msra.mxu0 0.0
    %1107 = vmatprep.subr.mxu0 0.0
    %1108 = vmatpush2.msra.mxu0 0.0
    %1109 = vmatprep.subr.mxu0 0.0
    %1110 = vmatpush2.msra.mxu0 0.0
    %1111 = vmatprep.subr.mxu0 0.0
    %1112 = vmatpush2.msra.mxu0 0.0
    %1113 = vmatprep.subr.mxu0 0.0
    %1114 = vmatpush2.msra.mxu0 0.0
    %1115 = vmatprep.subr.mxu0 0.0
    %1116 = vmatpush2.msra.mxu0 0.0
    %1117 = vmatprep.subr.mxu0 0.0
    %1118 = vmatpush2.msra.mxu0 0.0
    %1119 = vmatprep.subr.mxu0 0.0
    %1120 = vmatpush2.msra.mxu0 0.0
    %1121 = vmatprep.subr.mxu0 0.0
    %1122 = vmatpush2.msra.mxu0 0.0
    %1123 = vmatprep.subr.mxu0 0.0
    %1124 = vmatpush2.msra.mxu0 0.0
    %1125 = vmatprep.subr.mxu0 0.0
    %1126 = vmatpush2.msra.mxu0 0.0
    %1127 = vmatprep.subr.mxu0 0.0
    %1128 = vmatpush2.msra.mxu0 0.0
    %1129 = vmatprep.mubr.f32.mxu0 0.0
    %1130 = vmatmul.mubr.f32.gmra.mxu0 %v1063
    %v1131 = vpop.f32.mrf.mxu0
    %v1132 = vadd.f32 %v1059, %v1131
    %v1133 = vpop.f32.mrf.mxu0
    %v1134 = vadd.f32 %v1059, %v1133
    %1135 = vdwg.mxu0
    %v1136 = vld [vmem:[%s10] sm:$0xff]
    %v1137 = vld [vmem:[%s11] sm:$0xff]
    %1139 = vset.pattern.permute.xlu0 0
    %1140 = vperm.xlu0 %1139, %v1136
    %v1141 = vpop.permute.xlu0 %1140
    %v1143 = vmul.f32 %v1141, %v1132
    %v1144 = vmul.f32 %v1141, %v1134
    %v1145 = vand.u32 2147483647, %v1143
    %vm1146 = vcmp.le.f32.partialorder %v1145, 0.7853982
    %vm1147 = vcmp.lt.s32.totalorder %v1143, 0
    %v1148 = vand.u32 %v1143, 2139095040
    %v1149 = vshrl.u32 %v1148, 23
    %v1150 = vsub.s32 %v1149, 127
    %v1151 = vand.u32 2147483647, %v1143
    %v1152 = vand.u32 %v1151, 8388607
    %v1153 = vor.u32 %v1152, 8388608
    %v1154 = vsub.s32 0, %v1153
    %v1155 = vadd.s32 %v1150, 1
    %vm1156 = vcmp.gt.s32.totalorder %v1155, 0
    %v1157 = vsel %vm1156, %v1155, 0
    %v1158 = vshrl.u32 %v1157, 5
    %v1159 = vand.u32 %v1157, 31
    %v1160 = vsub.s32 32, %v1159
    %v1161 = vshrl.u32 683565275, %v1160
    %v1162 = vshll.u32 683565275, %v1159
    %v1163 = vshrl.u32 2475754826, %v1160
    %v1164 = vor.u32 %v1162, %v1163
    %v1165 = vshll.u32 2475754826, %v1159
    %v1166 = vshrl.u32 2131351028, %v1160
    %v1167 = vor.u32 %v1165, %v1166
    %v1168 = vshll.u32 2131351028, %v1159
    %v1169 = vshrl.u32 2102212464, %v1160
    %v1170 = vor.u32 %v1168, %v1169
    %v1171 = vshll.u32 2102212464, %v1159
    %v1172 = vshrl.u32 920167782, %v1160
    %v1173 = vor.u32 %v1171, %v1172
    %v1174 = vshll.u32 920167782, %v1159
    %v1175 = vshrl.u32 1326507024, %v1160
    %v1176 = vor.u32 %v1174, %v1175
    %vm1177 = vcmp.lt.s32.totalorder %v1158, 1
    %vm1178 = vcmp.lt.s32.totalorder %v1158, 2
    %vm1179 = vcmp.lt.s32.totalorder %v1158, 3
    %vm1180 = vcmp.lt.s32.totalorder %v1158, 4
    %v1181 = vsel %vm1177, %v1161, %v1164
    %v1182 = vsel %vm1180, %v1170, 2102212464
    %v1183 = vsel %vm1179, %v1167, %v1182
    %v1184 = vsel %vm1178, %v1181, %v1183
    %v1185 = vsel %vm1177, %v1164, %v1167
    %v1186 = vsel %vm1180, %v1173, 920167782
    %v1187 = vsel %vm1179, %v1170, %v1186
    %v1188 = vsel %vm1178, %v1185, %v1187
    %v1189 = vsel %vm1177, %v1167, %v1170
    %v1190 = vsel %vm1180, %v1176, 1326507024
    %v1191 = vsel %vm1179, %v1173, %v1190
    %v1192 = vsel %vm1178, %v1189, %v1191
    %v1193 = vshll.u32 %v1153, 8
    %v1194 = vmul.u32.u64.compose %v1193, %v1192
    %v1195 = vextract.low.u32 %v1194
    %v1196 = vextract.high.u32 %v1194
    %v1197 = vmul.u32.u64.compose %v1193, %v1188
    %v1198 = vextract.low.u32 %v1197
    %v1199 = vextract.high.u32 %v1197
    %v1200 = vmul.u32 %v1193, %v1184
    %v1201 = vadd.s32 %v1196, %v1198
    %vm1202 = vc.u32 %v1196, %v1198
    %v1203 = vadd.s32 %v1199, 1
    %v1204 = vsel %vm1202, %v1203, %v1199
    %v1205 = vadd.s32 %v1200, %v1204
    %v1206 = vadd.s32 %v1205, 536870912
    %v1207 = vshrl.u32 %v1206, 30
    %v1208 = vshll.u32 %v1207, 30
    %v1209 = vsub.s32 %v1205, %v1208
    %vm1210 = vcmp.lt.s32.totalorder %v1209, 0
    %v1211 = vsub.s32 0, %v1209
    %v1212 = vsel %vm1210, %v1211, %v1209
    %v1213 = vclz %v1212
    %v1214 = vsub.s32 %v1213, 2
    %vm1215 = vcmp.gt.s32.totalorder 0, %v1214
    %v1216 = vsel %vm1215, 0, %v1214
    %v1217 = vsub.s32 32, %v1216
    %v1218 = vshll.u32 %v1209, %v1216
    %v1219 = vshrl.u32 %v1201, %v1217
    %v1220 = vor.u32 %v1218, %v1219
    %v1221 = vsub.s32 4294967266, %v1216
    %v1222 = vadd.s32 %v1221, 127
    %v1223 = vshll.u32 %v1222, 23
    %v1224 = vor.u32 4788187, %v1223
    %v1225 = vand.u32 2147483647, %v1224
    %v1227 = vcvt.s32.f32 %v1220
    %v1228 = vmul.f32 %v1227, %v1225
    %v1229 = vxor.u32 %v1228, 2147483648
    %v1230 = vsel %vm1147, %v1229, %v1228
    %v1231 = vsub.s32 4, %v1207
    %v1232 = vsel %vm1147, %v1231, %v1207
    %v1233 = vsel %vm1146, %v1143, %v1230
    %v1234 = vsel %vm1146, 0, %v1232
    %v1235 = vcosq.f32.pop %v1233
    %v1236 = vsinq.f32.pop %v1233
    %vm1237 = vweird.f32 %v1143
    %v1238 = vadd.s32 %v1234, 3
    %v1239 = vand.u32 %v1238, 3
    %vm1240 = vcmp.lt.s32.totalorder %v1239, 2
    %vm1241 = vcmp.eq.s32.totalorder %v1239, 0
    %v1242 = vxor.u32 %v1236, 2147483648
    %v1243 = vsel %vm1241, %v1235, %v1242
    %vm1244 = vcmp.eq.s32.totalorder %v1239, 2
    %v1245 = vxor.u32 %v1235, 2147483648
    %v1246 = vsel %vm1244, %v1245, %v1236
    %v1247 = vsel %vm1240, %v1243, %v1246
    %v1248 = vsel %vm1237, nan, %v1247
    %v1249 = vand.u32 2147483647, %v1144
    %vm1250 = vcmp.le.f32.partialorder %v1249, 0.7853982
    %vm1251 = vcmp.lt.s32.totalorder %v1144, 0
    %v1252 = vand.u32 %v1144, 2139095040
    %v1253 = vshrl.u32 %v1252, 23
    %v1254 = vsub.s32 %v1253, 127
    %v1255 = vand.u32 2147483647, %v1144
    %v1256 = vand.u32 %v1255, 8388607
    %v1257 = vor.u32 %v1256, 8388608
    %v1258 = vsub.s32 0, %v1257
    %v1259 = vadd.s32 %v1254, 1
    %vm1260 = vcmp.gt.s32.totalorder %v1259, 0
    %v1261 = vsel %vm1260, %v1259, 0
    %v1262 = vshrl.u32 %v1261, 5
    %v1263 = vand.u32 %v1261, 31
    %v1264 = vsub.s32 32, %v1263
    %v1265 = vshrl.u32 683565275, %v1264
    %v1266 = vshll.u32 683565275, %v1263
    %v1267 = vshrl.u32 2475754826, %v1264
    %v1268 = vor.u32 %v1266, %v1267
    %v1269 = vshll.u32 2475754826, %v1263
    %v1270 = vshrl.u32 2131351028, %v1264
    %v1271 = vor.u32 %v1269, %v1270
    %v1272 = vshll.u32 2131351028, %v1263
    %v1273 = vshrl.u32 2102212464, %v1264
    %v1274 = vor.u32 %v1272, %v1273
    %v1275 = vshll.u32 2102212464, %v1263
    %v1276 = vshrl.u32 920167782, %v1264
    %v1277 = vor.u32 %v1275, %v1276
    %v1278 = vshll.u32 920167782, %v1263
    %v1279 = vshrl.u32 1326507024, %v1264
    %v1280 = vor.u32 %v1278, %v1279
    %vm1281 = vcmp.lt.s32.totalorder %v1262, 1
    %vm1282 = vcmp.lt.s32.totalorder %v1262, 2
    %vm1283 = vcmp.lt.s32.totalorder %v1262, 3
    %vm1284 = vcmp.lt.s32.totalorder %v1262, 4
    %v1285 = vsel %vm1281, %v1265, %v1268
    %v1286 = vsel %vm1284, %v1274, 2102212464
    %v1287 = vsel %vm1283, %v1271, %v1286
    %v1288 = vsel %vm1282, %v1285, %v1287
    %v1289 = vsel %vm1281, %v1268, %v1271
    %v1290 = vsel %vm1284, %v1277, 920167782
    %v1291 = vsel %vm1283, %v1274, %v1290
    %v1292 = vsel %vm1282, %v1289, %v1291
    %v1293 = vsel %vm1281, %v1271, %v1274
    %v1294 = vsel %vm1284, %v1280, 1326507024
    %v1295 = vsel %vm1283, %v1277, %v1294
    %v1296 = vsel %vm1282, %v1293, %v1295
    %v1297 = vshll.u32 %v1257, 8
    %v1298 = vmul.u32.u64.compose %v1297, %v1296
    %v1299 = vextract.low.u32 %v1298
    %v1300 = vextract.high.u32 %v1298
    %v1301 = vmul.u32.u64.compose %v1297, %v1292
    %v1302 = vextract.low.u32 %v1301
    %v1303 = vextract.high.u32 %v1301
    %v1304 = vmul.u32 %v1297, %v1288
    %v1305 = vadd.s32 %v1300, %v1302
    %vm1306 = vc.u32 %v1300, %v1302
    %v1307 = vadd.s32 %v1303, 1
    %v1308 = vsel %vm1306, %v1307, %v1303
    %v1309 = vadd.s32 %v1304, %v1308
    %v1310 = vadd.s32 %v1309, 536870912
    %v1311 = vshrl.u32 %v1310, 30
    %v1312 = vshll.u32 %v1311, 30
    %v1313 = vsub.s32 %v1309, %v1312
    %vm1314 = vcmp.lt.s32.totalorder %v1313, 0
    %v1315 = vsub.s32 0, %v1313
    %v1316 = vsel %vm1314, %v1315, %v1313
    %v1317 = vclz %v1316
    %v1318 = vsub.s32 %v1317, 2
    %vm1319 = vcmp.gt.s32.totalorder 0, %v1318
    %v1320 = vsel %vm1319, 0, %v1318
    %v1321 = vsub.s32 32, %v1320
    %v1322 = vshll.u32 %v1313, %v1320
    %v1323 = vshrl.u32 %v1305, %v1321
    %v1324 = vor.u32 %v1322, %v1323
    %v1325 = vsub.s32 4294967266, %v1320
    %v1326 = vadd.s32 %v1325, 127
    %v1327 = vshll.u32 %v1326, 23
    %v1328 = vor.u32 4788187, %v1327
    %v1329 = vand.u32 2147483647, %v1328
    %v1331 = vcvt.s32.f32 %v1324
    %v1332 = vmul.f32 %v1331, %v1329
    %v1333 = vxor.u32 %v1332, 2147483648
    %v1334 = vsel %vm1251, %v1333, %v1332
    %v1335 = vsub.s32 4, %v1311
    %v1336 = vsel %vm1251, %v1335, %v1311
    %v1337 = vsel %vm1250, %v1144, %v1334
    %v1338 = vsel %vm1250, 0, %v1336
    %v1339 = vcosq.f32.pop %v1337
    %v1340 = vsinq.f32.pop %v1337
    %vm1341 = vweird.f32 %v1144
    %v1342 = vadd.s32 %v1338, 3
    %v1343 = vand.u32 %v1342, 3
    %vm1344 = vcmp.lt.s32.totalorder %v1343, 2
    %vm1345 = vcmp.eq.s32.totalorder %v1343, 0
    %v1346 = vxor.u32 %v1340, 2147483648
    %v1347 = vsel %vm1345, %v1339, %v1346
    %vm1348 = vcmp.eq.s32.totalorder %v1343, 2
    %v1349 = vxor.u32 %v1339, 2147483648
    %v1350 = vsel %vm1348, %v1349, %v1340
    %v1351 = vsel %vm1344, %v1347, %v1350
    %v1352 = vsel %vm1341, nan, %v1351
    %v1353 = vmul.f32 %v1248, %v1248
    %v1354 = vmul.f32 %v1352, %v1352
    %1356 = vset.pattern.permute.xlu0 0
    %1357 = vperm.xlu0 %1356, %v1137
    %v1358 = vpop.permute.xlu0 %1357
    %v1360 = vmul.f32 %v1358, %v1353
    %v1361 = vmul.f32 %v1358, %v1354
    %v1362 = vadd.f32 %v1132, %v1360
    %v1363 = vadd.f32 %v1134, %v1361
    %v1364 = vld [vmem:[%s12] sm:$0xff]
    %v1365 = vld [vmem:[%s13] sm:$0xff]
    %1367 = vset.pattern.permute.xlu0 0
    %1368 = vperm.xlu0 %1367, %v1365
    %v1369 = vpop.permute.xlu0 %1368
    %vm1371 = vcmask 64512
    %v1373 = vsel %vm1371, %v1364, 0
    %1375 = vmatprep.subr.mxu0 0.0
    %1376 = vmatpush1.msra.mxu0 0.0
    %1377 = vmatprep.subr.mxu0 0.0
    %1378 = vmatpush1.msra.mxu0 0.0
    %1379 = vmatprep.subr.mxu0 0.0
    %1380 = vmatpush1.msra.mxu0 0.0
    %1381 = vmatprep.subr.mxu0 0.0
    %1382 = vmatpush1.msra.mxu0 0.0
    %1383 = vmatprep.subr.mxu0 0.0
    %1384 = vmatpush1.msra.mxu0 0.0
    %1385 = vmatprep.subr.mxu0 0.0
    %1386 = vmatpush1.msra.mxu0 0.0
    %1387 = vmatprep.subr.mxu0 0.0
    %1388 = vmatpush1.msra.mxu0 0.0
    %1389 = vmatprep.subr.mxu0 0.0
    %1390 = vmatpush1.msra.mxu0 0.0
    %1391 = vmatprep.subr.mxu0 0.0
    %1392 = vmatpush1.msra.mxu0 0.0
    %1393 = vmatprep.subr.mxu0 0.0
    %1394 = vmatpush1.msra.mxu0 0.0
    %1395 = vmatprep.subr.mxu0 0.0
    %1396 = vmatpush1.msra.mxu0 0.0
    %1397 = vmatprep.subr.mxu0 0.0
    %1398 = vmatpush1.msra.mxu0 0.0
    %1399 = vmatprep.subr.mxu0 0.0
    %1400 = vmatpush1.msra.mxu0 0.0
    %1401 = vmatprep.subr.mxu0 0.0
    %1402 = vmatpush1.msra.mxu0 0.0
    %1403 = vmatprep.subr.mxu0 0.0
    %1404 = vmatpush1.msra.mxu0 0.0
    %1405 = vmatprep.subr.mxu0 %v1363
    %1406 = vmatpush1.msra.mxu0 %v1362
    %1407 = vmatprep.subr.mxu0 0.0
    %1408 = vmatpush2.msra.mxu0 0.0
    %1409 = vmatprep.subr.mxu0 0.0
    %1410 = vmatpush2.msra.mxu0 0.0
    %1411 = vmatprep.subr.mxu0 0.0
    %1412 = vmatpush2.msra.mxu0 0.0
    %1413 = vmatprep.subr.mxu0 0.0
    %1414 = vmatpush2.msra.mxu0 0.0
    %1415 = vmatprep.subr.mxu0 0.0
    %1416 = vmatpush2.msra.mxu0 0.0
    %1417 = vmatprep.subr.mxu0 0.0
    %1418 = vmatpush2.msra.mxu0 0.0
    %1419 = vmatprep.subr.mxu0 0.0
    %1420 = vmatpush2.msra.mxu0 0.0
    %1421 = vmatprep.subr.mxu0 0.0
    %1422 = vmatpush2.msra.mxu0 0.0
    %1423 = vmatprep.subr.mxu0 0.0
    %1424 = vmatpush2.msra.mxu0 0.0
    %1425 = vmatprep.subr.mxu0 0.0
    %1426 = vmatpush2.msra.mxu0 0.0
    %1427 = vmatprep.subr.mxu0 0.0
    %1428 = vmatpush2.msra.mxu0 0.0
    %1429 = vmatprep.subr.mxu0 0.0
    %1430 = vmatpush2.msra.mxu0 0.0
    %1431 = vmatprep.subr.mxu0 0.0
    %1432 = vmatpush2.msra.mxu0 0.0
    %1433 = vmatprep.subr.mxu0 0.0
    %1434 = vmatpush2.msra.mxu0 0.0
    %1435 = vmatprep.subr.mxu0 0.0
    %1436 = vmatpush2.msra.mxu0 0.0
    %1437 = vmatprep.subr.mxu0 0.0
    %1438 = vmatpush2.msra.mxu0 0.0
    %1439 = vmatprep.mubr.f32.mxu0 0.0
    %1440 = vmatmul.mubr.f32.gmra.mxu0 %v1373
    %v1441 = vpop.f32.mrf.mxu0
    %v1442 = vadd.f32 %v1369, %v1441
    %v1443 = vpop.f32.mrf.mxu0
    %v1444 = vadd.f32 %v1369, %v1443
    %1445 = vdwg.mxu0
    %v1446 = vmul.f32 %v1442, %v738
    %v1447 = vmul.f32 %v1444, %v742
    %v1448 = vadd.f32 %v745, %v1446
    %v1449 = vadd.f32 %v746, %v1447
    %s1450 = scalar_lea.vmem %s6, 8
    %v1451 = vld [vmem:[%s1450] sm:$0xff]
    %s1452 = scalar_lea.vmem %s7, 8
    %v1453 = vld [vmem:[%s1452] sm:$0xff]
    %1455 = vset.pattern.permute.xlu0 0
    %1456 = vperm.xlu0 %1455, %v1451
    %v1457 = vpop.permute.xlu0 %1456
    %v1459 = vmul.f32 %v1457, %v1448
    %v1460 = vmul.f32 %v1457, %v1449
    %v1461 = vand.u32 2147483647, %v1459
    %vm1462 = vcmp.le.f32.partialorder %v1461, 0.7853982
    %vm1463 = vcmp.lt.s32.totalorder %v1459, 0
    %v1464 = vand.u32 %v1459, 2139095040
    %v1465 = vshrl.u32 %v1464, 23
    %v1466 = vsub.s32 %v1465, 127
    %v1467 = vand.u32 2147483647, %v1459
    %v1468 = vand.u32 %v1467, 8388607
    %v1469 = vor.u32 %v1468, 8388608
    %v1470 = vsub.s32 0, %v1469
    %v1471 = vadd.s32 %v1466, 1
    %vm1472 = vcmp.gt.s32.totalorder %v1471, 0
    %v1473 = vsel %vm1472, %v1471, 0
    %v1474 = vshrl.u32 %v1473, 5
    %v1475 = vand.u32 %v1473, 31
    %v1476 = vsub.s32 32, %v1475
    %v1477 = vshrl.u32 683565275, %v1476
    %v1478 = vshll.u32 683565275, %v1475
    %v1479 = vshrl.u32 2475754826, %v1476
    %v1480 = vor.u32 %v1478, %v1479
    %v1481 = vshll.u32 2475754826, %v1475
    %v1482 = vshrl.u32 2131351028, %v1476
    %v1483 = vor.u32 %v1481, %v1482
    %v1484 = vshll.u32 2131351028, %v1475
    %v1485 = vshrl.u32 2102212464, %v1476
    %v1486 = vor.u32 %v1484, %v1485
    %v1487 = vshll.u32 2102212464, %v1475
    %v1488 = vshrl.u32 920167782, %v1476
    %v1489 = vor.u32 %v1487, %v1488
    %v1490 = vshll.u32 920167782, %v1475
    %v1491 = vshrl.u32 1326507024, %v1476
    %v1492 = vor.u32 %v1490, %v1491
    %vm1493 = vcmp.lt.s32.totalorder %v1474, 1
    %vm1494 = vcmp.lt.s32.totalorder %v1474, 2
    %vm1495 = vcmp.lt.s32.totalorder %v1474, 3
    %vm1496 = vcmp.lt.s32.totalorder %v1474, 4
    %v1497 = vsel %vm1493, %v1477, %v1480
    %v1498 = vsel %vm1496, %v1486, 2102212464
    %v1499 = vsel %vm1495, %v1483, %v1498
    %v1500 = vsel %vm1494, %v1497, %v1499
    %v1501 = vsel %vm1493, %v1480, %v1483
    %v1502 = vsel %vm1496, %v1489, 920167782
    %v1503 = vsel %vm1495, %v1486, %v1502
    %v1504 = vsel %vm1494, %v1501, %v1503
    %v1505 = vsel %vm1493, %v1483, %v1486
    %v1506 = vsel %vm1496, %v1492, 1326507024
    %v1507 = vsel %vm1495, %v1489, %v1506
    %v1508 = vsel %vm1494, %v1505, %v1507
    %v1509 = vshll.u32 %v1469, 8
    %v1510 = vmul.u32.u64.compose %v1509, %v1508
    %v1511 = vextract.low.u32 %v1510
    %v1512 = vextract.high.u32 %v1510
    %v1513 = vmul.u32.u64.compose %v1509, %v1504
    %v1514 = vextract.low.u32 %v1513
    %v1515 = vextract.high.u32 %v1513
    %v1516 = vmul.u32 %v1509, %v1500
    %v1517 = vadd.s32 %v1512, %v1514
    %vm1518 = vc.u32 %v1512, %v1514
    %v1519 = vadd.s32 %v1515, 1
    %v1520 = vsel %vm1518, %v1519, %v1515
    %v1521 = vadd.s32 %v1516, %v1520
    %v1522 = vadd.s32 %v1521, 536870912
    %v1523 = vshrl.u32 %v1522, 30
    %v1524 = vshll.u32 %v1523, 30
    %v1525 = vsub.s32 %v1521, %v1524
    %vm1526 = vcmp.lt.s32.totalorder %v1525, 0
    %v1527 = vsub.s32 0, %v1525
    %v1528 = vsel %vm1526, %v1527, %v1525
    %v1529 = vclz %v1528
    %v1530 = vsub.s32 %v1529, 2
    %vm1531 = vcmp.gt.s32.totalorder 0, %v1530
    %v1532 = vsel %vm1531, 0, %v1530
    %v1533 = vsub.s32 32, %v1532
    %v1534 = vshll.u32 %v1525, %v1532
    %v1535 = vshrl.u32 %v1517, %v1533
    %v1536 = vor.u32 %v1534, %v1535
    %v1537 = vsub.s32 4294967266, %v1532
    %v1538 = vadd.s32 %v1537, 127
    %v1539 = vshll.u32 %v1538, 23
    %v1540 = vor.u32 4788187, %v1539
    %v1541 = vand.u32 2147483647, %v1540
    %v1543 = vcvt.s32.f32 %v1536
    %v1544 = vmul.f32 %v1543, %v1541
    %v1545 = vxor.u32 %v1544, 2147483648
    %v1546 = vsel %vm1463, %v1545, %v1544
    %v1547 = vsub.s32 4, %v1523
    %v1548 = vsel %vm1463, %v1547, %v1523
    %v1549 = vsel %vm1462, %v1459, %v1546
    %v1550 = vsel %vm1462, 0, %v1548
    %v1551 = vcosq.f32.pop %v1549
    %v1552 = vsinq.f32.pop %v1549
    %vm1553 = vweird.f32 %v1459
    %v1554 = vadd.s32 %v1550, 3
    %v1555 = vand.u32 %v1554, 3
    %vm1556 = vcmp.lt.s32.totalorder %v1555, 2
    %vm1557 = vcmp.eq.s32.totalorder %v1555, 0
    %v1558 = vxor.u32 %v1552, 2147483648
    %v1559 = vsel %vm1557, %v1551, %v1558
    %vm1560 = vcmp.eq.s32.totalorder %v1555, 2
    %v1561 = vxor.u32 %v1551, 2147483648
    %v1562 = vsel %vm1560, %v1561, %v1552
    %v1563 = vsel %vm1556, %v1559, %v1562
    %v1564 = vsel %vm1553, nan, %v1563
    %v1565 = vand.u32 2147483647, %v1460
    %vm1566 = vcmp.le.f32.partialorder %v1565, 0.7853982
    %vm1567 = vcmp.lt.s32.totalorder %v1460, 0
    %v1568 = vand.u32 %v1460, 2139095040
    %v1569 = vshrl.u32 %v1568, 23
    %v1570 = vsub.s32 %v1569, 127
    %v1571 = vand.u32 2147483647, %v1460
    %v1572 = vand.u32 %v1571, 8388607
    %v1573 = vor.u32 %v1572, 8388608
    %v1574 = vsub.s32 0, %v1573
    %v1575 = vadd.s32 %v1570, 1
    %vm1576 = vcmp.gt.s32.totalorder %v1575, 0
    %v1577 = vsel %vm1576, %v1575, 0
    %v1578 = vshrl.u32 %v1577, 5
    %v1579 = vand.u32 %v1577, 31
    %v1580 = vsub.s32 32, %v1579
    %v1581 = vshrl.u32 683565275, %v1580
    %v1582 = vshll.u32 683565275, %v1579
    %v1583 = vshrl.u32 2475754826, %v1580
    %v1584 = vor.u32 %v1582, %v1583
    %v1585 = vshll.u32 2475754826, %v1579
    %v1586 = vshrl.u32 2131351028, %v1580
    %v1587 = vor.u32 %v1585, %v1586
    %v1588 = vshll.u32 2131351028, %v1579
    %v1589 = vshrl.u32 2102212464, %v1580
    %v1590 = vor.u32 %v1588, %v1589
    %v1591 = vshll.u32 2102212464, %v1579
    %v1592 = vshrl.u32 920167782, %v1580
    %v1593 = vor.u32 %v1591, %v1592
    %v1594 = vshll.u32 920167782, %v1579
    %v1595 = vshrl.u32 1326507024, %v1580
    %v1596 = vor.u32 %v1594, %v1595
    %vm1597 = vcmp.lt.s32.totalorder %v1578, 1
    %vm1598 = vcmp.lt.s32.totalorder %v1578, 2
    %vm1599 = vcmp.lt.s32.totalorder %v1578, 3
    %vm1600 = vcmp.lt.s32.totalorder %v1578, 4
    %v1601 = vsel %vm1597, %v1581, %v1584
    %v1602 = vsel %vm1600, %v1590, 2102212464
    %v1603 = vsel %vm1599, %v1587, %v1602
    %v1604 = vsel %vm1598, %v1601, %v1603
    %v1605 = vsel %vm1597, %v1584, %v1587
    %v1606 = vsel %vm1600, %v1593, 920167782
    %v1607 = vsel %vm1599, %v1590, %v1606
    %v1608 = vsel %vm1598, %v1605, %v1607
    %v1609 = vsel %vm1597, %v1587, %v1590
    %v1610 = vsel %vm1600, %v1596, 1326507024
    %v1611 = vsel %vm1599, %v1593, %v1610
    %v1612 = vsel %vm1598, %v1609, %v1611
    %v1613 = vshll.u32 %v1573, 8
    %v1614 = vmul.u32.u64.compose %v1613, %v1612
    %v1615 = vextract.low.u32 %v1614
    %v1616 = vextract.high.u32 %v1614
    %v1617 = vmul.u32.u64.compose %v1613, %v1608
    %v1618 = vextract.low.u32 %v1617
    %v1619 = vextract.high.u32 %v1617
    %v1620 = vmul.u32 %v1613, %v1604
    %v1621 = vadd.s32 %v1616, %v1618
    %vm1622 = vc.u32 %v1616, %v1618
    %v1623 = vadd.s32 %v1619, 1
    %v1624 = vsel %vm1622, %v1623, %v1619
    %v1625 = vadd.s32 %v1620, %v1624
    %v1626 = vadd.s32 %v1625, 536870912
    %v1627 = vshrl.u32 %v1626, 30
    %v1628 = vshll.u32 %v1627, 30
    %v1629 = vsub.s32 %v1625, %v1628
    %vm1630 = vcmp.lt.s32.totalorder %v1629, 0
    %v1631 = vsub.s32 0, %v1629
    %v1632 = vsel %vm1630, %v1631, %v1629
    %v1633 = vclz %v1632
    %v1634 = vsub.s32 %v1633, 2
    %vm1635 = vcmp.gt.s32.totalorder 0, %v1634
    %v1636 = vsel %vm1635, 0, %v1634
    %v1637 = vsub.s32 32, %v1636
    %v1638 = vshll.u32 %v1629, %v1636
    %v1639 = vshrl.u32 %v1621, %v1637
    %v1640 = vor.u32 %v1638, %v1639
    %v1641 = vsub.s32 4294967266, %v1636
    %v1642 = vadd.s32 %v1641, 127
    %v1643 = vshll.u32 %v1642, 23
    %v1644 = vor.u32 4788187, %v1643
    %v1645 = vand.u32 2147483647, %v1644
    %v1647 = vcvt.s32.f32 %v1640
    %v1648 = vmul.f32 %v1647, %v1645
    %v1649 = vxor.u32 %v1648, 2147483648
    %v1650 = vsel %vm1567, %v1649, %v1648
    %v1651 = vsub.s32 4, %v1627
    %v1652 = vsel %vm1567, %v1651, %v1627
    %v1653 = vsel %vm1566, %v1460, %v1650
    %v1654 = vsel %vm1566, 0, %v1652
    %v1655 = vcosq.f32.pop %v1653
    %v1656 = vsinq.f32.pop %v1653
    %vm1657 = vweird.f32 %v1460
    %v1658 = vadd.s32 %v1654, 3
    %v1659 = vand.u32 %v1658, 3
    %vm1660 = vcmp.lt.s32.totalorder %v1659, 2
    %vm1661 = vcmp.eq.s32.totalorder %v1659, 0
    %v1662 = vxor.u32 %v1656, 2147483648
    %v1663 = vsel %vm1661, %v1655, %v1662
    %vm1664 = vcmp.eq.s32.totalorder %v1659, 2
    %v1665 = vxor.u32 %v1655, 2147483648
    %v1666 = vsel %vm1664, %v1665, %v1656
    %v1667 = vsel %vm1660, %v1663, %v1666
    %v1668 = vsel %vm1657, nan, %v1667
    %v1669 = vmul.f32 %v1564, %v1564
    %v1670 = vmul.f32 %v1668, %v1668
    %1672 = vset.pattern.permute.xlu0 0
    %1673 = vperm.xlu0 %1672, %v1453
    %v1674 = vpop.permute.xlu0 %1673
    %v1676 = vmul.f32 %v1674, %v1669
    %v1677 = vmul.f32 %v1674, %v1670
    %v1678 = vadd.f32 %v1448, %v1676
    %v1679 = vadd.f32 %v1449, %v1677
    %1682 = vrot.lane.b32.xlu0 %v1678, 9
    %v1683 = vpop.permute.xlu0 %1682
    %1684 = vrot.lane.b32.xlu0 %v1679, 9
    %v1685 = vpop.permute.xlu0 %1684
    %vm1686 = vcmask 72704
    %v1687 = vsel %vm1686, %v1683, %v1685
    %v1691 = vsel %vm1686, 0.0, %v1683
    %v1692 = vsel %vm1686, %v1685, 0.0
    %1695 = vrot.lane.b32.xlu0 %v1691, 125
    %v1696 = vpop.permute.xlu0 %1695
    %1697 = vrot.lane.b32.xlu0 %v1687, 125
    %v1698 = vpop.permute.xlu0 %1697
    %1699 = vrot.lane.b32.xlu0 %v1692, 125
    %v1700 = vpop.permute.xlu0 %1699
    %v1701 = vsel %vm626, %v1696, %v1698
    %v1702 = vsel %vm626, %v1698, %v1700
    %1705 = vrot.lane.b32.xlu0 %v1691, 122
    %v1706 = vpop.permute.xlu0 %1705
    %1707 = vrot.lane.b32.xlu0 %v1687, 122
    %v1708 = vpop.permute.xlu0 %1707
    %1709 = vrot.lane.b32.xlu0 %v1692, 122
    %v1710 = vpop.permute.xlu0 %1709
    %v1711 = vsel %vm1049, %v1706, %v1708
    %v1712 = vsel %vm1049, %v1708, %v1710
    %1715 = vrot.lane.b32.xlu0 %v1691, 119
    %v1716 = vpop.permute.xlu0 %1715
    %1717 = vrot.lane.b32.xlu0 %v1687, 119
    %v1718 = vpop.permute.xlu0 %1717
    %1719 = vrot.lane.b32.xlu0 %v1692, 119
    %v1720 = vpop.permute.xlu0 %1719
    %vm1721 = vcmask 973824
    %v1722 = vsel %vm1721, %v1716, %v1718
    %v1723 = vsel %vm1721, %v1718, %v1720
    %1726 = vrot.lane.b32.xlu0 %v1691, 116
    %v1727 = vpop.permute.xlu0 %1726
    %1728 = vrot.lane.b32.xlu0 %v1687, 116
    %v1729 = vpop.permute.xlu0 %1728
    %1730 = vrot.lane.b32.xlu0 %v1692, 116
    %v1731 = vpop.permute.xlu0 %1730
    %vm1732 = vcmask 949248
    %v1733 = vsel %vm1732, %v1727, %v1729
    %v1734 = vsel %vm1732, %v1729, %v1731
    %1737 = vrot.lane.b32.xlu0 %v1691, 113
    %v1738 = vpop.permute.xlu0 %1737
    %1739 = vrot.lane.b32.xlu0 %v1687, 113
    %v1740 = vpop.permute.xlu0 %1739
    %1741 = vrot.lane.b32.xlu0 %v1692, 113
    %v1742 = vpop.permute.xlu0 %1741
    %vm1743 = vcmask 924672
    %v1744 = vsel %vm1743, %v1738, %v1740
    %v1745 = vsel %vm1743, %v1740, %v1742
    %1748 = vrot.lane.b32.xlu0 %v1691, 110
    %v1749 = vpop.permute.xlu0 %1748
    %1750 = vrot.lane.b32.xlu0 %v1687, 110
    %v1751 = vpop.permute.xlu0 %1750
    %1752 = vrot.lane.b32.xlu0 %v1692, 110
    %v1753 = vpop.permute.xlu0 %1752
    %vm1754 = vcmask 900096
    %v1755 = vsel %vm1754, %v1749, %v1751
    %v1756 = vsel %vm1754, %v1751, %v1753
    %s1759 = scalar_lea.vmem %s8, 8
    %v1760 = vld [vmem:[%s1759] sm:$0xff]
    %s1761 = scalar_lea.vmem %s9, 8
    %v1762 = vld [vmem:[%s1761] sm:$0xff]
    %1764 = vset.pattern.permute.xlu0 0
    %1765 = vperm.xlu0 %1764, %v1762
    %v1766 = vpop.permute.xlu0 %1765
    %v1769 = vsel %vm1061, %v1760, 0
    %1771 = vmatprep.subr.mxu0 0.0
    %1772 = vmatpush1.msra.mxu0 0.0
    %1773 = vmatprep.subr.mxu0 0.0
    %1774 = vmatpush1.msra.mxu0 0.0
    %1775 = vmatprep.subr.mxu0 0.0
    %1776 = vmatpush1.msra.mxu0 0.0
    %1777 = vmatprep.subr.mxu0 0.0
    %1778 = vmatpush1.msra.mxu0 0.0
    %1779 = vmatprep.subr.mxu0 0.0
    %1780 = vmatpush1.msra.mxu0 0.0
    %1781 = vmatprep.subr.mxu0 0.0
    %1782 = vmatpush1.msra.mxu0 0.0
    %1783 = vmatprep.subr.mxu0 0.0
    %1784 = vmatpush1.msra.mxu0 0.0
    %1785 = vmatprep.subr.mxu0 0.0
    %1786 = vmatpush1.msra.mxu0 0.0
    %1787 = vmatprep.subr.mxu0 0.0
    %1788 = vmatpush1.msra.mxu0 0.0
    %1789 = vmatprep.subr.mxu0 %v1756
    %1790 = vmatpush1.msra.mxu0 %v1755
    %1791 = vmatprep.subr.mxu0 %v1745
    %1792 = vmatpush1.msra.mxu0 %v1744
    %1793 = vmatprep.subr.mxu0 %v1734
    %1794 = vmatpush1.msra.mxu0 %v1733
    %1795 = vmatprep.subr.mxu0 %v1723
    %1796 = vmatpush1.msra.mxu0 %v1722
    %1797 = vmatprep.subr.mxu0 %v1712
    %1798 = vmatpush1.msra.mxu0 %v1711
    %1799 = vmatprep.subr.mxu0 %v1702
    %1800 = vmatpush1.msra.mxu0 %v1701
    %1801 = vmatprep.subr.mxu0 %v1687
    %1802 = vmatpush1.msra.mxu0 %v1691
    %1803 = vmatprep.subr.mxu0 0.0
    %1804 = vmatpush2.msra.mxu0 0.0
    %1805 = vmatprep.subr.mxu0 0.0
    %1806 = vmatpush2.msra.mxu0 0.0
    %1807 = vmatprep.subr.mxu0 0.0
    %1808 = vmatpush2.msra.mxu0 0.0
    %1809 = vmatprep.subr.mxu0 0.0
    %1810 = vmatpush2.msra.mxu0 0.0
    %1811 = vmatprep.subr.mxu0 0.0
    %1812 = vmatpush2.msra.mxu0 0.0
    %1813 = vmatprep.subr.mxu0 0.0
    %1814 = vmatpush2.msra.mxu0 0.0
    %1815 = vmatprep.subr.mxu0 0.0
    %1816 = vmatpush2.msra.mxu0 0.0
    %1817 = vmatprep.subr.mxu0 0.0
    %1818 = vmatpush2.msra.mxu0 0.0
    %1819 = vmatprep.subr.mxu0 0.0
    %1820 = vmatpush2.msra.mxu0 0.0
    %1821 = vmatprep.subr.mxu0 0.0
    %1822 = vmatpush2.msra.mxu0 0.0
    %1823 = vmatprep.subr.mxu0 0.0
    %1824 = vmatpush2.msra.mxu0 0.0
    %1825 = vmatprep.subr.mxu0 0.0
    %1826 = vmatpush2.msra.mxu0 0.0
    %1827 = vmatprep.subr.mxu0 0.0
    %1828 = vmatpush2.msra.mxu0 0.0
    %1829 = vmatprep.subr.mxu0 0.0
    %1830 = vmatpush2.msra.mxu0 0.0
    %1831 = vmatprep.subr.mxu0 0.0
    %1832 = vmatpush2.msra.mxu0 0.0
    %1833 = vmatprep.subr.mxu0 0.0
    %1834 = vmatpush2.msra.mxu0 0.0
    %1835 = vmatprep.mubr.f32.mxu0 0.0
    %1836 = vmatmul.mubr.f32.gmra.mxu0 %v1769
    %v1837 = vpop.f32.mrf.mxu0
    %v1838 = vadd.f32 %v1766, %v1837
    %v1839 = vpop.f32.mrf.mxu0
    %v1840 = vadd.f32 %v1766, %v1839
    %1841 = vdwg.mxu0
    %s1842 = scalar_lea.vmem %s10, 8
    %v1843 = vld [vmem:[%s1842] sm:$0xff]
    %s1844 = scalar_lea.vmem %s11, 8
    %v1845 = vld [vmem:[%s1844] sm:$0xff]
    %1847 = vset.pattern.permute.xlu0 0
    %1848 = vperm.xlu0 %1847, %v1843
    %v1849 = vpop.permute.xlu0 %1848
    %v1851 = vmul.f32 %v1849, %v1838
    %v1852 = vmul.f32 %v1849, %v1840
    %v1853 = vand.u32 2147483647, %v1851
    %vm1854 = vcmp.le.f32.partialorder %v1853, 0.7853982
    %vm1855 = vcmp.lt.s32.totalorder %v1851, 0
    %v1856 = vand.u32 %v1851, 2139095040
    %v1857 = vshrl.u32 %v1856, 23
    %v1858 = vsub.s32 %v1857, 127
    %v1859 = vand.u32 2147483647, %v1851
    %v1860 = vand.u32 %v1859, 8388607
    %v1861 = vor.u32 %v1860, 8388608
    %v1862 = vsub.s32 0, %v1861
    %v1863 = vadd.s32 %v1858, 1
    %vm1864 = vcmp.gt.s32.totalorder %v1863, 0
    %v1865 = vsel %vm1864, %v1863, 0
    %v1866 = vshrl.u32 %v1865, 5
    %v1867 = vand.u32 %v1865, 31
    %v1868 = vsub.s32 32, %v1867
    %v1869 = vshrl.u32 683565275, %v1868
    %v1870 = vshll.u32 683565275, %v1867
    %v1871 = vshrl.u32 2475754826, %v1868
    %v1872 = vor.u32 %v1870, %v1871
    %v1873 = vshll.u32 2475754826, %v1867
    %v1874 = vshrl.u32 2131351028, %v1868
    %v1875 = vor.u32 %v1873, %v1874
    %v1876 = vshll.u32 2131351028, %v1867
    %v1877 = vshrl.u32 2102212464, %v1868
    %v1878 = vor.u32 %v1876, %v1877
    %v1879 = vshll.u32 2102212464, %v1867
    %v1880 = vshrl.u32 920167782, %v1868
    %v1881 = vor.u32 %v1879, %v1880
    %v1882 = vshll.u32 920167782, %v1867
    %v1883 = vshrl.u32 1326507024, %v1868
    %v1884 = vor.u32 %v1882, %v1883
    %vm1885 = vcmp.lt.s32.totalorder %v1866, 1
    %vm1886 = vcmp.lt.s32.totalorder %v1866, 2
    %vm1887 = vcmp.lt.s32.totalorder %v1866, 3
    %vm1888 = vcmp.lt.s32.totalorder %v1866, 4
    %v1889 = vsel %vm1885, %v1869, %v1872
    %v1890 = vsel %vm1888, %v1878, 2102212464
    %v1891 = vsel %vm1887, %v1875, %v1890
    %v1892 = vsel %vm1886, %v1889, %v1891
    %v1893 = vsel %vm1885, %v1872, %v1875
    %v1894 = vsel %vm1888, %v1881, 920167782
    %v1895 = vsel %vm1887, %v1878, %v1894
    %v1896 = vsel %vm1886, %v1893, %v1895
    %v1897 = vsel %vm1885, %v1875, %v1878
    %v1898 = vsel %vm1888, %v1884, 1326507024
    %v1899 = vsel %vm1887, %v1881, %v1898
    %v1900 = vsel %vm1886, %v1897, %v1899
    %v1901 = vshll.u32 %v1861, 8
    %v1902 = vmul.u32.u64.compose %v1901, %v1900
    %v1903 = vextract.low.u32 %v1902
    %v1904 = vextract.high.u32 %v1902
    %v1905 = vmul.u32.u64.compose %v1901, %v1896
    %v1906 = vextract.low.u32 %v1905
    %v1907 = vextract.high.u32 %v1905
    %v1908 = vmul.u32 %v1901, %v1892
    %v1909 = vadd.s32 %v1904, %v1906
    %vm1910 = vc.u32 %v1904, %v1906
    %v1911 = vadd.s32 %v1907, 1
    %v1912 = vsel %vm1910, %v1911, %v1907
    %v1913 = vadd.s32 %v1908, %v1912
    %v1914 = vadd.s32 %v1913, 536870912
    %v1915 = vshrl.u32 %v1914, 30
    %v1916 = vshll.u32 %v1915, 30
    %v1917 = vsub.s32 %v1913, %v1916
    %vm1918 = vcmp.lt.s32.totalorder %v1917, 0
    %v1919 = vsub.s32 0, %v1917
    %v1920 = vsel %vm1918, %v1919, %v1917
    %v1921 = vclz %v1920
    %v1922 = vsub.s32 %v1921, 2
    %vm1923 = vcmp.gt.s32.totalorder 0, %v1922
    %v1924 = vsel %vm1923, 0, %v1922
    %v1925 = vsub.s32 32, %v1924
    %v1926 = vshll.u32 %v1917, %v1924
    %v1927 = vshrl.u32 %v1909, %v1925
    %v1928 = vor.u32 %v1926, %v1927
    %v1929 = vsub.s32 4294967266, %v1924
    %v1930 = vadd.s32 %v1929, 127
    %v1931 = vshll.u32 %v1930, 23
    %v1932 = vor.u32 4788187, %v1931
    %v1933 = vand.u32 2147483647, %v1932
    %v1935 = vcvt.s32.f32 %v1928
    %v1936 = vmul.f32 %v1935, %v1933
    %v1937 = vxor.u32 %v1936, 2147483648
    %v1938 = vsel %vm1855, %v1937, %v1936
    %v1939 = vsub.s32 4, %v1915
    %v1940 = vsel %vm1855, %v1939, %v1915
    %v1941 = vsel %vm1854, %v1851, %v1938
    %v1942 = vsel %vm1854, 0, %v1940
    %v1943 = vcosq.f32.pop %v1941
    %v1944 = vsinq.f32.pop %v1941
    %vm1945 = vweird.f32 %v1851
    %v1946 = vadd.s32 %v1942, 3
    %v1947 = vand.u32 %v1946, 3
    %vm1948 = vcmp.lt.s32.totalorder %v1947, 2
    %vm1949 = vcmp.eq.s32.totalorder %v1947, 0
    %v1950 = vxor.u32 %v1944, 2147483648
    %v1951 = vsel %vm1949, %v1943, %v1950
    %vm1952 = vcmp.eq.s32.totalorder %v1947, 2
    %v1953 = vxor.u32 %v1943, 2147483648
    %v1954 = vsel %vm1952, %v1953, %v1944
    %v1955 = vsel %vm1948, %v1951, %v1954
    %v1956 = vsel %vm1945, nan, %v1955
    %v1957 = vand.u32 2147483647, %v1852
    %vm1958 = vcmp.le.f32.partialorder %v1957, 0.7853982
    %vm1959 = vcmp.lt.s32.totalorder %v1852, 0
    %v1960 = vand.u32 %v1852, 2139095040
    %v1961 = vshrl.u32 %v1960, 23
    %v1962 = vsub.s32 %v1961, 127
    %v1963 = vand.u32 2147483647, %v1852
    %v1964 = vand.u32 %v1963, 8388607
    %v1965 = vor.u32 %v1964, 8388608
    %v1966 = vsub.s32 0, %v1965
    %v1967 = vadd.s32 %v1962, 1
    %vm1968 = vcmp.gt.s32.totalorder %v1967, 0
    %v1969 = vsel %vm1968, %v1967, 0
    %v1970 = vshrl.u32 %v1969, 5
    %v1971 = vand.u32 %v1969, 31
    %v1972 = vsub.s32 32, %v1971
    %v1973 = vshrl.u32 683565275, %v1972
    %v1974 = vshll.u32 683565275, %v1971
    %v1975 = vshrl.u32 2475754826, %v1972
    %v1976 = vor.u32 %v1974, %v1975
    %v1977 = vshll.u32 2475754826, %v1971
    %v1978 = vshrl.u32 2131351028, %v1972
    %v1979 = vor.u32 %v1977, %v1978
    %v1980 = vshll.u32 2131351028, %v1971
    %v1981 = vshrl.u32 2102212464, %v1972
    %v1982 = vor.u32 %v1980, %v1981
    %v1983 = vshll.u32 2102212464, %v1971
    %v1984 = vshrl.u32 920167782, %v1972
    %v1985 = vor.u32 %v1983, %v1984
    %v1986 = vshll.u32 920167782, %v1971
    %v1987 = vshrl.u32 1326507024, %v1972
    %v1988 = vor.u32 %v1986, %v1987
    %vm1989 = vcmp.lt.s32.totalorder %v1970, 1
    %vm1990 = vcmp.lt.s32.totalorder %v1970, 2
    %vm1991 = vcmp.lt.s32.totalorder %v1970, 3
    %vm1992 = vcmp.lt.s32.totalorder %v1970, 4
    %v1993 = vsel %vm1989, %v1973, %v1976
    %v1994 = vsel %vm1992, %v1982, 2102212464
    %v1995 = vsel %vm1991, %v1979, %v1994
    %v1996 = vsel %vm1990, %v1993, %v1995
    %v1997 = vsel %vm1989, %v1976, %v1979
    %v1998 = vsel %vm1992, %v1985, 920167782
    %v1999 = vsel %vm1991, %v1982, %v1998
    %v2000 = vsel %vm1990, %v1997, %v1999
    %v2001 = vsel %vm1989, %v1979, %v1982
    %v2002 = vsel %vm1992, %v1988, 1326507024
    %v2003 = vsel %vm1991, %v1985, %v2002
    %v2004 = vsel %vm1990, %v2001, %v2003
    %v2005 = vshll.u32 %v1965, 8
    %v2006 = vmul.u32.u64.compose %v2005, %v2004
    %v2007 = vextract.low.u32 %v2006
    %v2008 = vextract.high.u32 %v2006
    %v2009 = vmul.u32.u64.compose %v2005, %v2000
    %v2010 = vextract.low.u32 %v2009
    %v2011 = vextract.high.u32 %v2009
    %v2012 = vmul.u32 %v2005, %v1996
    %v2013 = vadd.s32 %v2008, %v2010
    %vm2014 = vc.u32 %v2008, %v2010
    %v2015 = vadd.s32 %v2011, 1
    %v2016 = vsel %vm2014, %v2015, %v2011
    %v2017 = vadd.s32 %v2012, %v2016
    %v2018 = vadd.s32 %v2017, 536870912
    %v2019 = vshrl.u32 %v2018, 30
    %v2020 = vshll.u32 %v2019, 30
    %v2021 = vsub.s32 %v2017, %v2020
    %vm2022 = vcmp.lt.s32.totalorder %v2021, 0
    %v2023 = vsub.s32 0, %v2021
    %v2024 = vsel %vm2022, %v2023, %v2021
    %v2025 = vclz %v2024
    %v2026 = vsub.s32 %v2025, 2
    %vm2027 = vcmp.gt.s32.totalorder 0, %v2026
    %v2028 = vsel %vm2027, 0, %v2026
    %v2029 = vsub.s32 32, %v2028
    %v2030 = vshll.u32 %v2021, %v2028
    %v2031 = vshrl.u32 %v2013, %v2029
    %v2032 = vor.u32 %v2030, %v2031
    %v2033 = vsub.s32 4294967266, %v2028
    %v2034 = vadd.s32 %v2033, 127
    %v2035 = vshll.u32 %v2034, 23
    %v2036 = vor.u32 4788187, %v2035
    %v2037 = vand.u32 2147483647, %v2036
    %v2039 = vcvt.s32.f32 %v2032
    %v2040 = vmul.f32 %v2039, %v2037
    %v2041 = vxor.u32 %v2040, 2147483648
    %v2042 = vsel %vm1959, %v2041, %v2040
    %v2043 = vsub.s32 4, %v2019
    %v2044 = vsel %vm1959, %v2043, %v2019
    %v2045 = vsel %vm1958, %v1852, %v2042
    %v2046 = vsel %vm1958, 0, %v2044
    %v2047 = vcosq.f32.pop %v2045
    %v2048 = vsinq.f32.pop %v2045
    %vm2049 = vweird.f32 %v1852
    %v2050 = vadd.s32 %v2046, 3
    %v2051 = vand.u32 %v2050, 3
    %vm2052 = vcmp.lt.s32.totalorder %v2051, 2
    %vm2053 = vcmp.eq.s32.totalorder %v2051, 0
    %v2054 = vxor.u32 %v2048, 2147483648
    %v2055 = vsel %vm2053, %v2047, %v2054
    %vm2056 = vcmp.eq.s32.totalorder %v2051, 2
    %v2057 = vxor.u32 %v2047, 2147483648
    %v2058 = vsel %vm2056, %v2057, %v2048
    %v2059 = vsel %vm2052, %v2055, %v2058
    %v2060 = vsel %vm2049, nan, %v2059
    %v2061 = vmul.f32 %v1956, %v1956
    %v2062 = vmul.f32 %v2060, %v2060
    %2064 = vset.pattern.permute.xlu0 0
    %2065 = vperm.xlu0 %2064, %v1845
    %v2066 = vpop.permute.xlu0 %2065
    %v2068 = vmul.f32 %v2066, %v2061
    %v2069 = vmul.f32 %v2066, %v2062
    %v2070 = vadd.f32 %v1838, %v2068
    %v2071 = vadd.f32 %v1840, %v2069
    %s2072 = scalar_lea.vmem %s12, 8
    %v2073 = vld [vmem:[%s2072] sm:$0xff]
    %s2074 = scalar_lea.vmem %s13, 8
    %v2075 = vld [vmem:[%s2074] sm:$0xff]
    %2077 = vset.pattern.permute.xlu0 0
    %2078 = vperm.xlu0 %2077, %v2075
    %v2079 = vpop.permute.xlu0 %2078
    %v2082 = vsel %vm1371, %v2073, 0
    %2084 = vmatprep.subr.mxu0 0.0
    %2085 = vmatpush1.msra.mxu0 0.0
    %2086 = vmatprep.subr.mxu0 0.0
    %2087 = vmatpush1.msra.mxu0 0.0
    %2088 = vmatprep.subr.mxu0 0.0
    %2089 = vmatpush1.msra.mxu0 0.0
    %2090 = vmatprep.subr.mxu0 0.0
    %2091 = vmatpush1.msra.mxu0 0.0
    %2092 = vmatprep.subr.mxu0 0.0
    %2093 = vmatpush1.msra.mxu0 0.0
    %2094 = vmatprep.subr.mxu0 0.0
    %2095 = vmatpush1.msra.mxu0 0.0
    %2096 = vmatprep.subr.mxu0 0.0
    %2097 = vmatpush1.msra.mxu0 0.0
    %2098 = vmatprep.subr.mxu0 0.0
    %2099 = vmatpush1.msra.mxu0 0.0
    %2100 = vmatprep.subr.mxu0 0.0
    %2101 = vmatpush1.msra.mxu0 0.0
    %2102 = vmatprep.subr.mxu0 0.0
    %2103 = vmatpush1.msra.mxu0 0.0
    %2104 = vmatprep.subr.mxu0 0.0
    %2105 = vmatpush1.msra.mxu0 0.0
    %2106 = vmatprep.subr.mxu0 0.0
    %2107 = vmatpush1.msra.mxu0 0.0
    %2108 = vmatprep.subr.mxu0 0.0
    %2109 = vmatpush1.msra.mxu0 0.0
    %2110 = vmatprep.subr.mxu0 0.0
    %2111 = vmatpush1.msra.mxu0 0.0
    %2112 = vmatprep.subr.mxu0 0.0
    %2113 = vmatpush1.msra.mxu0 0.0
    %2114 = vmatprep.subr.mxu0 %v2071
    %2115 = vmatpush1.msra.mxu0 %v2070
    %2116 = vmatprep.subr.mxu0 0.0
    %2117 = vmatpush2.msra.mxu0 0.0
    %2118 = vmatprep.subr.mxu0 0.0
    %2119 = vmatpush2.msra.mxu0 0.0
    %2120 = vmatprep.subr.mxu0 0.0
    %2121 = vmatpush2.msra.mxu0 0.0
    %2122 = vmatprep.subr.mxu0 0.0
    %2123 = vmatpush2.msra.mxu0 0.0
    %2124 = vmatprep.subr.mxu0 0.0
    %2125 = vmatpush2.msra.mxu0 0.0
    %2126 = vmatprep.subr.mxu0 0.0
    %2127 = vmatpush2.msra.mxu0 0.0
    %2128 = vmatprep.subr.mxu0 0.0
    %2129 = vmatpush2.msra.mxu0 0.0
    %2130 = vmatprep.subr.mxu0 0.0
    %2131 = vmatpush2.msra.mxu0 0.0
    %2132 = vmatprep.subr.mxu0 0.0
    %2133 = vmatpush2.msra.mxu0 0.0
    %2134 = vmatprep.subr.mxu0 0.0
    %2135 = vmatpush2.msra.mxu0 0.0
    %2136 = vmatprep.subr.mxu0 0.0
    %2137 = vmatpush2.msra.mxu0 0.0
    %2138 = vmatprep.subr.mxu0 0.0
    %2139 = vmatpush2.msra.mxu0 0.0
    %2140 = vmatprep.subr.mxu0 0.0
    %2141 = vmatpush2.msra.mxu0 0.0
    %2142 = vmatprep.subr.mxu0 0.0
    %2143 = vmatpush2.msra.mxu0 0.0
    %2144 = vmatprep.subr.mxu0 0.0
    %2145 = vmatpush2.msra.mxu0 0.0
    %2146 = vmatprep.subr.mxu0 0.0
    %2147 = vmatpush2.msra.mxu0 0.0
    %2148 = vmatprep.mubr.f32.mxu0 0.0
    %2149 = vmatmul.mubr.f32.gmra.mxu0 %v2082
    %v2150 = vpop.f32.mrf.mxu0
    %v2151 = vadd.f32 %v2079, %v2150
    %v2152 = vpop.f32.mrf.mxu0
    %v2153 = vadd.f32 %v2079, %v2152
    %2154 = vdwg.mxu0
    %v2155 = vmul.f32 %v2151, %v738
    %v2156 = vmul.f32 %v2153, %v742
    %v2157 = vadd.f32 %v1448, %v2155
    %v2158 = vadd.f32 %v1449, %v2156
    %s2159 = scalar_lea.vmem %s6, 16
    %v2160 = vld [vmem:[%s2159] sm:$0xff]
    %s2161 = scalar_lea.vmem %s7, 16
    %v2162 = vld [vmem:[%s2161] sm:$0xff]
    %2164 = vset.pattern.permute.xlu0 0
    %2165 = vperm.xlu0 %2164, %v2160
    %v2166 = vpop.permute.xlu0 %2165
    %v2168 = vmul.f32 %v2166, %v2157
    %v2169 = vmul.f32 %v2166, %v2158
    %v2170 = vand.u32 2147483647, %v2168
    %vm2171 = vcmp.le.f32.partialorder %v2170, 0.7853982
    %vm2172 = vcmp.lt.s32.totalorder %v2168, 0
    %v2173 = vand.u32 %v2168, 2139095040
    %v2174 = vshrl.u32 %v2173, 23
    %v2175 = vsub.s32 %v2174, 127
    %v2176 = vand.u32 2147483647, %v2168
    %v2177 = vand.u32 %v2176, 8388607
    %v2178 = vor.u32 %v2177, 8388608
    %v2179 = vsub.s32 0, %v2178
    %v2180 = vadd.s32 %v2175, 1
    %vm2181 = vcmp.gt.s32.totalorder %v2180, 0
    %v2182 = vsel %vm2181, %v2180, 0
    %v2183 = vshrl.u32 %v2182, 5
    %v2184 = vand.u32 %v2182, 31
    %v2185 = vsub.s32 32, %v2184
    %v2186 = vshrl.u32 683565275, %v2185
    %v2187 = vshll.u32 683565275, %v2184
    %v2188 = vshrl.u32 2475754826, %v2185
    %v2189 = vor.u32 %v2187, %v2188
    %v2190 = vshll.u32 2475754826, %v2184
    %v2191 = vshrl.u32 2131351028, %v2185
    %v2192 = vor.u32 %v2190, %v2191
    %v2193 = vshll.u32 2131351028, %v2184
    %v2194 = vshrl.u32 2102212464, %v2185
    %v2195 = vor.u32 %v2193, %v2194
    %v2196 = vshll.u32 2102212464, %v2184
    %v2197 = vshrl.u32 920167782, %v2185
    %v2198 = vor.u32 %v2196, %v2197
    %v2199 = vshll.u32 920167782, %v2184
    %v2200 = vshrl.u32 1326507024, %v2185
    %v2201 = vor.u32 %v2199, %v2200
    %vm2202 = vcmp.lt.s32.totalorder %v2183, 1
    %vm2203 = vcmp.lt.s32.totalorder %v2183, 2
    %vm2204 = vcmp.lt.s32.totalorder %v2183, 3
    %vm2205 = vcmp.lt.s32.totalorder %v2183, 4
    %v2206 = vsel %vm2202, %v2186, %v2189
    %v2207 = vsel %vm2205, %v2195, 2102212464
    %v2208 = vsel %vm2204, %v2192, %v2207
    %v2209 = vsel %vm2203, %v2206, %v2208
    %v2210 = vsel %vm2202, %v2189, %v2192
    %v2211 = vsel %vm2205, %v2198, 920167782
    %v2212 = vsel %vm2204, %v2195, %v2211
    %v2213 = vsel %vm2203, %v2210, %v2212
    %v2214 = vsel %vm2202, %v2192, %v2195
    %v2215 = vsel %vm2205, %v2201, 1326507024
    %v2216 = vsel %vm2204, %v2198, %v2215
    %v2217 = vsel %vm2203, %v2214, %v2216
    %v2218 = vshll.u32 %v2178, 8
    %v2219 = vmul.u32.u64.compose %v2218, %v2217
    %v2220 = vextract.low.u32 %v2219
    %v2221 = vextract.high.u32 %v2219
    %v2222 = vmul.u32.u64.compose %v2218, %v2213
    %v2223 = vextract.low.u32 %v2222
    %v2224 = vextract.high.u32 %v2222
    %v2225 = vmul.u32 %v2218, %v2209
    %v2226 = vadd.s32 %v2221, %v2223
    %vm2227 = vc.u32 %v2221, %v2223
    %v2228 = vadd.s32 %v2224, 1
    %v2229 = vsel %vm2227, %v2228, %v2224
    %v2230 = vadd.s32 %v2225, %v2229
    %v2231 = vadd.s32 %v2230, 536870912
    %v2232 = vshrl.u32 %v2231, 30
    %v2233 = vshll.u32 %v2232, 30
    %v2234 = vsub.s32 %v2230, %v2233
    %vm2235 = vcmp.lt.s32.totalorder %v2234, 0
    %v2236 = vsub.s32 0, %v2234
    %v2237 = vsel %vm2235, %v2236, %v2234
    %v2238 = vclz %v2237
    %v2239 = vsub.s32 %v2238, 2
    %vm2240 = vcmp.gt.s32.totalorder 0, %v2239
    %v2241 = vsel %vm2240, 0, %v2239
    %v2242 = vsub.s32 32, %v2241
    %v2243 = vshll.u32 %v2234, %v2241
    %v2244 = vshrl.u32 %v2226, %v2242
    %v2245 = vor.u32 %v2243, %v2244
    %v2246 = vsub.s32 4294967266, %v2241
    %v2247 = vadd.s32 %v2246, 127
    %v2248 = vshll.u32 %v2247, 23
    %v2249 = vor.u32 4788187, %v2248
    %v2250 = vand.u32 2147483647, %v2249
    %v2252 = vcvt.s32.f32 %v2245
    %v2253 = vmul.f32 %v2252, %v2250
    %v2254 = vxor.u32 %v2253, 2147483648
    %v2255 = vsel %vm2172, %v2254, %v2253
    %v2256 = vsub.s32 4, %v2232
    %v2257 = vsel %vm2172, %v2256, %v2232
    %v2258 = vsel %vm2171, %v2168, %v2255
    %v2259 = vsel %vm2171, 0, %v2257
    %v2260 = vcosq.f32.pop %v2258
    %v2261 = vsinq.f32.pop %v2258
    %vm2262 = vweird.f32 %v2168
    %v2263 = vadd.s32 %v2259, 3
    %v2264 = vand.u32 %v2263, 3
    %vm2265 = vcmp.lt.s32.totalorder %v2264, 2
    %vm2266 = vcmp.eq.s32.totalorder %v2264, 0
    %v2267 = vxor.u32 %v2261, 2147483648
    %v2268 = vsel %vm2266, %v2260, %v2267
    %vm2269 = vcmp.eq.s32.totalorder %v2264, 2
    %v2270 = vxor.u32 %v2260, 2147483648
    %v2271 = vsel %vm2269, %v2270, %v2261
    %v2272 = vsel %vm2265, %v2268, %v2271
    %v2273 = vsel %vm2262, nan, %v2272
    %v2274 = vand.u32 2147483647, %v2169
    %vm2275 = vcmp.le.f32.partialorder %v2274, 0.7853982
    %vm2276 = vcmp.lt.s32.totalorder %v2169, 0
    %v2277 = vand.u32 %v2169, 2139095040
    %v2278 = vshrl.u32 %v2277, 23
    %v2279 = vsub.s32 %v2278, 127
    %v2280 = vand.u32 2147483647, %v2169
    %v2281 = vand.u32 %v2280, 8388607
    %v2282 = vor.u32 %v2281, 8388608
    %v2283 = vsub.s32 0, %v2282
    %v2284 = vadd.s32 %v2279, 1
    %vm2285 = vcmp.gt.s32.totalorder %v2284, 0
    %v2286 = vsel %vm2285, %v2284, 0
    %v2287 = vshrl.u32 %v2286, 5
    %v2288 = vand.u32 %v2286, 31
    %v2289 = vsub.s32 32, %v2288
    %v2290 = vshrl.u32 683565275, %v2289
    %v2291 = vshll.u32 683565275, %v2288
    %v2292 = vshrl.u32 2475754826, %v2289
    %v2293 = vor.u32 %v2291, %v2292
    %v2294 = vshll.u32 2475754826, %v2288
    %v2295 = vshrl.u32 2131351028, %v2289
    %v2296 = vor.u32 %v2294, %v2295
    %v2297 = vshll.u32 2131351028, %v2288
    %v2298 = vshrl.u32 2102212464, %v2289
    %v2299 = vor.u32 %v2297, %v2298
    %v2300 = vshll.u32 2102212464, %v2288
    %v2301 = vshrl.u32 920167782, %v2289
    %v2302 = vor.u32 %v2300, %v2301
    %v2303 = vshll.u32 920167782, %v2288
    %v2304 = vshrl.u32 1326507024, %v2289
    %v2305 = vor.u32 %v2303, %v2304
    %vm2306 = vcmp.lt.s32.totalorder %v2287, 1
    %vm2307 = vcmp.lt.s32.totalorder %v2287, 2
    %vm2308 = vcmp.lt.s32.totalorder %v2287, 3
    %vm2309 = vcmp.lt.s32.totalorder %v2287, 4
    %v2310 = vsel %vm2306, %v2290, %v2293
    %v2311 = vsel %vm2309, %v2299, 2102212464
    %v2312 = vsel %vm2308, %v2296, %v2311
    %v2313 = vsel %vm2307, %v2310, %v2312
    %v2314 = vsel %vm2306, %v2293, %v2296
    %v2315 = vsel %vm2309, %v2302, 920167782
    %v2316 = vsel %vm2308, %v2299, %v2315
    %v2317 = vsel %vm2307, %v2314, %v2316
    %v2318 = vsel %vm2306, %v2296, %v2299
    %v2319 = vsel %vm2309, %v2305, 1326507024
    %v2320 = vsel %vm2308, %v2302, %v2319
    %v2321 = vsel %vm2307, %v2318, %v2320
    %v2322 = vshll.u32 %v2282, 8
    %v2323 = vmul.u32.u64.compose %v2322, %v2321
    %v2324 = vextract.low.u32 %v2323
    %v2325 = vextract.high.u32 %v2323
    %v2326 = vmul.u32.u64.compose %v2322, %v2317
    %v2327 = vextract.low.u32 %v2326
    %v2328 = vextract.high.u32 %v2326
    %v2329 = vmul.u32 %v2322, %v2313
    %v2330 = vadd.s32 %v2325, %v2327
    %vm2331 = vc.u32 %v2325, %v2327
    %v2332 = vadd.s32 %v2328, 1
    %v2333 = vsel %vm2331, %v2332, %v2328
    %v2334 = vadd.s32 %v2329, %v2333
    %v2335 = vadd.s32 %v2334, 536870912
    %v2336 = vshrl.u32 %v2335, 30
    %v2337 = vshll.u32 %v2336, 30
    %v2338 = vsub.s32 %v2334, %v2337
    %vm2339 = vcmp.lt.s32.totalorder %v2338, 0
    %v2340 = vsub.s32 0, %v2338
    %v2341 = vsel %vm2339, %v2340, %v2338
    %v2342 = vclz %v2341
    %v2343 = vsub.s32 %v2342, 2
    %vm2344 = vcmp.gt.s32.totalorder 0, %v2343
    %v2345 = vsel %vm2344, 0, %v2343
    %v2346 = vsub.s32 32, %v2345
    %v2347 = vshll.u32 %v2338, %v2345
    %v2348 = vshrl.u32 %v2330, %v2346
    %v2349 = vor.u32 %v2347, %v2348
    %v2350 = vsub.s32 4294967266, %v2345
    %v2351 = vadd.s32 %v2350, 127
    %v2352 = vshll.u32 %v2351, 23
    %v2353 = vor.u32 4788187, %v2352
    %v2354 = vand.u32 2147483647, %v2353
    %v2356 = vcvt.s32.f32 %v2349
    %v2357 = vmul.f32 %v2356, %v2354
    %v2358 = vxor.u32 %v2357, 2147483648
    %v2359 = vsel %vm2276, %v2358, %v2357
    %v2360 = vsub.s32 4, %v2336
    %v2361 = vsel %vm2276, %v2360, %v2336
    %v2362 = vsel %vm2275, %v2169, %v2359
    %v2363 = vsel %vm2275, 0, %v2361
    %v2364 = vcosq.f32.pop %v2362
    %v2365 = vsinq.f32.pop %v2362
    %vm2366 = vweird.f32 %v2169
    %v2367 = vadd.s32 %v2363, 3
    %v2368 = vand.u32 %v2367, 3
    %vm2369 = vcmp.lt.s32.totalorder %v2368, 2
    %vm2370 = vcmp.eq.s32.totalorder %v2368, 0
    %v2371 = vxor.u32 %v2365, 2147483648
    %v2372 = vsel %vm2370, %v2364, %v2371
    %vm2373 = vcmp.eq.s32.totalorder %v2368, 2
    %v2374 = vxor.u32 %v2364, 2147483648
    %v2375 = vsel %vm2373, %v2374, %v2365
    %v2376 = vsel %vm2369, %v2372, %v2375
    %v2377 = vsel %vm2366, nan, %v2376
    %v2378 = vmul.f32 %v2273, %v2273
    %v2379 = vmul.f32 %v2377, %v2377
    %2381 = vset.pattern.permute.xlu0 0
    %2382 = vperm.xlu0 %2381, %v2162
    %v2383 = vpop.permute.xlu0 %2382
    %v2385 = vmul.f32 %v2383, %v2378
    %v2386 = vmul.f32 %v2383, %v2379
    %v2387 = vadd.f32 %v2157, %v2385
    %v2388 = vadd.f32 %v2158, %v2386
    %2391 = vrot.lane.b32.xlu0 %v2387, 27
    %v2392 = vpop.permute.xlu0 %2391
    %2393 = vrot.lane.b32.xlu0 %v2388, 27
    %v2394 = vpop.permute.xlu0 %2393
    %vm2395 = vcmask 220160
    %v2396 = vsel %vm2395, %v2392, %v2394
    %v2400 = vsel %vm2395, 0.0, %v2392
    %v2401 = vsel %vm2395, %v2394, 0.0
    %2404 = vrot.lane.b32.xlu0 %v2400, 119
    %v2405 = vpop.permute.xlu0 %2404
    %2406 = vrot.lane.b32.xlu0 %v2396, 119
    %v2407 = vpop.permute.xlu0 %2406
    %2408 = vrot.lane.b32.xlu0 %v2401, 119
    %v2409 = vpop.permute.xlu0 %2408
    %v2410 = vsel %vm1721, %v2405, %v2407
    %v2411 = vsel %vm1721, %v2407, %v2409
    %2414 = vrot.lane.b32.xlu0 %v2400, 110
    %v2415 = vpop.permute.xlu0 %2414
    %2416 = vrot.lane.b32.xlu0 %v2396, 110
    %v2417 = vpop.permute.xlu0 %2416
    %2418 = vrot.lane.b32.xlu0 %v2401, 110
    %v2419 = vpop.permute.xlu0 %2418
    %v2420 = vsel %vm1754, %v2415, %v2417
    %v2421 = vsel %vm1754, %v2417, %v2419
    %2424 = vrot.lane.b32.xlu0 %v2400, 101
    %v2425 = vpop.permute.xlu0 %2424
    %2426 = vrot.lane.b32.xlu0 %v2396, 101
    %v2427 = vpop.permute.xlu0 %2426
    %2428 = vrot.lane.b32.xlu0 %v2401, 101
    %v2429 = vpop.permute.xlu0 %2428
    %vm2430 = vcmask 826368
    %v2431 = vsel %vm2430, %v2425, %v2427
    %v2432 = vsel %vm2430, %v2427, %v2429
    %2435 = vrot.lane.b32.xlu0 %v2400, 92
    %v2436 = vpop.permute.xlu0 %2435
    %2437 = vrot.lane.b32.xlu0 %v2396, 92
    %v2438 = vpop.permute.xlu0 %2437
    %2439 = vrot.lane.b32.xlu0 %v2401, 92
    %v2440 = vpop.permute.xlu0 %2439
    %vm2441 = vcmask 752640
    %v2442 = vsel %vm2441, %v2436, %v2438
    %v2443 = vsel %vm2441, %v2438, %v2440
    %2446 = vrot.lane.b32.xlu0 %v2400, 83
    %v2447 = vpop.permute.xlu0 %2446
    %2448 = vrot.lane.b32.xlu0 %v2396, 83
    %v2449 = vpop.permute.xlu0 %2448
    %2450 = vrot.lane.b32.xlu0 %v2401, 83
    %v2451 = vpop.permute.xlu0 %2450
    %vm2452 = vcmask 678912
    %v2453 = vsel %vm2452, %v2447, %v2449
    %v2454 = vsel %vm2452, %v2449, %v2451
    %2457 = vrot.lane.b32.xlu0 %v2400, 74
    %v2458 = vpop.permute.xlu0 %2457
    %2459 = vrot.lane.b32.xlu0 %v2396, 74
    %v2460 = vpop.permute.xlu0 %2459
    %2461 = vrot.lane.b32.xlu0 %v2401, 74
    %v2462 = vpop.permute.xlu0 %2461
    %vm2463 = vcmask 605184
    %v2464 = vsel %vm2463, %v2458, %v2460
    %v2465 = vsel %vm2463, %v2460, %v2462
    %s2468 = scalar_lea.vmem %s8, 16
    %v2469 = vld [vmem:[%s2468] sm:$0xff]
    %s2470 = scalar_lea.vmem %s9, 16
    %v2471 = vld [vmem:[%s2470] sm:$0xff]
    %2473 = vset.pattern.permute.xlu0 0
    %2474 = vperm.xlu0 %2473, %v2471
    %v2475 = vpop.permute.xlu0 %2474
    %v2478 = vsel %vm1061, %v2469, 0
    %2480 = vmatprep.subr.mxu0 0.0
    %2481 = vmatpush1.msra.mxu0 0.0
    %2482 = vmatprep.subr.mxu0 0.0
    %2483 = vmatpush1.msra.mxu0 0.0
    %2484 = vmatprep.subr.mxu0 0.0
    %2485 = vmatpush1.msra.mxu0 0.0
    %2486 = vmatprep.subr.mxu0 0.0
    %2487 = vmatpush1.msra.mxu0 0.0
    %2488 = vmatprep.subr.mxu0 0.0
    %2489 = vmatpush1.msra.mxu0 0.0
    %2490 = vmatprep.subr.mxu0 0.0
    %2491 = vmatpush1.msra.mxu0 0.0
    %2492 = vmatprep.subr.mxu0 0.0
    %2493 = vmatpush1.msra.mxu0 0.0
    %2494 = vmatprep.subr.mxu0 0.0
    %2495 = vmatpush1.msra.mxu0 0.0
    %2496 = vmatprep.subr.mxu0 0.0
    %2497 = vmatpush1.msra.mxu0 0.0
    %2498 = vmatprep.subr.mxu0 %v2465
    %2499 = vmatpush1.msra.mxu0 %v2464
    %2500 = vmatprep.subr.mxu0 %v2454
    %2501 = vmatpush1.msra.mxu0 %v2453
    %2502 = vmatprep.subr.mxu0 %v2443
    %2503 = vmatpush1.msra.mxu0 %v2442
    %2504 = vmatprep.subr.mxu0 %v2432
    %2505 = vmatpush1.msra.mxu0 %v2431
    %2506 = vmatprep.subr.mxu0 %v2421
    %2507 = vmatpush1.msra.mxu0 %v2420
    %2508 = vmatprep.subr.mxu0 %v2411
    %2509 = vmatpush1.msra.mxu0 %v2410
    %2510 = vmatprep.subr.mxu0 %v2396
    %2511 = vmatpush1.msra.mxu0 %v2400
    %2512 = vmatprep.subr.mxu0 0.0
    %2513 = vmatpush2.msra.mxu0 0.0
    %2514 = vmatprep.subr.mxu0 0.0
    %2515 = vmatpush2.msra.mxu0 0.0
    %2516 = vmatprep.subr.mxu0 0.0
    %2517 = vmatpush2.msra.mxu0 0.0
    %2518 = vmatprep.subr.mxu0 0.0
    %2519 = vmatpush2.msra.mxu0 0.0
    %2520 = vmatprep.subr.mxu0 0.0
    %2521 = vmatpush2.msra.mxu0 0.0
    %2522 = vmatprep.subr.mxu0 0.0
    %2523 = vmatpush2.msra.mxu0 0.0
    %2524 = vmatprep.subr.mxu0 0.0
    %2525 = vmatpush2.msra.mxu0 0.0
    %2526 = vmatprep.subr.mxu0 0.0
    %2527 = vmatpush2.msra.mxu0 0.0
    %2528 = vmatprep.subr.mxu0 0.0
    %2529 = vmatpush2.msra.mxu0 0.0
    %2530 = vmatprep.subr.mxu0 0.0
    %2531 = vmatpush2.msra.mxu0 0.0
    %2532 = vmatprep.subr.mxu0 0.0
    %2533 = vmatpush2.msra.mxu0 0.0
    %2534 = vmatprep.subr.mxu0 0.0
    %2535 = vmatpush2.msra.mxu0 0.0
    %2536 = vmatprep.subr.mxu0 0.0
    %2537 = vmatpush2.msra.mxu0 0.0
    %2538 = vmatprep.subr.mxu0 0.0
    %2539 = vmatpush2.msra.mxu0 0.0
    %2540 = vmatprep.subr.mxu0 0.0
    %2541 = vmatpush2.msra.mxu0 0.0
    %2542 = vmatprep.subr.mxu0 0.0
    %2543 = vmatpush2.msra.mxu0 0.0
    %2544 = vmatprep.mubr.f32.mxu0 0.0
    %2545 = vmatmul.mubr.f32.gmra.mxu0 %v2478
    %v2546 = vpop.f32.mrf.mxu0
    %v2547 = vadd.f32 %v2475, %v2546
    %v2548 = vpop.f32.mrf.mxu0
    %v2549 = vadd.f32 %v2475, %v2548
    %2550 = vdwg.mxu0
    %s2551 = scalar_lea.vmem %s10, 16
    %v2552 = vld [vmem:[%s2551] sm:$0xff]
    %s2553 = scalar_lea.vmem %s11, 16
    %v2554 = vld [vmem:[%s2553] sm:$0xff]
    %2556 = vset.pattern.permute.xlu0 0
    %2557 = vperm.xlu0 %2556, %v2552
    %v2558 = vpop.permute.xlu0 %2557
    %v2560 = vmul.f32 %v2558, %v2547
    %v2561 = vmul.f32 %v2558, %v2549
    %v2562 = vand.u32 2147483647, %v2560
    %vm2563 = vcmp.le.f32.partialorder %v2562, 0.7853982
    %vm2564 = vcmp.lt.s32.totalorder %v2560, 0
    %v2565 = vand.u32 %v2560, 2139095040
    %v2566 = vshrl.u32 %v2565, 23
    %v2567 = vsub.s32 %v2566, 127
    %v2568 = vand.u32 2147483647, %v2560
    %v2569 = vand.u32 %v2568, 8388607
    %v2570 = vor.u32 %v2569, 8388608
    %v2571 = vsub.s32 0, %v2570
    %v2572 = vadd.s32 %v2567, 1
    %vm2573 = vcmp.gt.s32.totalorder %v2572, 0
    %v2574 = vsel %vm2573, %v2572, 0
    %v2575 = vshrl.u32 %v2574, 5
    %v2576 = vand.u32 %v2574, 31
    %v2577 = vsub.s32 32, %v2576
    %v2578 = vshrl.u32 683565275, %v2577
    %v2579 = vshll.u32 683565275, %v2576
    %v2580 = vshrl.u32 2475754826, %v2577
    %v2581 = vor.u32 %v2579, %v2580
    %v2582 = vshll.u32 2475754826, %v2576
    %v2583 = vshrl.u32 2131351028, %v2577
    %v2584 = vor.u32 %v2582, %v2583
    %v2585 = vshll.u32 2131351028, %v2576
    %v2586 = vshrl.u32 2102212464, %v2577
    %v2587 = vor.u32 %v2585, %v2586
    %v2588 = vshll.u32 2102212464, %v2576
    %v2589 = vshrl.u32 920167782, %v2577
    %v2590 = vor.u32 %v2588, %v2589
    %v2591 = vshll.u32 920167782, %v2576
    %v2592 = vshrl.u32 1326507024, %v2577
    %v2593 = vor.u32 %v2591, %v2592
    %vm2594 = vcmp.lt.s32.totalorder %v2575, 1
    %vm2595 = vcmp.lt.s32.totalorder %v2575, 2
    %vm2596 = vcmp.lt.s32.totalorder %v2575, 3
    %vm2597 = vcmp.lt.s32.totalorder %v2575, 4
    %v2598 = vsel %vm2594, %v2578, %v2581
    %v2599 = vsel %vm2597, %v2587, 2102212464
    %v2600 = vsel %vm2596, %v2584, %v2599
    %v2601 = vsel %vm2595, %v2598, %v2600
    %v2602 = vsel %vm2594, %v2581, %v2584
    %v2603 = vsel %vm2597, %v2590, 920167782
    %v2604 = vsel %vm2596, %v2587, %v2603
    %v2605 = vsel %vm2595, %v2602, %v2604
    %v2606 = vsel %vm2594, %v2584, %v2587
    %v2607 = vsel %vm2597, %v2593, 1326507024
    %v2608 = vsel %vm2596, %v2590, %v2607
    %v2609 = vsel %vm2595, %v2606, %v2608
    %v2610 = vshll.u32 %v2570, 8
    %v2611 = vmul.u32.u64.compose %v2610, %v2609
    %v2612 = vextract.low.u32 %v2611
    %v2613 = vextract.high.u32 %v2611
    %v2614 = vmul.u32.u64.compose %v2610, %v2605
    %v2615 = vextract.low.u32 %v2614
    %v2616 = vextract.high.u32 %v2614
    %v2617 = vmul.u32 %v2610, %v2601
    %v2618 = vadd.s32 %v2613, %v2615
    %vm2619 = vc.u32 %v2613, %v2615
    %v2620 = vadd.s32 %v2616, 1
    %v2621 = vsel %vm2619, %v2620, %v2616
    %v2622 = vadd.s32 %v2617, %v2621
    %v2623 = vadd.s32 %v2622, 536870912
    %v2624 = vshrl.u32 %v2623, 30
    %v2625 = vshll.u32 %v2624, 30
    %v2626 = vsub.s32 %v2622, %v2625
    %vm2627 = vcmp.lt.s32.totalorder %v2626, 0
    %v2628 = vsub.s32 0, %v2626
    %v2629 = vsel %vm2627, %v2628, %v2626
    %v2630 = vclz %v2629
    %v2631 = vsub.s32 %v2630, 2
    %vm2632 = vcmp.gt.s32.totalorder 0, %v2631
    %v2633 = vsel %vm2632, 0, %v2631
    %v2634 = vsub.s32 32, %v2633
    %v2635 = vshll.u32 %v2626, %v2633
    %v2636 = vshrl.u32 %v2618, %v2634
    %v2637 = vor.u32 %v2635, %v2636
    %v2638 = vsub.s32 4294967266, %v2633
    %v2639 = vadd.s32 %v2638, 127
    %v2640 = vshll.u32 %v2639, 23
    %v2641 = vor.u32 4788187, %v2640
    %v2642 = vand.u32 2147483647, %v2641
    %v2644 = vcvt.s32.f32 %v2637
    %v2645 = vmul.f32 %v2644, %v2642
    %v2646 = vxor.u32 %v2645, 2147483648
    %v2647 = vsel %vm2564, %v2646, %v2645
    %v2648 = vsub.s32 4, %v2624
    %v2649 = vsel %vm2564, %v2648, %v2624
    %v2650 = vsel %vm2563, %v2560, %v2647
    %v2651 = vsel %vm2563, 0, %v2649
    %v2652 = vcosq.f32.pop %v2650
    %v2653 = vsinq.f32.pop %v2650
    %vm2654 = vweird.f32 %v2560
    %v2655 = vadd.s32 %v2651, 3
    %v2656 = vand.u32 %v2655, 3
    %vm2657 = vcmp.lt.s32.totalorder %v2656, 2
    %vm2658 = vcmp.eq.s32.totalorder %v2656, 0
    %v2659 = vxor.u32 %v2653, 2147483648
    %v2660 = vsel %vm2658, %v2652, %v2659
    %vm2661 = vcmp.eq.s32.totalorder %v2656, 2
    %v2662 = vxor.u32 %v2652, 2147483648
    %v2663 = vsel %vm2661, %v2662, %v2653
    %v2664 = vsel %vm2657, %v2660, %v2663
    %v2665 = vsel %vm2654, nan, %v2664
    %v2666 = vand.u32 2147483647, %v2561
    %vm2667 = vcmp.le.f32.partialorder %v2666, 0.7853982
    %vm2668 = vcmp.lt.s32.totalorder %v2561, 0
    %v2669 = vand.u32 %v2561, 2139095040
    %v2670 = vshrl.u32 %v2669, 23
    %v2671 = vsub.s32 %v2670, 127
    %v2672 = vand.u32 2147483647, %v2561
    %v2673 = vand.u32 %v2672, 8388607
    %v2674 = vor.u32 %v2673, 8388608
    %v2675 = vsub.s32 0, %v2674
    %v2676 = vadd.s32 %v2671, 1
    %vm2677 = vcmp.gt.s32.totalorder %v2676, 0
    %v2678 = vsel %vm2677, %v2676, 0
    %v2679 = vshrl.u32 %v2678, 5
    %v2680 = vand.u32 %v2678, 31
    %v2681 = vsub.s32 32, %v2680
    %v2682 = vshrl.u32 683565275, %v2681
    %v2683 = vshll.u32 683565275, %v2680
    %v2684 = vshrl.u32 2475754826, %v2681
    %v2685 = vor.u32 %v2683, %v2684
    %v2686 = vshll.u32 2475754826, %v2680
    %v2687 = vshrl.u32 2131351028, %v2681
    %v2688 = vor.u32 %v2686, %v2687
    %v2689 = vshll.u32 2131351028, %v2680
    %v2690 = vshrl.u32 2102212464, %v2681
    %v2691 = vor.u32 %v2689, %v2690
    %v2692 = vshll.u32 2102212464, %v2680
    %v2693 = vshrl.u32 920167782, %v2681
    %v2694 = vor.u32 %v2692, %v2693
    %v2695 = vshll.u32 920167782, %v2680
    %v2696 = vshrl.u32 1326507024, %v2681
    %v2697 = vor.u32 %v2695, %v2696
    %vm2698 = vcmp.lt.s32.totalorder %v2679, 1
    %vm2699 = vcmp.lt.s32.totalorder %v2679, 2
    %vm2700 = vcmp.lt.s32.totalorder %v2679, 3
    %vm2701 = vcmp.lt.s32.totalorder %v2679, 4
    %v2702 = vsel %vm2698, %v2682, %v2685
    %v2703 = vsel %vm2701, %v2691, 2102212464
    %v2704 = vsel %vm2700, %v2688, %v2703
    %v2705 = vsel %vm2699, %v2702, %v2704
    %v2706 = vsel %vm2698, %v2685, %v2688
    %v2707 = vsel %vm2701, %v2694, 920167782
    %v2708 = vsel %vm2700, %v2691, %v2707
    %v2709 = vsel %vm2699, %v2706, %v2708
    %v2710 = vsel %vm2698, %v2688, %v2691
    %v2711 = vsel %vm2701, %v2697, 1326507024
    %v2712 = vsel %vm2700, %v2694, %v2711
    %v2713 = vsel %vm2699, %v2710, %v2712
    %v2714 = vshll.u32 %v2674, 8
    %v2715 = vmul.u32.u64.compose %v2714, %v2713
    %v2716 = vextract.low.u32 %v2715
    %v2717 = vextract.high.u32 %v2715
    %v2718 = vmul.u32.u64.compose %v2714, %v2709
    %v2719 = vextract.low.u32 %v2718
    %v2720 = vextract.high.u32 %v2718
    %v2721 = vmul.u32 %v2714, %v2705
    %v2722 = vadd.s32 %v2717, %v2719
    %vm2723 = vc.u32 %v2717, %v2719
    %v2724 = vadd.s32 %v2720, 1
    %v2725 = vsel %vm2723, %v2724, %v2720
    %v2726 = vadd.s32 %v2721, %v2725
    %v2727 = vadd.s32 %v2726, 536870912
    %v2728 = vshrl.u32 %v2727, 30
    %v2729 = vshll.u32 %v2728, 30
    %v2730 = vsub.s32 %v2726, %v2729
    %vm2731 = vcmp.lt.s32.totalorder %v2730, 0
    %v2732 = vsub.s32 0, %v2730
    %v2733 = vsel %vm2731, %v2732, %v2730
    %v2734 = vclz %v2733
    %v2735 = vsub.s32 %v2734, 2
    %vm2736 = vcmp.gt.s32.totalorder 0, %v2735
    %v2737 = vsel %vm2736, 0, %v2735
    %v2738 = vsub.s32 32, %v2737
    %v2739 = vshll.u32 %v2730, %v2737
    %v2740 = vshrl.u32 %v2722, %v2738
    %v2741 = vor.u32 %v2739, %v2740
    %v2742 = vsub.s32 4294967266, %v2737
    %v2743 = vadd.s32 %v2742, 127
    %v2744 = vshll.u32 %v2743, 23
    %v2745 = vor.u32 4788187, %v2744
    %v2746 = vand.u32 2147483647, %v2745
    %v2748 = vcvt.s32.f32 %v2741
    %v2749 = vmul.f32 %v2748, %v2746
    %v2750 = vxor.u32 %v2749, 2147483648
    %v2751 = vsel %vm2668, %v2750, %v2749
    %v2752 = vsub.s32 4, %v2728
    %v2753 = vsel %vm2668, %v2752, %v2728
    %v2754 = vsel %vm2667, %v2561, %v2751
    %v2755 = vsel %vm2667, 0, %v2753
    %v2756 = vcosq.f32.pop %v2754
    %v2757 = vsinq.f32.pop %v2754
    %vm2758 = vweird.f32 %v2561
    %v2759 = vadd.s32 %v2755, 3
    %v2760 = vand.u32 %v2759, 3
    %vm2761 = vcmp.lt.s32.totalorder %v2760, 2
    %vm2762 = vcmp.eq.s32.totalorder %v2760, 0
    %v2763 = vxor.u32 %v2757, 2147483648
    %v2764 = vsel %vm2762, %v2756, %v2763
    %vm2765 = vcmp.eq.s32.totalorder %v2760, 2
    %v2766 = vxor.u32 %v2756, 2147483648
    %v2767 = vsel %vm2765, %v2766, %v2757
    %v2768 = vsel %vm2761, %v2764, %v2767
    %v2769 = vsel %vm2758, nan, %v2768
    %v2770 = vmul.f32 %v2665, %v2665
    %v2771 = vmul.f32 %v2769, %v2769
    %2773 = vset.pattern.permute.xlu0 0
    %2774 = vperm.xlu0 %2773, %v2554
    %v2775 = vpop.permute.xlu0 %2774
    %v2777 = vmul.f32 %v2775, %v2770
    %v2778 = vmul.f32 %v2775, %v2771
    %v2779 = vadd.f32 %v2547, %v2777
    %v2780 = vadd.f32 %v2549, %v2778
    %s2781 = scalar_lea.vmem %s12, 16
    %v2782 = vld [vmem:[%s2781] sm:$0xff]
    %s2783 = scalar_lea.vmem %s13, 16
    %v2784 = vld [vmem:[%s2783] sm:$0xff]
    %2786 = vset.pattern.permute.xlu0 0
    %2787 = vperm.xlu0 %2786, %v2784
    %v2788 = vpop.permute.xlu0 %2787
    %v2791 = vsel %vm1371, %v2782, 0
    %2793 = vmatprep.subr.mxu0 0.0
    %2794 = vmatpush1.msra.mxu0 0.0
    %2795 = vmatprep.subr.mxu0 0.0
    %2796 = vmatpush1.msra.mxu0 0.0
    %2797 = vmatprep.subr.mxu0 0.0
    %2798 = vmatpush1.msra.mxu0 0.0
    %2799 = vmatprep.subr.mxu0 0.0
    %2800 = vmatpush1.msra.mxu0 0.0
    %2801 = vmatprep.subr.mxu0 0.0
    %2802 = vmatpush1.msra.mxu0 0.0
    %2803 = vmatprep.subr.mxu0 0.0
    %2804 = vmatpush1.msra.mxu0 0.0
    %2805 = vmatprep.subr.mxu0 0.0
    %2806 = vmatpush1.msra.mxu0 0.0
    %2807 = vmatprep.subr.mxu0 0.0
    %2808 = vmatpush1.msra.mxu0 0.0
    %2809 = vmatprep.subr.mxu0 0.0
    %2810 = vmatpush1.msra.mxu0 0.0
    %2811 = vmatprep.subr.mxu0 0.0
    %2812 = vmatpush1.msra.mxu0 0.0
    %2813 = vmatprep.subr.mxu0 0.0
    %2814 = vmatpush1.msra.mxu0 0.0
    %2815 = vmatprep.subr.mxu0 0.0
    %2816 = vmatpush1.msra.mxu0 0.0
    %2817 = vmatprep.subr.mxu0 0.0
    %2818 = vmatpush1.msra.mxu0 0.0
    %2819 = vmatprep.subr.mxu0 0.0
    %2820 = vmatpush1.msra.mxu0 0.0
    %2821 = vmatprep.subr.mxu0 0.0
    %2822 = vmatpush1.msra.mxu0 0.0
    %2823 = vmatprep.subr.mxu0 %v2780
    %2824 = vmatpush1.msra.mxu0 %v2779
    %2825 = vmatprep.subr.mxu0 0.0
    %2826 = vmatpush2.msra.mxu0 0.0
    %2827 = vmatprep.subr.mxu0 0.0
    %2828 = vmatpush2.msra.mxu0 0.0
    %2829 = vmatprep.subr.mxu0 0.0
    %2830 = vmatpush2.msra.mxu0 0.0
    %2831 = vmatprep.subr.mxu0 0.0
    %2832 = vmatpush2.msra.mxu0 0.0
    %2833 = vmatprep.subr.mxu0 0.0
    %2834 = vmatpush2.msra.mxu0 0.0
    %2835 = vmatprep.subr.mxu0 0.0
    %2836 = vmatpush2.msra.mxu0 0.0
    %2837 = vmatprep.subr.mxu0 0.0
    %2838 = vmatpush2.msra.mxu0 0.0
    %2839 = vmatprep.subr.mxu0 0.0
    %2840 = vmatpush2.msra.mxu0 0.0
    %2841 = vmatprep.subr.mxu0 0.0
    %2842 = vmatpush2.msra.mxu0 0.0
    %2843 = vmatprep.subr.mxu0 0.0
    %2844 = vmatpush2.msra.mxu0 0.0
    %2845 = vmatprep.subr.mxu0 0.0
    %2846 = vmatpush2.msra.mxu0 0.0
    %2847 = vmatprep.subr.mxu0 0.0
    %2848 = vmatpush2.msra.mxu0 0.0
    %2849 = vmatprep.subr.mxu0 0.0
    %2850 = vmatpush2.msra.mxu0 0.0
    %2851 = vmatprep.subr.mxu0 0.0
    %2852 = vmatpush2.msra.mxu0 0.0
    %2853 = vmatprep.subr.mxu0 0.0
    %2854 = vmatpush2.msra.mxu0 0.0
    %2855 = vmatprep.subr.mxu0 0.0
    %2856 = vmatpush2.msra.mxu0 0.0
    %2857 = vmatprep.mubr.f32.mxu0 0.0
    %2858 = vmatmul.mubr.f32.gmra.mxu0 %v2791
    %v2859 = vpop.f32.mrf.mxu0
    %v2860 = vadd.f32 %v2788, %v2859
    %v2861 = vpop.f32.mrf.mxu0
    %v2862 = vadd.f32 %v2788, %v2861
    %2863 = vdwg.mxu0
    %v2864 = vmul.f32 %v2860, %v738
    %v2865 = vmul.f32 %v2862, %v742
    %v2866 = vadd.f32 %v2157, %v2864
    %v2867 = vadd.f32 %v2158, %v2865
    %2868 = vst [vmem:[#allocation2] sm:$0xff] %v2866
    %2869 = vst [vmem:[#allocation2 + $0x8] sm:$0xff] %v2867
    // Predicated region
    $region58: #{tpu_custom_call.1} parent=1 // pred_check
      _
    $region59: #{tpu_custom_call.1} parent=1 // pred_check_branch
      %2871 = sbr.rel (0) target = $region61
    $region60: #{tpu_custom_call.1} parent=1 // pred_region
      %s2873 = ssub.s32 256, 256
      %2874 = vsyncadd [#allocation3], %s2873
      %s2876 = sshll.u32 [#allocation2], 4
      %s2877 = int_to_ptr.vmem [resolvable:$true] %s2876
      %2879 = dma.vmem_to_hbm [thread:$0]  %s2877, 256, %s14, [#allocation3]
    $region61: #{tpu_custom_call.1} parent=1 // pred_fallthru
      _
    // Predicated region
    $region62: #{tpu_custom_call.1} parent=1 // pred_check
      _
    $region63: #{tpu_custom_call.1} parent=1 // pred_check_branch
      %2881 = sbr.rel (0) target = $region65
    $region64: #{tpu_custom_call.1} parent=1 // pred_region
      %2882 = dma.done [#allocation3], 256
    $region65: #{tpu_custom_call.1} parent=1 // pred_fallthru
      _
    %2883 = vsyncpa [#allocation3], 1

</llo_original>
